<compile_context>
chip_gen: v5e
topology: v5e:2x2
jax: 0.10.0
libtpu: 0.0.40
codegen_flags: <defaults>
</compile_context>

<pallas_src>
import jax
import jax.numpy as jnp
from jax import lax
from jax.experimental import pallas as pl
from jax.experimental.pallas import tpu as pltpu

HIDDEN = 128          # hidden_dim in the PyTorch module
VOCAB = 256           # output_size (embedding rows == linear out features)


def decoder_kernel(tok_ref,                        # (T,)  int32, scalar prefetch (SMEM)
                   emb_ref,                        # (V, H)   f32, full embedding table (VMEM-resident)
                   h0_ref,                         # (1, H)   f32, initial hidden
                   wg_ref,                         # (2H, 4H) bf16, fused GRU weights
                   bg_ref,                         # (1, 4H)  f32, fused GRU bias
                   wout_ref,                       # (H, V)   bf16, output projection
                   bout_ref,                       # (1, V)   f32, output bias
                   probs_ref,                      # (T, V)   f32 output
                   hout_ref,                       # (1, H)   f32 output (final hidden)
                   hs_ref):                        # (T, H)   f32 VMEM scratch (per-step hidden)
    H = HIDDEN
    T = probs_ref.shape[0]

    def step(i, h):
        tok = tok_ref[i]                                        # scalar SMEM read
        # embedding(input).view(1,1,-1) followed by ReLU -> x: (1, H)
        x = jnp.maximum(emb_ref[pl.ds(tok, 1), :], 0.0)         # dynamic row gather, VMEM
        # Assemble [x ; h] in registers; single fused K=256 MXU matmul.
        xh = jnp.concatenate([x, h], axis=1).astype(jnp.bfloat16)   # (1, 2H)
        # Fused GRU gates.  Columns of g:
        #   [0 : H ]  = W_ir x + W_hr h   (+ b_ir + b_hr)
        #   [H : 2H]  = W_iz x + W_hz h   (+ b_iz + b_hz)
        #   [2H: 3H]  = W_in x            (+ b_in)
        #   [3H: 4H]  = W_hn h            (+ b_hn)
        g = jnp.dot(xh, wg_ref[...], preferred_element_type=jnp.float32) + bg_ref[...]
        rz = jax.nn.sigmoid(g[:, 0:2 * H])                      # one EUP dispatch for r and z
        r = rz[:, 0:H]
        z = rz[:, H:2 * H]
        n = jnp.tanh(g[:, 2 * H:3 * H] + r * g[:, 3 * H:4 * H])
        h_new = (1.0 - z) * n + z * h                           # (1, H) f32 carry
        hs_ref[pl.ds(i, 1), :] = h_new                          # stash h_t for batched projection
        return h_new

    h_final = lax.fori_loop(0, T, step, h0_ref[...], unroll=True)
    hout_ref[...] = h_final

    # out = softmax(Linear(h_t), dim=1), batched over all T steps:
    # one (T,128)@(128,256) matmul + full-vreg softmax, single dense writeback.
    hs = hs_ref[...].astype(jnp.bfloat16)                       # (T, H)
    logits = jnp.dot(hs, wout_ref[...],
                     preferred_element_type=jnp.float32) + bout_ref[...]   # (T, V)
    m = jnp.max(logits, axis=1, keepdims=True)
    e = jnp.exp(logits - m)
    probs_ref[...] = e * pl.reciprocal(jnp.sum(e, axis=1, keepdims=True), approx=True)


def decoder_forward_seq(tokens, hidden, params):
    """tokens: int32 (T,); hidden: (1, 1, H) f32 -> (probs (T, V), hidden (1, 1, H))."""
    emb, wg, bg, wout, bout = params
    T = tokens.shape[0]
    h0 = hidden.reshape(1, HIDDEN)

    probs, h_final = pl.pallas_call(
        decoder_kernel,
        out_shape=(jax.ShapeDtypeStruct((T, VOCAB), jnp.float32),
                   jax.ShapeDtypeStruct((1, HIDDEN), jnp.float32)),
        grid_spec=pltpu.PrefetchScalarGridSpec(
            num_scalar_prefetch=1,             # token ids -> SMEM
            grid=(1,),                         # whole decode in one kernel invocation
            in_specs=[
                # everything is VMEM-resident for the single grid step
                pl.BlockSpec((VOCAB, HIDDEN), lambda i, tok: (0, 0)),          # emb table
                pl.BlockSpec((1, HIDDEN), lambda i, tok: (0, 0)),              # h0
                pl.BlockSpec((2 * HIDDEN, 4 * HIDDEN), lambda i, tok: (0, 0)),  # fused GRU W
                pl.BlockSpec((1, 4 * HIDDEN), lambda i, tok: (0, 0)),          # fused GRU b
                pl.BlockSpec((HIDDEN, VOCAB), lambda i, tok: (0, 0)),          # out W
                pl.BlockSpec((1, VOCAB), lambda i, tok: (0, 0)),               # out b
            ],
            out_specs=(pl.BlockSpec((T, VOCAB), lambda i, tok: (0, 0)),
                       pl.BlockSpec((1, HIDDEN), lambda i, tok: (0, 0))),
            scratch_shapes=[pltpu.VMEM((T, HIDDEN), jnp.float32)],
        ),
        compiler_params=pltpu.CompilerParams(
            dimension_semantics=("arbitrary",)),
    )(tokens, emb, h0, wg, bg, wout, bout)

    return probs, h_final.reshape(1, 1, HIDDEN)


def init_params(key):
    """Build PyTorch-layout params, then pre-fuse/transpose into kernel layout."""
    ks = jax.random.split(key, 7)
    H = HIDDEN
    bound = 1.0 / jnp.sqrt(jnp.float32(H))
    emb = jax.random.normal(ks[0], (VOCAB, H), jnp.float32)                    # nn.Embedding
    w_ih = jax.random.uniform(ks[1], (3 * H, H), jnp.float32, -bound, bound)   # GRU W_ih
    w_hh = jax.random.uniform(ks[2], (3 * H, H), jnp.float32, -bound, bound)   # GRU W_hh
    b_ih = jax.random.uniform(ks[3], (3 * H,), jnp.float32, -bound, bound)
    b_hh = jax.random.uniform(ks[4], (3 * H,), jnp.float32, -bound, bound)
    w_out = jax.random.uniform(ks[5], (VOCAB, H), jnp.float32, -bound, bound)  # nn.Linear
    b_out = jax.random.uniform(ks[6], (VOCAB,), jnp.float32, -bound, bound)

    # Split PyTorch gate blocks [r | z | n].
    w_ir, w_iz, w_in = w_ih[0:H], w_ih[H:2 * H], w_ih[2 * H:3 * H]
    w_hr, w_hz, w_hn = w_hh[0:H], w_hh[H:2 * H], w_hh[2 * H:3 * H]
    zeros = jnp.zeros((H, H), jnp.float32)

    # Fused (2H, 4H) matrix so that [x;h] @ wg gives
    #   [gi_r+gh_r | gi_z+gh_z | gi_n | gh_n]
    top = jnp.concatenate([w_ir.T, w_iz.T, w_in.T, zeros], axis=1)    # input-weight rows
    bot = jnp.concatenate([w_hr.T, w_hz.T, zeros, w_hn.T], axis=1)    # hidden-weight rows
    wg = jnp.concatenate([top, bot], axis=0).astype(jnp.bfloat16)     # (2H, 4H)

    bg = jnp.concatenate([b_ih[0:H] + b_hh[0:H],
                          b_ih[H:2 * H] + b_hh[H:2 * H],
                          b_ih[2 * H:3 * H],
                          b_hh[2 * H:3 * H]]).reshape(1, 4 * H).astype(jnp.float32)

    wout = w_out.T.astype(jnp.bfloat16)                               # (H, V)
    bout = b_out.reshape(1, VOCAB).astype(jnp.float32)
    return (emb, wg, bg, wout, bout)


def reference_forward_seq(tokens, hidden, params):
    """Pure-JAX reference mirroring the kernel math (bf16 matmul inputs, f32 acc)."""
    emb, wg, bg, wout, bout = params
    H = HIDDEN
    h = hidden.reshape(1, H)
    hs = []
    for i in range(tokens.shape[0]):
        x = jnp.maximum(emb[tokens[i]][None, :], 0.0)
        xh = jnp.concatenate([x, h], axis=1).astype(jnp.bfloat16)
        g = jnp.dot(xh, wg, preferred_element_type=jnp.float32) + bg
        r = jax.nn.sigmoid(g[:, 0:H])
        z = jax.nn.sigmoid(g[:, H:2 * H])
        n = jnp.tanh(g[:, 2 * H:3 * H] + r * g[:, 3 * H:4 * H])
        h = (1.0 - z) * n + z * h
        hs.append(h)
    hs = jnp.concatenate(hs, axis=0)                                  # (T, H)
    logits = jnp.dot(hs.astype(jnp.bfloat16), wout,
                     preferred_element_type=jnp.float32) + bout
    return jax.nn.softmax(logits, axis=1), h.reshape(1, 1, H)


if __name__ == "__main__":
    key = jax.random.PRNGKey(0)
    pkey, tkey = jax.random.split(key)
    params = init_params(pkey)

    T = 8                                                     # decode steps fused in one kernel
    tokens = jax.random.randint(tkey, (T,), 0, VOCAB).astype(jnp.int32)
    hidden = jnp.zeros((1, 1, HIDDEN), dtype=jnp.float32)     # initHidden()

    probs, h_new = decoder_forward_seq(tokens, hidden, params)
    jax.block_until_ready((probs, h_new))

    ref_probs, ref_h = reference_forward_seq(tokens, hidden, params)

    assert probs.shape == (T, VOCAB) and h_new.shape == (1, 1, HIDDEN)
    # bf16 weights + approx reciprocal in the softmax -> loosened tolerances.
    assert jnp.allclose(probs, ref_probs, rtol=2e-2, atol=2e-3), \
        float(jnp.max(jnp.abs(probs - ref_probs)))
    assert jnp.allclose(h_new, ref_h, rtol=2e-2, atol=2e-2), \
        float(jnp.max(jnp.abs(h_new - ref_h)))
    # softmax rows must sum to 1 (up to approx-reciprocal error)
    assert jnp.allclose(jnp.sum(probs, axis=1), 1.0, rtol=1e-2, atol=1e-2)

    print("KERNEL_OK")
</pallas_src>

<mosaic_0001>
module attributes {stable_mosaic.version = 11 : i64} {
  func.func @decoder_kernel(%arg0: i32, %arg1: memref<8xi32, #tpu.memory_space<smem>>, %arg2: memref<256x128xf32, #tpu.memory_space<vmem>>, %arg3: memref<1x128xf32, #tpu.memory_space<vmem>>, %arg4: memref<256x512xbf16, #tpu.memory_space<vmem>>, %arg5: memref<1x512xf32, #tpu.memory_space<vmem>>, %arg6: memref<128x256xbf16, #tpu.memory_space<vmem>>, %arg7: memref<1x256xf32, #tpu.memory_space<vmem>>, %arg8: memref<8x256xf32, #tpu.memory_space<vmem>>, %arg9: memref<1x128xf32, #tpu.memory_space<vmem>>, %arg10: memref<8x128xf32, #tpu.memory_space<vmem>>) attributes {dimension_semantics = [#tpu.dimension_semantics<arbitrary>], iteration_bounds = array<i64: 1>, scalar_prefetch = 1 : i64, scratch_operands = 1 : i64, tpu.core_type = #tpu.core_type<tc>, window_params = [{pipeline_mode = #tpu.pipeline_mode<synchronous>, transform_indices = @transform_0, window_bounds = array<i64: 256, 128>}, {pipeline_mode = #tpu.pipeline_mode<synchronous>, transform_indices = @transform_1, window_bounds = array<i64: 1, 128>}, {pipeline_mode = #tpu.pipeline_mode<synchronous>, transform_indices = @transform_2, window_bounds = array<i64: 256, 512>}, {pipeline_mode = #tpu.pipeline_mode<synchronous>, transform_indices = @transform_3, window_bounds = array<i64: 1, 512>}, {pipeline_mode = #tpu.pipeline_mode<synchronous>, transform_indices = @transform_4, window_bounds = array<i64: 128, 256>}, {pipeline_mode = #tpu.pipeline_mode<synchronous>, transform_indices = @transform_5, window_bounds = array<i64: 1, 256>}, {pipeline_mode = #tpu.pipeline_mode<synchronous>, transform_indices = @transform_6, window_bounds = array<i64: 8, 256>}, {pipeline_mode = #tpu.pipeline_mode<synchronous>, transform_indices = @transform_7, window_bounds = array<i64: 1, 128>}]} {
    %c0 = arith.constant 0 : index
    %c0_0 = arith.constant 0 : index
    %0 = vector.load %arg3[%c0, %c0_0] : memref<1x128xf32, #tpu.memory_space<vmem>>, vector<1x128xf32>
    %c0_i32 = arith.constant 0 : i32
    %1 = arith.index_cast %c0_i32 : i32 to index
    %2 = memref.load %arg1[%1] : memref<8xi32, #tpu.memory_space<smem>>
    %3 = arith.index_cast %2 : i32 to index
    %c0_1 = arith.constant 0 : index
    %4 = vector.load %arg2[%3, %c0_1] : memref<256x128xf32, #tpu.memory_space<vmem>>, vector<1x128xf32>
    %cst = arith.constant 0.000000e+00 : f32
    %5 = vector.broadcast %cst : f32 to vector<1x128xf32>
    %6 = arith.maximumf %4, %5 : vector<1x128xf32>
    %7 = tpu.concatenate %6, %0 in 1 : vector<1x128xf32>, vector<1x128xf32> -> vector<1x256xf32>
    %8 = arith.truncf %7 : vector<1x256xf32> to vector<1x256xbf16>
    %c0_2 = arith.constant 0 : index
    %c0_3 = arith.constant 0 : index
    %9 = vector.load %arg4[%c0_2, %c0_3] : memref<256x512xbf16, #tpu.memory_space<vmem>>, vector<256x512xbf16>
    %cst_4 = arith.constant dense<0.000000e+00> : vector<1x512xf32>
    %10 = tpu.matmul %8, %9, %cst_4 {dimension_numbers = #tpu.dot_dimension_numbers<[1], [0], [0], [1], [0, 0, 1, 1], [], []>} : vector<1x256xbf16>, vector<256x512xbf16>, vector<1x512xf32> -> vector<1x512xf32>
    %c0_5 = arith.constant 0 : index
    %c0_6 = arith.constant 0 : index
    %11 = vector.load %arg5[%c0_5, %c0_6] : memref<1x512xf32, #tpu.memory_space<vmem>>, vector<1x512xf32>
    %12 = arith.addf %10, %11 : vector<1x512xf32>
    %13 = vector.extract_strided_slice %12 {offsets = [0, 0], sizes = [1, 256], strides = [1, 1]} : vector<1x512xf32> to vector<1x256xf32>
    %14 = arith.negf %13 : vector<1x256xf32>
    %15 = math.exp %14 : vector<1x256xf32>
    %cst_7 = arith.constant 1.000000e+00 : f32
    %16 = vector.broadcast %cst_7 : f32 to vector<1x256xf32>
    %17 = arith.addf %16, %15 : vector<1x256xf32>
    %18 = arith.divf %16, %17 : vector<1x256xf32>
    %19 = vector.extract_strided_slice %18 {offsets = [0, 0], sizes = [1, 128], strides = [1, 1]} : vector<1x256xf32> to vector<1x128xf32>
    %20 = vector.extract_strided_slice %18 {offsets = [0, 128], sizes = [1, 128], strides = [1, 1]} : vector<1x256xf32> to vector<1x128xf32>
    %21 = vector.extract_strided_slice %12 {offsets = [0, 256], sizes = [1, 128], strides = [1, 1]} : vector<1x512xf32> to vector<1x128xf32>
    %22 = vector.extract_strided_slice %12 {offsets = [0, 384], sizes = [1, 128], strides = [1, 1]} : vector<1x512xf32> to vector<1x128xf32>
    %23 = arith.mulf %19, %22 : vector<1x128xf32>
    %24 = arith.addf %21, %23 : vector<1x128xf32>
    %25 = math.tanh %24 : vector<1x128xf32>
    %cst_8 = arith.constant 1.000000e+00 : f32
    %26 = vector.broadcast %cst_8 : f32 to vector<1x128xf32>
    %27 = arith.subf %26, %20 : vector<1x128xf32>
    %28 = arith.mulf %27, %25 : vector<1x128xf32>
    %29 = arith.mulf %20, %0 : vector<1x128xf32>
    %30 = arith.addf %28, %29 : vector<1x128xf32>
    %31 = arith.index_cast %c0_i32 : i32 to index
    %c0_9 = arith.constant 0 : index
    %32 = vector.load %arg10[%31, %c0_9] : memref<8x128xf32, #tpu.memory_space<vmem>>, vector<1x128xf32>
    tpu.vector_store %arg10[%31, %c0_9], %30 {strides = array<i32>} : memref<8x128xf32, #tpu.memory_space<vmem>>, vector<1x128xf32>,
    %c1_i32 = arith.constant 1 : i32
    %33 = arith.index_cast %c1_i32 : i32 to index
    %34 = memref.load %arg1[%33] : memref<8xi32, #tpu.memory_space<smem>>
    %35 = arith.index_cast %34 : i32 to index
    %c0_10 = arith.constant 0 : index
    %36 = vector.load %arg2[%35, %c0_10] : memref<256x128xf32, #tpu.memory_space<vmem>>, vector<1x128xf32>
    %cst_11 = arith.constant 0.000000e+00 : f32
    %37 = vector.broadcast %cst_11 : f32 to vector<1x128xf32>
    %38 = arith.maximumf %36, %37 : vector<1x128xf32>
    %39 = tpu.concatenate %38, %30 in 1 : vector<1x128xf32>, vector<1x128xf32> -> vector<1x256xf32>
    %40 = arith.truncf %39 : vector<1x256xf32> to vector<1x256xbf16>
    %c0_12 = arith.constant 0 : index
    %c0_13 = arith.constant 0 : index
    %41 = vector.load %arg4[%c0_12, %c0_13] : memref<256x512xbf16, #tpu.memory_space<vmem>>, vector<256x512xbf16>
    %cst_14 = arith.constant dense<0.000000e+00> : vector<1x512xf32>
    %42 = tpu.matmul %40, %41, %cst_14 {dimension_numbers = #tpu.dot_dimension_numbers<[1], [0], [0], [1], [0, 0, 1, 1], [], []>} : vector<1x256xbf16>, vector<256x512xbf16>, vector<1x512xf32> -> vector<1x512xf32>
    %c0_15 = arith.constant 0 : index
    %c0_16 = arith.constant 0 : index
    %43 = vector.load %arg5[%c0_15, %c0_16] : memref<1x512xf32, #tpu.memory_space<vmem>>, vector<1x512xf32>
    %44 = arith.addf %42, %43 : vector<1x512xf32>
    %45 = vector.extract_strided_slice %44 {offsets = [0, 0], sizes = [1, 256], strides = [1, 1]} : vector<1x512xf32> to vector<1x256xf32>
    %46 = arith.negf %45 : vector<1x256xf32>
    %47 = math.exp %46 : vector<1x256xf32>
    %cst_17 = arith.constant 1.000000e+00 : f32
    %48 = vector.broadcast %cst_17 : f32 to vector<1x256xf32>
    %49 = arith.addf %48, %47 : vector<1x256xf32>
    %50 = arith.divf %48, %49 : vector<1x256xf32>
    %51 = vector.extract_strided_slice %50 {offsets = [0, 0], sizes = [1, 128], strides = [1, 1]} : vector<1x256xf32> to vector<1x128xf32>
    %52 = vector.extract_strided_slice %50 {offsets = [0, 128], sizes = [1, 128], strides = [1, 1]} : vector<1x256xf32> to vector<1x128xf32>
    %53 = vector.extract_strided_slice %44 {offsets = [0, 256], sizes = [1, 128], strides = [1, 1]} : vector<1x512xf32> to vector<1x128xf32>
    %54 = vector.extract_strided_slice %44 {offsets = [0, 384], sizes = [1, 128], strides = [1, 1]} : vector<1x512xf32> to vector<1x128xf32>
    %55 = arith.mulf %51, %54 : vector<1x128xf32>
    %56 = arith.addf %53, %55 : vector<1x128xf32>
    %57 = math.tanh %56 : vector<1x128xf32>
    %cst_18 = arith.constant 1.000000e+00 : f32
    %58 = vector.broadcast %cst_18 : f32 to vector<1x128xf32>
    %59 = arith.subf %58, %52 : vector<1x128xf32>
    %60 = arith.mulf %59, %57 : vector<1x128xf32>
    %61 = arith.mulf %52, %30 : vector<1x128xf32>
    %62 = arith.addf %60, %61 : vector<1x128xf32>
    %63 = arith.index_cast %c1_i32 : i32 to index
    %c0_19 = arith.constant 0 : index
    %64 = vector.load %arg10[%63, %c0_19] : memref<8x128xf32, #tpu.memory_space<vmem>>, vector<1x128xf32>
    tpu.vector_store %arg10[%63, %c0_19], %62 {strides = array<i32>} : memref<8x128xf32, #tpu.memory_space<vmem>>, vector<1x128xf32>,
    %c2_i32 = arith.constant 2 : i32
    %65 = arith.index_cast %c2_i32 : i32 to index
    %66 = memref.load %arg1[%65] : memref<8xi32, #tpu.memory_space<smem>>
    %67 = arith.index_cast %66 : i32 to index
    %c0_20 = arith.constant 0 : index
    %68 = vector.load %arg2[%67, %c0_20] : memref<256x128xf32, #tpu.memory_space<vmem>>, vector<1x128xf32>
    %cst_21 = arith.constant 0.000000e+00 : f32
    %69 = vector.broadcast %cst_21 : f32 to vector<1x128xf32>
    %70 = arith.maximumf %68, %69 : vector<1x128xf32>
    %71 = tpu.concatenate %70, %62 in 1 : vector<1x128xf32>, vector<1x128xf32> -> vector<1x256xf32>
    %72 = arith.truncf %71 : vector<1x256xf32> to vector<1x256xbf16>
    %c0_22 = arith.constant 0 : index
    %c0_23 = arith.constant 0 : index
    %73 = vector.load %arg4[%c0_22, %c0_23] : memref<256x512xbf16, #tpu.memory_space<vmem>>, vector<256x512xbf16>
    %cst_24 = arith.constant dense<0.000000e+00> : vector<1x512xf32>
    %74 = tpu.matmul %72, %73, %cst_24 {dimension_numbers = #tpu.dot_dimension_numbers<[1], [0], [0], [1], [0, 0, 1, 1], [], []>} : vector<1x256xbf16>, vector<256x512xbf16>, vector<1x512xf32> -> vector<1x512xf32>
    %c0_25 = arith.constant 0 : index
    %c0_26 = arith.constant 0 : index
    %75 = vector.load %arg5[%c0_25, %c0_26] : memref<1x512xf32, #tpu.memory_space<vmem>>, vector<1x512xf32>
    %76 = arith.addf %74, %75 : vector<1x512xf32>
    %77 = vector.extract_strided_slice %76 {offsets = [0, 0], sizes = [1, 256], strides = [1, 1]} : vector<1x512xf32> to vector<1x256xf32>
    %78 = arith.negf %77 : vector<1x256xf32>
    %79 = math.exp %78 : vector<1x256xf32>
    %cst_27 = arith.constant 1.000000e+00 : f32
    %80 = vector.broadcast %cst_27 : f32 to vector<1x256xf32>
    %81 = arith.addf %80, %79 : vector<1x256xf32>
    %82 = arith.divf %80, %81 : vector<1x256xf32>
    %83 = vector.extract_strided_slice %82 {offsets = [0, 0], sizes = [1, 128], strides = [1, 1]} : vector<1x256xf32> to vector<1x128xf32>
    %84 = vector.extract_strided_slice %82 {offsets = [0, 128], sizes = [1, 128], strides = [1, 1]} : vector<1x256xf32> to vector<1x128xf32>
    %85 = vector.extract_strided_slice %76 {offsets = [0, 256], sizes = [1, 128], strides = [1, 1]} : vector<1x512xf32> to vector<1x128xf32>
    %86 = vector.extract_strided_slice %76 {offsets = [0, 384], sizes = [1, 128], strides = [1, 1]} : vector<1x512xf32> to vector<1x128xf32>
    %87 = arith.mulf %83, %86 : vector<1x128xf32>
    %88 = arith.addf %85, %87 : vector<1x128xf32>
    %89 = math.tanh %88 : vector<1x128xf32>
    %cst_28 = arith.constant 1.000000e+00 : f32
    %90 = vector.broadcast %cst_28 : f32 to vector<1x128xf32>
    %91 = arith.subf %90, %84 : vector<1x128xf32>
    %92 = arith.mulf %91, %89 : vector<1x128xf32>
    %93 = arith.mulf %84, %62 : vector<1x128xf32>
    %94 = arith.addf %92, %93 : vector<1x128xf32>
    %95 = arith.index_cast %c2_i32 : i32 to index
    %c0_29 = arith.constant 0 : index
    %96 = vector.load %arg10[%95, %c0_29] : memref<8x128xf32, #tpu.memory_space<vmem>>, vector<1x128xf32>
    tpu.vector_store %arg10[%95, %c0_29], %94 {strides = array<i32>} : memref<8x128xf32, #tpu.memory_space<vmem>>, vector<1x128xf32>,
    %c3_i32 = arith.constant 3 : i32
    %97 = arith.index_cast %c3_i32 : i32 to index
    %98 = memref.load %arg1[%97] : memref<8xi32, #tpu.memory_space<smem>>
    %99 = arith.index_cast %98 : i32 to index
    %c0_30 = arith.constant 0 : index
    %100 = vector.load %arg2[%99, %c0_30] : memref<256x128xf32, #tpu.memory_space<vmem>>, vector<1x128xf32>
    %cst_31 = arith.constant 0.000000e+00 : f32
    %101 = vector.broadcast %cst_31 : f32 to vector<1x128xf32>
    %102 = arith.maximumf %100, %101 : vector<1x128xf32>
    %103 = tpu.concatenate %102, %94 in 1 : vector<1x128xf32>, vector<1x128xf32> -> vector<1x256xf32>
    %104 = arith.truncf %103 : vector<1x256xf32> to vector<1x256xbf16>
    %c0_32 = arith.constant 0 : index
    %c0_33 = arith.constant 0 : index
    %105 = vector.load %arg4[%c0_32, %c0_33] : memref<256x512xbf16, #tpu.memory_space<vmem>>, vector<256x512xbf16>
    %cst_34 = arith.constant dense<0.000000e+00> : vector<1x512xf32>
    %106 = tpu.matmul %104, %105, %cst_34 {dimension_numbers = #tpu.dot_dimension_numbers<[1], [0], [0], [1], [0, 0, 1, 1], [], []>} : vector<1x256xbf16>, vector<256x512xbf16>, vector<1x512xf32> -> vector<1x512xf32>
    %c0_35 = arith.constant 0 : index
    %c0_36 = arith.constant 0 : index
    %107 = vector.load %arg5[%c0_35, %c0_36] : memref<1x512xf32, #tpu.memory_space<vmem>>, vector<1x512xf32>
    %108 = arith.addf %106, %107 : vector<1x512xf32>
    %109 = vector.extract_strided_slice %108 {offsets = [0, 0], sizes = [1, 256], strides = [1, 1]} : vector<1x512xf32> to vector<1x256xf32>
    %110 = arith.negf %109 : vector<1x256xf32>
    %111 = math.exp %110 : vector<1x256xf32>
    %cst_37 = arith.constant 1.000000e+00 : f32
    %112 = vector.broadcast %cst_37 : f32 to vector<1x256xf32>
    %113 = arith.addf %112, %111 : vector<1x256xf32>
    %114 = arith.divf %112, %113 : vector<1x256xf32>
    %115 = vector.extract_strided_slice %114 {offsets = [0, 0], sizes = [1, 128], strides = [1, 1]} : vector<1x256xf32> to vector<1x128xf32>
    %116 = vector.extract_strided_slice %114 {offsets = [0, 128], sizes = [1, 128], strides = [1, 1]} : vector<1x256xf32> to vector<1x128xf32>
    %117 = vector.extract_strided_slice %108 {offsets = [0, 256], sizes = [1, 128], strides = [1, 1]} : vector<1x512xf32> to vector<1x128xf32>
    %118 = vector.extract_strided_slice %108 {offsets = [0, 384], sizes = [1, 128], strides = [1, 1]} : vector<1x512xf32> to vector<1x128xf32>
    %119 = arith.mulf %115, %118 : vector<1x128xf32>
    %120 = arith.addf %117, %119 : vector<1x128xf32>
    %121 = math.tanh %120 : vector<1x128xf32>
    %cst_38 = arith.constant 1.000000e+00 : f32
    %122 = vector.broadcast %cst_38 : f32 to vector<1x128xf32>
    %123 = arith.subf %122, %116 : vector<1x128xf32>
    %124 = arith.mulf %123, %121 : vector<1x128xf32>
    %125 = arith.mulf %116, %94 : vector<1x128xf32>
    %126 = arith.addf %124, %125 : vector<1x128xf32>
    %127 = arith.index_cast %c3_i32 : i32 to index
    %c0_39 = arith.constant 0 : index
    %128 = vector.load %arg10[%127, %c0_39] : memref<8x128xf32, #tpu.memory_space<vmem>>, vector<1x128xf32>
    tpu.vector_store %arg10[%127, %c0_39], %126 {strides = array<i32>} : memref<8x128xf32, #tpu.memory_space<vmem>>, vector<1x128xf32>,
    %c4_i32 = arith.constant 4 : i32
    %129 = arith.index_cast %c4_i32 : i32 to index
    %130 = memref.load %arg1[%129] : memref<8xi32, #tpu.memory_space<smem>>
    %131 = arith.index_cast %130 : i32 to index
    %c0_40 = arith.constant 0 : index
    %132 = vector.load %arg2[%131, %c0_40] : memref<256x128xf32, #tpu.memory_space<vmem>>, vector<1x128xf32>
    %cst_41 = arith.constant 0.000000e+00 : f32
    %133 = vector.broadcast %cst_41 : f32 to vector<1x128xf32>
    %134 = arith.maximumf %132, %133 : vector<1x128xf32>
    %135 = tpu.concatenate %134, %126 in 1 : vector<1x128xf32>, vector<1x128xf32> -> vector<1x256xf32>
    %136 = arith.truncf %135 : vector<1x256xf32> to vector<1x256xbf16>
    %c0_42 = arith.constant 0 : index
    %c0_43 = arith.constant 0 : index
    %137 = vector.load %arg4[%c0_42, %c0_43] : memref<256x512xbf16, #tpu.memory_space<vmem>>, vector<256x512xbf16>
    %cst_44 = arith.constant dense<0.000000e+00> : vector<1x512xf32>
    %138 = tpu.matmul %136, %137, %cst_44 {dimension_numbers = #tpu.dot_dimension_numbers<[1], [0], [0], [1], [0, 0, 1, 1], [], []>} : vector<1x256xbf16>, vector<256x512xbf16>, vector<1x512xf32> -> vector<1x512xf32>
    %c0_45 = arith.constant 0 : index
    %c0_46 = arith.constant 0 : index
    %139 = vector.load %arg5[%c0_45, %c0_46] : memref<1x512xf32, #tpu.memory_space<vmem>>, vector<1x512xf32>
    %140 = arith.addf %138, %139 : vector<1x512xf32>
    %141 = vector.extract_strided_slice %140 {offsets = [0, 0], sizes = [1, 256], strides = [1, 1]} : vector<1x512xf32> to vector<1x256xf32>
    %142 = arith.negf %141 : vector<1x256xf32>
    %143 = math.exp %142 : vector<1x256xf32>
    %cst_47 = arith.constant 1.000000e+00 : f32
    %144 = vector.broadcast %cst_47 : f32 to vector<1x256xf32>
    %145 = arith.addf %144, %143 : vector<1x256xf32>
    %146 = arith.divf %144, %145 : vector<1x256xf32>
    %147 = vector.extract_strided_slice %146 {offsets = [0, 0], sizes = [1, 128], strides = [1, 1]} : vector<1x256xf32> to vector<1x128xf32>
    %148 = vector.extract_strided_slice %146 {offsets = [0, 128], sizes = [1, 128], strides = [1, 1]} : vector<1x256xf32> to vector<1x128xf32>
    %149 = vector.extract_strided_slice %140 {offsets = [0, 256], sizes = [1, 128], strides = [1, 1]} : vector<1x512xf32> to vector<1x128xf32>
    %150 = vector.extract_strided_slice %140 {offsets = [0, 384], sizes = [1, 128], strides = [1, 1]} : vector<1x512xf32> to vector<1x128xf32>
    %151 = arith.mulf %147, %150 : vector<1x128xf32>
    %152 = arith.addf %149, %151 : vector<1x128xf32>
    %153 = math.tanh %152 : vector<1x128xf32>
    %cst_48 = arith.constant 1.000000e+00 : f32
    %154 = vector.broadcast %cst_48 : f32 to vector<1x128xf32>
    %155 = arith.subf %154, %148 : vector<1x128xf32>
    %156 = arith.mulf %155, %153 : vector<1x128xf32>
    %157 = arith.mulf %148, %126 : vector<1x128xf32>
    %158 = arith.addf %156, %157 : vector<1x128xf32>
    %159 = arith.index_cast %c4_i32 : i32 to index
    %c0_49 = arith.constant 0 : index
    %160 = vector.load %arg10[%159, %c0_49] : memref<8x128xf32, #tpu.memory_space<vmem>>, vector<1x128xf32>
    tpu.vector_store %arg10[%159, %c0_49], %158 {strides = array<i32>} : memref<8x128xf32, #tpu.memory_space<vmem>>, vector<1x128xf32>,
    %c5_i32 = arith.constant 5 : i32
    %161 = arith.index_cast %c5_i32 : i32 to index
    %162 = memref.load %arg1[%161] : memref<8xi32, #tpu.memory_space<smem>>
    %163 = arith.index_cast %162 : i32 to index
    %c0_50 = arith.constant 0 : index
    %164 = vector.load %arg2[%163, %c0_50] : memref<256x128xf32, #tpu.memory_space<vmem>>, vector<1x128xf32>
    %cst_51 = arith.constant 0.000000e+00 : f32
    %165 = vector.broadcast %cst_51 : f32 to vector<1x128xf32>
    %166 = arith.maximumf %164, %165 : vector<1x128xf32>
    %167 = tpu.concatenate %166, %158 in 1 : vector<1x128xf32>, vector<1x128xf32> -> vector<1x256xf32>
    %168 = arith.truncf %167 : vector<1x256xf32> to vector<1x256xbf16>
    %c0_52 = arith.constant 0 : index
    %c0_53 = arith.constant 0 : index
    %169 = vector.load %arg4[%c0_52, %c0_53] : memref<256x512xbf16, #tpu.memory_space<vmem>>, vector<256x512xbf16>
    %cst_54 = arith.constant dense<0.000000e+00> : vector<1x512xf32>
    %170 = tpu.matmul %168, %169, %cst_54 {dimension_numbers = #tpu.dot_dimension_numbers<[1], [0], [0], [1], [0, 0, 1, 1], [], []>} : vector<1x256xbf16>, vector<256x512xbf16>, vector<1x512xf32> -> vector<1x512xf32>
    %c0_55 = arith.constant 0 : index
    %c0_56 = arith.constant 0 : index
    %171 = vector.load %arg5[%c0_55, %c0_56] : memref<1x512xf32, #tpu.memory_space<vmem>>, vector<1x512xf32>
    %172 = arith.addf %170, %171 : vector<1x512xf32>
    %173 = vector.extract_strided_slice %172 {offsets = [0, 0], sizes = [1, 256], strides = [1, 1]} : vector<1x512xf32> to vector<1x256xf32>
    %174 = arith.negf %173 : vector<1x256xf32>
    %175 = math.exp %174 : vector<1x256xf32>
    %cst_57 = arith.constant 1.000000e+00 : f32
    %176 = vector.broadcast %cst_57 : f32 to vector<1x256xf32>
    %177 = arith.addf %176, %175 : vector<1x256xf32>
    %178 = arith.divf %176, %177 : vector<1x256xf32>
    %179 = vector.extract_strided_slice %178 {offsets = [0, 0], sizes = [1, 128], strides = [1, 1]} : vector<1x256xf32> to vector<1x128xf32>
    %180 = vector.extract_strided_slice %178 {offsets = [0, 128], sizes = [1, 128], strides = [1, 1]} : vector<1x256xf32> to vector<1x128xf32>
    %181 = vector.extract_strided_slice %172 {offsets = [0, 256], sizes = [1, 128], strides = [1, 1]} : vector<1x512xf32> to vector<1x128xf32>
    %182 = vector.extract_strided_slice %172 {offsets = [0, 384], sizes = [1, 128], strides = [1, 1]} : vector<1x512xf32> to vector<1x128xf32>
    %183 = arith.mulf %179, %182 : vector<1x128xf32>
    %184 = arith.addf %181, %183 : vector<1x128xf32>
    %185 = math.tanh %184 : vector<1x128xf32>
    %cst_58 = arith.constant 1.000000e+00 : f32
    %186 = vector.broadcast %cst_58 : f32 to vector<1x128xf32>
    %187 = arith.subf %186, %180 : vector<1x128xf32>
    %188 = arith.mulf %187, %185 : vector<1x128xf32>
    %189 = arith.mulf %180, %158 : vector<1x128xf32>
    %190 = arith.addf %188, %189 : vector<1x128xf32>
    %191 = arith.index_cast %c5_i32 : i32 to index
    %c0_59 = arith.constant 0 : index
    %192 = vector.load %arg10[%191, %c0_59] : memref<8x128xf32, #tpu.memory_space<vmem>>, vector<1x128xf32>
    tpu.vector_store %arg10[%191, %c0_59], %190 {strides = array<i32>} : memref<8x128xf32, #tpu.memory_space<vmem>>, vector<1x128xf32>,
    %c6_i32 = arith.constant 6 : i32
    %193 = arith.index_cast %c6_i32 : i32 to index
    %194 = memref.load %arg1[%193] : memref<8xi32, #tpu.memory_space<smem>>
    %195 = arith.index_cast %194 : i32 to index
    %c0_60 = arith.constant 0 : index
    %196 = vector.load %arg2[%195, %c0_60] : memref<256x128xf32, #tpu.memory_space<vmem>>, vector<1x128xf32>
    %cst_61 = arith.constant 0.000000e+00 : f32
    %197 = vector.broadcast %cst_61 : f32 to vector<1x128xf32>
    %198 = arith.maximumf %196, %197 : vector<1x128xf32>
    %199 = tpu.concatenate %198, %190 in 1 : vector<1x128xf32>, vector<1x128xf32> -> vector<1x256xf32>
    %200 = arith.truncf %199 : vector<1x256xf32> to vector<1x256xbf16>
    %c0_62 = arith.constant 0 : index
    %c0_63 = arith.constant 0 : index
    %201 = vector.load %arg4[%c0_62, %c0_63] : memref<256x512xbf16, #tpu.memory_space<vmem>>, vector<256x512xbf16>
    %cst_64 = arith.constant dense<0.000000e+00> : vector<1x512xf32>
    %202 = tpu.matmul %200, %201, %cst_64 {dimension_numbers = #tpu.dot_dimension_numbers<[1], [0], [0], [1], [0, 0, 1, 1], [], []>} : vector<1x256xbf16>, vector<256x512xbf16>, vector<1x512xf32> -> vector<1x512xf32>
    %c0_65 = arith.constant 0 : index
    %c0_66 = arith.constant 0 : index
    %203 = vector.load %arg5[%c0_65, %c0_66] : memref<1x512xf32, #tpu.memory_space<vmem>>, vector<1x512xf32>
    %204 = arith.addf %202, %203 : vector<1x512xf32>
    %205 = vector.extract_strided_slice %204 {offsets = [0, 0], sizes = [1, 256], strides = [1, 1]} : vector<1x512xf32> to vector<1x256xf32>
    %206 = arith.negf %205 : vector<1x256xf32>
    %207 = math.exp %206 : vector<1x256xf32>
    %cst_67 = arith.constant 1.000000e+00 : f32
    %208 = vector.broadcast %cst_67 : f32 to vector<1x256xf32>
    %209 = arith.addf %208, %207 : vector<1x256xf32>
    %210 = arith.divf %208, %209 : vector<1x256xf32>
    %211 = vector.extract_strided_slice %210 {offsets = [0, 0], sizes = [1, 128], strides = [1, 1]} : vector<1x256xf32> to vector<1x128xf32>
    %212 = vector.extract_strided_slice %210 {offsets = [0, 128], sizes = [1, 128], strides = [1, 1]} : vector<1x256xf32> to vector<1x128xf32>
    %213 = vector.extract_strided_slice %204 {offsets = [0, 256], sizes = [1, 128], strides = [1, 1]} : vector<1x512xf32> to vector<1x128xf32>
    %214 = vector.extract_strided_slice %204 {offsets = [0, 384], sizes = [1, 128], strides = [1, 1]} : vector<1x512xf32> to vector<1x128xf32>
    %215 = arith.mulf %211, %214 : vector<1x128xf32>
    %216 = arith.addf %213, %215 : vector<1x128xf32>
    %217 = math.tanh %216 : vector<1x128xf32>
    %cst_68 = arith.constant 1.000000e+00 : f32
    %218 = vector.broadcast %cst_68 : f32 to vector<1x128xf32>
    %219 = arith.subf %218, %212 : vector<1x128xf32>
    %220 = arith.mulf %219, %217 : vector<1x128xf32>
    %221 = arith.mulf %212, %190 : vector<1x128xf32>
    %222 = arith.addf %220, %221 : vector<1x128xf32>
    %223 = arith.index_cast %c6_i32 : i32 to index
    %c0_69 = arith.constant 0 : index
    %224 = vector.load %arg10[%223, %c0_69] : memref<8x128xf32, #tpu.memory_space<vmem>>, vector<1x128xf32>
    tpu.vector_store %arg10[%223, %c0_69], %222 {strides = array<i32>} : memref<8x128xf32, #tpu.memory_space<vmem>>, vector<1x128xf32>,
    %c7_i32 = arith.constant 7 : i32
    %225 = arith.index_cast %c7_i32 : i32 to index
    %226 = memref.load %arg1[%225] : memref<8xi32, #tpu.memory_space<smem>>
    %227 = arith.index_cast %226 : i32 to index
    %c0_70 = arith.constant 0 : index
    %228 = vector.load %arg2[%227, %c0_70] : memref<256x128xf32, #tpu.memory_space<vmem>>, vector<1x128xf32>
    %cst_71 = arith.constant 0.000000e+00 : f32
    %229 = vector.broadcast %cst_71 : f32 to vector<1x128xf32>
    %230 = arith.maximumf %228, %229 : vector<1x128xf32>
    %231 = tpu.concatenate %230, %222 in 1 : vector<1x128xf32>, vector<1x128xf32> -> vector<1x256xf32>
    %232 = arith.truncf %231 : vector<1x256xf32> to vector<1x256xbf16>
    %c0_72 = arith.constant 0 : index
    %c0_73 = arith.constant 0 : index
    %233 = vector.load %arg4[%c0_72, %c0_73] : memref<256x512xbf16, #tpu.memory_space<vmem>>, vector<256x512xbf16>
    %cst_74 = arith.constant dense<0.000000e+00> : vector<1x512xf32>
    %234 = tpu.matmul %232, %233, %cst_74 {dimension_numbers = #tpu.dot_dimension_numbers<[1], [0], [0], [1], [0, 0, 1, 1], [], []>} : vector<1x256xbf16>, vector<256x512xbf16>, vector<1x512xf32> -> vector<1x512xf32>
    %c0_75 = arith.constant 0 : index
    %c0_76 = arith.constant 0 : index
    %235 = vector.load %arg5[%c0_75, %c0_76] : memref<1x512xf32, #tpu.memory_space<vmem>>, vector<1x512xf32>
    %236 = arith.addf %234, %235 : vector<1x512xf32>
    %237 = vector.extract_strided_slice %236 {offsets = [0, 0], sizes = [1, 256], strides = [1, 1]} : vector<1x512xf32> to vector<1x256xf32>
    %238 = arith.negf %237 : vector<1x256xf32>
    %239 = math.exp %238 : vector<1x256xf32>
    %cst_77 = arith.constant 1.000000e+00 : f32
    %240 = vector.broadcast %cst_77 : f32 to vector<1x256xf32>
    %241 = arith.addf %240, %239 : vector<1x256xf32>
    %242 = arith.divf %240, %241 : vector<1x256xf32>
    %243 = vector.extract_strided_slice %242 {offsets = [0, 0], sizes = [1, 128], strides = [1, 1]} : vector<1x256xf32> to vector<1x128xf32>
    %244 = vector.extract_strided_slice %242 {offsets = [0, 128], sizes = [1, 128], strides = [1, 1]} : vector<1x256xf32> to vector<1x128xf32>
    %245 = vector.extract_strided_slice %236 {offsets = [0, 256], sizes = [1, 128], strides = [1, 1]} : vector<1x512xf32> to vector<1x128xf32>
    %246 = vector.extract_strided_slice %236 {offsets = [0, 384], sizes = [1, 128], strides = [1, 1]} : vector<1x512xf32> to vector<1x128xf32>
    %247 = arith.mulf %243, %246 : vector<1x128xf32>
    %248 = arith.addf %245, %247 : vector<1x128xf32>
    %249 = math.tanh %248 : vector<1x128xf32>
    %cst_78 = arith.constant 1.000000e+00 : f32
    %250 = vector.broadcast %cst_78 : f32 to vector<1x128xf32>
    %251 = arith.subf %250, %244 : vector<1x128xf32>
    %252 = arith.mulf %251, %249 : vector<1x128xf32>
    %253 = arith.mulf %244, %222 : vector<1x128xf32>
    %254 = arith.addf %252, %253 : vector<1x128xf32>
    %255 = arith.index_cast %c7_i32 : i32 to index
    %c0_79 = arith.constant 0 : index
    %256 = vector.load %arg10[%255, %c0_79] : memref<8x128xf32, #tpu.memory_space<vmem>>, vector<1x128xf32>
    tpu.vector_store %arg10[%255, %c0_79], %254 {strides = array<i32>} : memref<8x128xf32, #tpu.memory_space<vmem>>, vector<1x128xf32>,
    %c8_i32 = arith.constant 8 : i32
    %c0_80 = arith.constant 0 : index
    %c0_81 = arith.constant 0 : index
    %257 = vector.load %arg9[%c0_80, %c0_81] : memref<1x128xf32, #tpu.memory_space<vmem>>, vector<1x128xf32>
    tpu.vector_store %arg9[%c0_80, %c0_81], %254 {strides = array<i32>} : memref<1x128xf32, #tpu.memory_space<vmem>>, vector<1x128xf32>,
    %c0_82 = arith.constant 0 : index
    %c0_83 = arith.constant 0 : index
    %258 = vector.load %arg10[%c0_82, %c0_83] : memref<8x128xf32, #tpu.memory_space<vmem>>, vector<8x128xf32>
    %259 = arith.truncf %258 : vector<8x128xf32> to vector<8x128xbf16>
    %c0_84 = arith.constant 0 : index
    %c0_85 = arith.constant 0 : index
    %260 = vector.load %arg6[%c0_84, %c0_85] : memref<128x256xbf16, #tpu.memory_space<vmem>>, vector<128x256xbf16>
    %cst_86 = arith.constant dense<0.000000e+00> : vector<8x256xf32>
    %261 = tpu.matmul %259, %260, %cst_86 {dimension_numbers = #tpu.dot_dimension_numbers<[1], [0], [0], [1], [0, 0, 1, 1], [], []>} : vector<8x128xbf16>, vector<128x256xbf16>, vector<8x256xf32> -> vector<8x256xf32>
    %c0_87 = arith.constant 0 : index
    %c0_88 = arith.constant 0 : index
    %262 = vector.load %arg7[%c0_87, %c0_88] : memref<1x256xf32, #tpu.memory_space<vmem>>, vector<1x256xf32>
    %263 = vector.broadcast %262 : vector<1x256xf32> to vector<8x256xf32>
    %264 = arith.addf %261, %263 : vector<8x256xf32>
    %cst_89 = arith.constant dense<0xFF800000> : vector<8xf32>
    %265 = vector.multi_reduction <maximumf>, %264, %cst_89 [1] : vector<8x256xf32> to vector<8xf32>
    %266 = vector.shape_cast %265 : vector<8xf32> to vector<8x1xf32>
    %267 = vector.broadcast %266 : vector<8x1xf32> to vector<8x256xf32>
    %268 = arith.subf %264, %267 : vector<8x256xf32>
    %269 = math.exp %268 : vector<8x256xf32>
    %cst_90 = arith.constant dense<0.000000e+00> : vector<8xf32>
    %270 = vector.multi_reduction <add>, %269, %cst_90 [1] : vector<8x256xf32> to vector<8xf32>
    %271 = vector.shape_cast %270 : vector<8xf32> to vector<8x1xf32>
    %272 = tpu.reciprocal %271 {approx = true} : vector<8x1xf32> -> vector<8x1xf32>
    %273 = vector.broadcast %272 : vector<8x1xf32> to vector<8x256xf32>
    %274 = arith.mulf %269, %273 : vector<8x256xf32>
    %c0_91 = arith.constant 0 : index
    %c0_92 = arith.constant 0 : index
    %275 = vector.load %arg8[%c0_91, %c0_92] : memref<8x256xf32, #tpu.memory_space<vmem>>, vector<8x256xf32>
    tpu.vector_store %arg8[%c0_91, %c0_92], %274 {strides = array<i32>} : memref<8x256xf32, #tpu.memory_space<vmem>>, vector<8x256xf32>,
    return
  }
  func.func @transform_0(%arg0: i32, %arg1: memref<8xi32, #tpu.memory_space<smem>>) -> (i32, i32) {
    %c0_i32 = arith.constant 0 : i32
    %c0_i32_0 = arith.constant 0 : i32
    %c0_i32_1 = arith.constant 0 : i32
    return %c0_i32, %c0_i32_0 : i32, i32
  }
  func.func @transform_1(%arg0: i32, %arg1: memref<8xi32, #tpu.memory_space<smem>>) -> (i32, i32) {
    %c0_i32 = arith.constant 0 : i32
    %c0_i32_0 = arith.constant 0 : i32
    %c0_i32_1 = arith.constant 0 : i32
    return %c0_i32, %c0_i32_0 : i32, i32
  }
  func.func @transform_2(%arg0: i32, %arg1: memref<8xi32, #tpu.memory_space<smem>>) -> (i32, i32) {
    %c0_i32 = arith.constant 0 : i32
    %c0_i32_0 = arith.constant 0 : i32
    %c0_i32_1 = arith.constant 0 : i32
    return %c0_i32, %c0_i32_0 : i32, i32
  }
  func.func @transform_3(%arg0: i32, %arg1: memref<8xi32, #tpu.memory_space<smem>>) -> (i32, i32) {
    %c0_i32 = arith.constant 0 : i32
    %c0_i32_0 = arith.constant 0 : i32
    %c0_i32_1 = arith.constant 0 : i32
    return %c0_i32, %c0_i32_0 : i32, i32
  }
  func.func @transform_4(%arg0: i32, %arg1: memref<8xi32, #tpu.memory_space<smem>>) -> (i32, i32) {
    %c0_i32 = arith.constant 0 : i32
    %c0_i32_0 = arith.constant 0 : i32
    %c0_i32_1 = arith.constant 0 : i32
    return %c0_i32, %c0_i32_0 : i32, i32
  }
  func.func @transform_5(%arg0: i32, %arg1: memref<8xi32, #tpu.memory_space<smem>>) -> (i32, i32) {
    %c0_i32 = arith.constant 0 : i32
    %c0_i32_0 = arith.constant 0 : i32
    %c0_i32_1 = arith.constant 0 : i32
    return %c0_i32, %c0_i32_0 : i32, i32
  }
  func.func @transform_6(%arg0: i32, %arg1: memref<8xi32, #tpu.memory_space<smem>>) -> (i32, i32) {
    %c0_i32 = arith.constant 0 : i32
    %c0_i32_0 = arith.constant 0 : i32
    %c0_i32_1 = arith.constant 0 : i32
    return %c0_i32, %c0_i32_0 : i32, i32
  }
  func.func @transform_7(%arg0: i32, %arg1: memref<8xi32, #tpu.memory_space<smem>>) -> (i32, i32) {
    %c0_i32 = arith.constant 0 : i32
    %c0_i32_0 = arith.constant 0 : i32
    %c0_i32_1 = arith.constant 0 : i32
    return %c0_i32, %c0_i32_0 : i32, i32
  }
}

</mosaic_0001>

<llo_original>
// kernel: tpu_custom_call.1
$region0: #{tpu_custom_call.1}
  #allocation0 [shape = 'u32[]', space=smem, size = 0x4, offset = 0x4, fixed_abs, tag = 'smem constant byte address 0x4 - core index']
  #allocation1 [shape = 'u32[72,128]{1,0:T(1,128)}', space=vmem, size = 0x9000, scoped, tag = 'internal scratch']
  #allocation2 [shape = 'f32[8,128]{1,0:T(8,128)}', space=vmem, size = 0x1000, scoped, tag = 'scratch operand']
  #allocation3 [shape = 's32[1]{0}', space=sflag, size = 0x4, scoped, tag = 'scoped memory for tpu_custom_call.1']
  #allocation4 [shape = 'u8[512]{0}', space=smem, size = 0x200, scoped, tag = 'prefetched SMEM operand 0']
  %s0 = inlined_call_operand.hbm [shape: s32[8], index: 0, kind: input, shape index: {}]
  %s1 = inlined_call_operand.hbm [shape: f32[256,128], index: 1, kind: input, shape index: {}]
  %s2 = inlined_call_operand.vmem [shape: f32[1,128], index: 2, kind: input, shape index: {}]
  %s3 = inlined_call_operand.hbm [shape: bf16[256,512], index: 3, kind: input, shape index: {}]
  %s4 = inlined_call_operand.hbm [shape: f32[1,512], index: 4, kind: input, shape index: {}]
  %s5 = inlined_call_operand.hbm [shape: bf16[128,256], index: 5, kind: input, shape index: {}]
  %s6 = inlined_call_operand.vmem [shape: f32[1,256], index: 6, kind: input, shape index: {}]
  %s7 = inlined_call_operand.hbm [shape: f32[8,256], index: 7, kind: output, shape index: {0}]
  %s8 = inlined_call_operand.hbm [shape: f32[1,128], index: 8, kind: output, shape index: {1}]
  %9 = xla_tuple %s7, %s8
  %s10 = sld [smem:[#allocation0]]
  $region58: #{tpu_custom_call.1} parent=0
    _
  %s12 = ssub.s32 1, %s10
  %s13 = scalar_select 0, %s12, %s10
  %s15 = sshll.u32 %s0, 4
  %s16 = int_to_ptr.hbm [resolvable:$true] %s15
  %18 = dma.hbm_to_smem %s16, 16, [#allocation4], [#allocation3]
  %20 = dma.done [#allocation3], 16
  %21 = sfence
  $region1: #{tpu_custom_call.1} parent=0
    #allocation5 [shape = 'u8[131072]{0}', space=vmem, size = 0x20000, scoped, tag = 'input window, operand 1, single buffered']
    #allocation6 [shape = 's32[1]{0}', space=sflag, size = 0x4, scoped, tag = 'scoped memory for tpu_custom_call.1']
    #allocation7 [shape = 's32[1]{0}', space=sflag, size = 0x4, scoped, tag = 'scoped memory for tpu_custom_call.1']
    #allocation8 [shape = 'u8[262144]{0}', space=vmem, size = 0x40000, scoped, tag = 'input window, operand 3, single buffered']
    #allocation9 [shape = 's32[1]{0}', space=sflag, size = 0x4, scoped, tag = 'scoped memory for tpu_custom_call.1']
    #allocation10 [shape = 'u8[2048]{0}', space=vmem, size = 0x800, scoped, tag = 'input window, operand 4, single buffered']
    #allocation11 [shape = 'u8[65536]{0}', space=vmem, size = 0x10000, scoped, tag = 'input window, operand 5, single buffered']
    #allocation12 [shape = 's32[1]{0}', space=sflag, size = 0x4, scoped, tag = 'scoped memory for tpu_custom_call.1']
    #allocation13 [shape = 'u8[8192]{0}', space=vmem, size = 0x2000, scoped, tag = 'output window, operand 0, single buffered']
    #allocation14 [shape = 'u8[512]{0}', space=vmem, size = 0x400, scoped, tag = 'output window, operand 1, single buffered']
    #allocation15 [shape = 's32[1]{0}', space=sflag, size = 0x4, scoped, tag = 'scoped memory for tpu_custom_call.1']
    %22 = vsyncpa [#allocation6], 0
    %23 = vsyncpa [#allocation9], 0
    %24 = vsyncpa [#allocation12], 0
    %25 = vsyncpa [#allocation7], 0
    %26 = vsyncpa [#allocation15], 0
    // Predicated region
    $region2: #{tpu_custom_call.1} parent=1 // pred_check
      _
    $region3: #{tpu_custom_call.1} parent=1 // pred_check_branch
      %28 = sbr.rel (0) target = $region5
    $region4: #{tpu_custom_call.1} parent=1 // pred_region
      %30 = vsyncadd [#allocation6], 0
      %s31 = sshll.u32 %s1, 4
      %s32 = int_to_ptr.hbm [resolvable:$true] %s31
      %s33 = sshll.u32 [#allocation5], 4
      %s34 = int_to_ptr.vmem [resolvable:$true] %s33
      %39 = dma.hbm_to_vmem [thread:$0]  %s32, 4096, %s34, [#allocation6], 128, 128, 8
    $region5: #{tpu_custom_call.1} parent=1 // pred_fallthru
      _
    // Predicated region
    $region6: #{tpu_custom_call.1} parent=1 // pred_check
      _
    $region7: #{tpu_custom_call.1} parent=1 // pred_check_branch
      %41 = sbr.rel (0) target = $region9
    $region8: #{tpu_custom_call.1} parent=1 // pred_region
      _
    $region9: #{tpu_custom_call.1} parent=1 // pred_fallthru
      _
    // Predicated region
    $region10: #{tpu_custom_call.1} parent=1 // pred_check
      _
    $region11: #{tpu_custom_call.1} parent=1 // pred_check_branch
      %43 = sbr.rel (0) target = $region13
    $region12: #{tpu_custom_call.1} parent=1 // pred_region
      %45 = vsyncadd [#allocation9], 0
      %s46 = sshll.u32 %s3, 4
      %s47 = int_to_ptr.hbm [resolvable:$true] %s46
      %s48 = sshll.u32 [#allocation8], 4
      %s49 = int_to_ptr.vmem [resolvable:$true] %s48
      %54 = dma.hbm_to_vmem [thread:$0]  %s47, 8192, %s49, [#allocation9], 256, 256, 16
    $region13: #{tpu_custom_call.1} parent=1 // pred_fallthru
      _
    // Predicated region
    $region14: #{tpu_custom_call.1} parent=1 // pred_check
      _
    $region15: #{tpu_custom_call.1} parent=1 // pred_check_branch
      %56 = sbr.rel (0) target = $region17
    $region16: #{tpu_custom_call.1} parent=1 // pred_region
      %58 = vsyncadd [#allocation9], 0
      %s60 = sshll.u32 %s4, 4
      %s61 = int_to_ptr.hbm [resolvable:$true] %s60
      %s62 = sshll.u32 [#allocation10], 4
      %s63 = int_to_ptr.vmem [resolvable:$true] %s62
      %65 = dma.hbm_to_vmem [thread:$0]  %s61, 64, %s63, [#allocation9]
    $region17: #{tpu_custom_call.1} parent=1 // pred_fallthru
      _
    // Predicated region
    $region18: #{tpu_custom_call.1} parent=1 // pred_check
      _
    $region19: #{tpu_custom_call.1} parent=1 // pred_check_branch
      %67 = sbr.rel (0) target = $region21
    $region20: #{tpu_custom_call.1} parent=1 // pred_region
      %69 = vsyncadd [#allocation12], 0
      %s70 = sshll.u32 %s5, 4
      %s71 = int_to_ptr.hbm [resolvable:$true] %s70
      %s72 = sshll.u32 [#allocation11], 4
      %s73 = int_to_ptr.vmem [resolvable:$true] %s72
      %78 = dma.hbm_to_vmem [thread:$0]  %s71, 2048, %s73, [#allocation12], 128, 128, 8
    $region21: #{tpu_custom_call.1} parent=1 // pred_fallthru
      _
    // Predicated region
    $region22: #{tpu_custom_call.1} parent=1 // pred_check
      _
    $region23: #{tpu_custom_call.1} parent=1 // pred_check_branch
      %80 = sbr.rel (0) target = $region25
    $region24: #{tpu_custom_call.1} parent=1 // pred_region
      _
    $region25: #{tpu_custom_call.1} parent=1 // pred_fallthru
      _
    // Predicated region
    $region26: #{tpu_custom_call.1} parent=1 // pred_check
      _
    $region27: #{tpu_custom_call.1} parent=1 // pred_check_branch
      %82 = sbr.rel (0) target = $region29
    $region28: #{tpu_custom_call.1} parent=1 // pred_region
      %84 = dma.done [#allocation6], 4096
    $region29: #{tpu_custom_call.1} parent=1 // pred_fallthru
      _
    // Predicated region
    $region30: #{tpu_custom_call.1} parent=1 // pred_check
      _
    $region31: #{tpu_custom_call.1} parent=1 // pred_check_branch
      %86 = sbr.rel (0) target = $region33
    $region32: #{tpu_custom_call.1} parent=1 // pred_region
      %88 = dma.done [#allocation9], 8192
    $region33: #{tpu_custom_call.1} parent=1 // pred_fallthru
      _
    // Predicated region
    $region34: #{tpu_custom_call.1} parent=1 // pred_check
      _
    $region35: #{tpu_custom_call.1} parent=1 // pred_check_branch
      %90 = sbr.rel (0) target = $region37
    $region36: #{tpu_custom_call.1} parent=1 // pred_region
      %92 = dma.done [#allocation9], 64
    $region37: #{tpu_custom_call.1} parent=1 // pred_fallthru
      _
    // Predicated region
    $region38: #{tpu_custom_call.1} parent=1 // pred_check
      _
    $region39: #{tpu_custom_call.1} parent=1 // pred_check_branch
      %94 = sbr.rel (0) target = $region41
    $region40: #{tpu_custom_call.1} parent=1 // pred_region
      %96 = dma.done [#allocation12], 2048
    $region41: #{tpu_custom_call.1} parent=1 // pred_fallthru
      _
    %v97 = vld [vmem:[%s2] sm:$0x1]
    %s98 = sld [smem:[#allocation4]]
    %s99 = scalar_lea.vmem [#allocation5], %s98
    %v100 = vld [vmem:[%s99] sm:$0x1]
    %v101 = vmax.f32 %v100, 0.0
    %v102 = vpack.c.bf16 %v101, %v101
    %v103 = vpack.c.bf16 %v97, %v97
    %v104 = vld [vmem:[#allocation8] sm:$0xff]
    %v105 = vld [vmem:[#allocation8 + $0x8] sm:$0xff]
    %v106 = vld [vmem:[#allocation8 + $0x10] sm:$0xff]
    %v107 = vld [vmem:[#allocation8 + $0x18] sm:$0xff]
    %v108 = vld [vmem:[#allocation8 + $0x20] sm:$0xff]
    %v109 = vld [vmem:[#allocation8 + $0x28] sm:$0xff]
    %v110 = vld [vmem:[#allocation8 + $0x30] sm:$0xff]
    %v111 = vld [vmem:[#allocation8 + $0x38] sm:$0xff]
    %v112 = vld [vmem:[#allocation8 + $0x40] sm:$0xff]
    %v113 = vld [vmem:[#allocation8 + $0x48] sm:$0xff]
    %v114 = vld [vmem:[#allocation8 + $0x50] sm:$0xff]
    %v115 = vld [vmem:[#allocation8 + $0x58] sm:$0xff]
    %v116 = vld [vmem:[#allocation8 + $0x60] sm:$0xff]
    %v117 = vld [vmem:[#allocation8 + $0x68] sm:$0xff]
    %v118 = vld [vmem:[#allocation8 + $0x70] sm:$0xff]
    %v119 = vld [vmem:[#allocation8 + $0x78] sm:$0xff]
    %v120 = vld [vmem:[#allocation8 + $0x80] sm:$0xff]
    %v121 = vld [vmem:[#allocation8 + $0x88] sm:$0xff]
    %v122 = vld [vmem:[#allocation8 + $0x90] sm:$0xff]
    %v123 = vld [vmem:[#allocation8 + $0x98] sm:$0xff]
    %v124 = vld [vmem:[#allocation8 + $0xa0] sm:$0xff]
    %v125 = vld [vmem:[#allocation8 + $0xa8] sm:$0xff]
    %v126 = vld [vmem:[#allocation8 + $0xb0] sm:$0xff]
    %v127 = vld [vmem:[#allocation8 + $0xb8] sm:$0xff]
    %v128 = vld [vmem:[#allocation8 + $0xc0] sm:$0xff]
    %v129 = vld [vmem:[#allocation8 + $0xc8] sm:$0xff]
    %v130 = vld [vmem:[#allocation8 + $0xd0] sm:$0xff]
    %v131 = vld [vmem:[#allocation8 + $0xd8] sm:$0xff]
    %v132 = vld [vmem:[#allocation8 + $0xe0] sm:$0xff]
    %v133 = vld [vmem:[#allocation8 + $0xe8] sm:$0xff]
    %v134 = vld [vmem:[#allocation8 + $0xf0] sm:$0xff]
    %v135 = vld [vmem:[#allocation8 + $0xf8] sm:$0xff]
    %v136 = vld [vmem:[#allocation8 + $0x100] sm:$0xff]
    %v137 = vld [vmem:[#allocation8 + $0x108] sm:$0xff]
    %v138 = vld [vmem:[#allocation8 + $0x110] sm:$0xff]
    %v139 = vld [vmem:[#allocation8 + $0x118] sm:$0xff]
    %v140 = vld [vmem:[#allocation8 + $0x120] sm:$0xff]
    %v141 = vld [vmem:[#allocation8 + $0x128] sm:$0xff]
    %v142 = vld [vmem:[#allocation8 + $0x130] sm:$0xff]
    %v143 = vld [vmem:[#allocation8 + $0x138] sm:$0xff]
    %v144 = vld [vmem:[#allocation8 + $0x140] sm:$0xff]
    %v145 = vld [vmem:[#allocation8 + $0x148] sm:$0xff]
    %v146 = vld [vmem:[#allocation8 + $0x150] sm:$0xff]
    %v147 = vld [vmem:[#allocation8 + $0x158] sm:$0xff]
    %v148 = vld [vmem:[#allocation8 + $0x160] sm:$0xff]
    %v149 = vld [vmem:[#allocation8 + $0x168] sm:$0xff]
    %v150 = vld [vmem:[#allocation8 + $0x170] sm:$0xff]
    %v151 = vld [vmem:[#allocation8 + $0x178] sm:$0xff]
    %v152 = vld [vmem:[#allocation8 + $0x180] sm:$0xff]
    %v153 = vld [vmem:[#allocation8 + $0x188] sm:$0xff]
    %v154 = vld [vmem:[#allocation8 + $0x190] sm:$0xff]
    %v155 = vld [vmem:[#allocation8 + $0x198] sm:$0xff]
    %v156 = vld [vmem:[#allocation8 + $0x1a0] sm:$0xff]
    %v157 = vld [vmem:[#allocation8 + $0x1a8] sm:$0xff]
    %v158 = vld [vmem:[#allocation8 + $0x1b0] sm:$0xff]
    %v159 = vld [vmem:[#allocation8 + $0x1b8] sm:$0xff]
    %v160 = vld [vmem:[#allocation8 + $0x1c0] sm:$0xff]
    %v161 = vld [vmem:[#allocation8 + $0x1c8] sm:$0xff]
    %v162 = vld [vmem:[#allocation8 + $0x1d0] sm:$0xff]
    %v163 = vld [vmem:[#allocation8 + $0x1d8] sm:$0xff]
    %v164 = vld [vmem:[#allocation8 + $0x1e0] sm:$0xff]
    %v165 = vld [vmem:[#allocation8 + $0x1e8] sm:$0xff]
    %v166 = vld [vmem:[#allocation8 + $0x1f0] sm:$0xff]
    %v167 = vld [vmem:[#allocation8 + $0x1f8] sm:$0xff]
    %v168 = vld [vmem:[#allocation10] sm:$0xf]
    %v233 = vunpack.c.l.b16 %v104
    %v234 = vunpack.c.h.b16 %v104
    %v235 = vunpack.c.l.b16 %v105
    %v236 = vunpack.c.h.b16 %v105
    %v237 = vunpack.c.l.b16 %v106
    %v238 = vunpack.c.h.b16 %v106
    %v239 = vunpack.c.l.b16 %v107
    %v240 = vunpack.c.h.b16 %v107
    %v241 = vunpack.c.l.b16 %v108
    %v242 = vunpack.c.h.b16 %v108
    %v243 = vunpack.c.l.b16 %v109
    %v244 = vunpack.c.h.b16 %v109
    %v245 = vunpack.c.l.b16 %v110
    %v246 = vunpack.c.h.b16 %v110
    %v247 = vunpack.c.l.b16 %v111
    %v248 = vunpack.c.h.b16 %v111
    %v249 = vunpack.c.l.b16 %v112
    %v250 = vunpack.c.h.b16 %v112
    %v251 = vunpack.c.l.b16 %v113
    %v252 = vunpack.c.h.b16 %v113
    %v253 = vunpack.c.l.b16 %v114
    %v254 = vunpack.c.h.b16 %v114
    %v255 = vunpack.c.l.b16 %v115
    %v256 = vunpack.c.h.b16 %v115
    %v257 = vunpack.c.l.b16 %v116
    %v258 = vunpack.c.h.b16 %v116
    %v259 = vunpack.c.l.b16 %v117
    %v260 = vunpack.c.h.b16 %v117
    %v261 = vunpack.c.l.b16 %v118
    %v262 = vunpack.c.h.b16 %v118
    %v263 = vunpack.c.l.b16 %v119
    %v264 = vunpack.c.h.b16 %v119
    %v265 = vunpack.c.l.b16 %v120
    %v266 = vunpack.c.h.b16 %v120
    %v267 = vunpack.c.l.b16 %v121
    %v268 = vunpack.c.h.b16 %v121
    %v269 = vunpack.c.l.b16 %v122
    %v270 = vunpack.c.h.b16 %v122
    %v271 = vunpack.c.l.b16 %v123
    %v272 = vunpack.c.h.b16 %v123
    %v273 = vunpack.c.l.b16 %v124
    %v274 = vunpack.c.h.b16 %v124
    %v275 = vunpack.c.l.b16 %v125
    %v276 = vunpack.c.h.b16 %v125
    %v277 = vunpack.c.l.b16 %v126
    %v278 = vunpack.c.h.b16 %v126
    %v279 = vunpack.c.l.b16 %v127
    %v280 = vunpack.c.h.b16 %v127
    %v281 = vunpack.c.l.b16 %v128
    %v282 = vunpack.c.h.b16 %v128
    %v283 = vunpack.c.l.b16 %v129
    %v284 = vunpack.c.h.b16 %v129
    %v285 = vunpack.c.l.b16 %v130
    %v286 = vunpack.c.h.b16 %v130
    %v287 = vunpack.c.l.b16 %v131
    %v288 = vunpack.c.h.b16 %v131
    %v289 = vunpack.c.l.b16 %v132
    %v290 = vunpack.c.h.b16 %v132
    %v291 = vunpack.c.l.b16 %v133
    %v292 = vunpack.c.h.b16 %v133
    %v293 = vunpack.c.l.b16 %v134
    %v294 = vunpack.c.h.b16 %v134
    %v295 = vunpack.c.l.b16 %v135
    %v296 = vunpack.c.h.b16 %v135
    %v297 = vunpack.c.l.b16 %v136
    %v298 = vunpack.c.h.b16 %v136
    %v299 = vunpack.c.l.b16 %v137
    %v300 = vunpack.c.h.b16 %v137
    %v301 = vunpack.c.l.b16 %v138
    %v302 = vunpack.c.h.b16 %v138
    %v303 = vunpack.c.l.b16 %v139
    %v304 = vunpack.c.h.b16 %v139
    %v305 = vunpack.c.l.b16 %v140
    %v306 = vunpack.c.h.b16 %v140
    %v307 = vunpack.c.l.b16 %v141
    %v308 = vunpack.c.h.b16 %v141
    %v309 = vunpack.c.l.b16 %v142
    %v310 = vunpack.c.h.b16 %v142
    %v311 = vunpack.c.l.b16 %v143
    %v312 = vunpack.c.h.b16 %v143
    %v313 = vunpack.c.l.b16 %v144
    %v314 = vunpack.c.h.b16 %v144
    %v315 = vunpack.c.l.b16 %v145
    %v316 = vunpack.c.h.b16 %v145
    %v317 = vunpack.c.l.b16 %v146
    %v318 = vunpack.c.h.b16 %v146
    %v319 = vunpack.c.l.b16 %v147
    %v320 = vunpack.c.h.b16 %v147
    %v321 = vunpack.c.l.b16 %v148
    %v322 = vunpack.c.h.b16 %v148
    %v323 = vunpack.c.l.b16 %v149
    %v324 = vunpack.c.h.b16 %v149
    %v325 = vunpack.c.l.b16 %v150
    %v326 = vunpack.c.h.b16 %v150
    %v327 = vunpack.c.l.b16 %v151
    %v328 = vunpack.c.h.b16 %v151
    %v329 = vunpack.c.l.b16 %v152
    %v330 = vunpack.c.h.b16 %v152
    %v331 = vunpack.c.l.b16 %v153
    %v332 = vunpack.c.h.b16 %v153
    %v333 = vunpack.c.l.b16 %v154
    %v334 = vunpack.c.h.b16 %v154
    %v335 = vunpack.c.l.b16 %v155
    %v336 = vunpack.c.h.b16 %v155
    %v337 = vunpack.c.l.b16 %v156
    %v338 = vunpack.c.h.b16 %v156
    %v339 = vunpack.c.l.b16 %v157
    %v340 = vunpack.c.h.b16 %v157
    %v341 = vunpack.c.l.b16 %v158
    %v342 = vunpack.c.h.b16 %v158
    %v343 = vunpack.c.l.b16 %v159
    %v344 = vunpack.c.h.b16 %v159
    %v345 = vunpack.c.l.b16 %v160
    %v346 = vunpack.c.h.b16 %v160
    %v347 = vunpack.c.l.b16 %v161
    %v348 = vunpack.c.h.b16 %v161
    %v349 = vunpack.c.l.b16 %v162
    %v350 = vunpack.c.h.b16 %v162
    %v351 = vunpack.c.l.b16 %v163
    %v352 = vunpack.c.h.b16 %v163
    %v353 = vunpack.c.l.b16 %v164
    %v354 = vunpack.c.h.b16 %v164
    %v355 = vunpack.c.l.b16 %v165
    %v356 = vunpack.c.h.b16 %v165
    %v357 = vunpack.c.l.b16 %v166
    %v358 = vunpack.c.h.b16 %v166
    %v359 = vunpack.c.l.b16 %v167
    %v360 = vunpack.c.h.b16 %v167
    %v361 = vpack.c.b16 %v237, %v233
    %v362 = vpack.c.b16 %v238, %v234
    %v363 = vpack.c.b16 %v239, %v235
    %v364 = vpack.c.b16 %v240, %v236
    %v365 = vpack.c.b16 %v245, %v241
    %v366 = vpack.c.b16 %v246, %v242
    %v367 = vpack.c.b16 %v247, %v243
    %v368 = vpack.c.b16 %v248, %v244
    %v369 = vpack.c.b16 %v253, %v249
    %v370 = vpack.c.b16 %v254, %v250
    %v371 = vpack.c.b16 %v255, %v251
    %v372 = vpack.c.b16 %v256, %v252
    %v373 = vpack.c.b16 %v261, %v257
    %v374 = vpack.c.b16 %v262, %v258
    %v375 = vpack.c.b16 %v263, %v259
    %v376 = vpack.c.b16 %v264, %v260
    %v377 = vpack.c.b16 %v269, %v265
    %v378 = vpack.c.b16 %v270, %v266
    %v379 = vpack.c.b16 %v271, %v267
    %v380 = vpack.c.b16 %v272, %v268
    %v381 = vpack.c.b16 %v277, %v273
    %v382 = vpack.c.b16 %v278, %v274
    %v383 = vpack.c.b16 %v279, %v275
    %v384 = vpack.c.b16 %v280, %v276
    %v385 = vpack.c.b16 %v285, %v281
    %v386 = vpack.c.b16 %v286, %v282
    %v387 = vpack.c.b16 %v287, %v283
    %v388 = vpack.c.b16 %v288, %v284
    %v389 = vpack.c.b16 %v293, %v289
    %v390 = vpack.c.b16 %v294, %v290
    %v391 = vpack.c.b16 %v295, %v291
    %v392 = vpack.c.b16 %v296, %v292
    %v393 = vpack.c.b16 %v301, %v297
    %v394 = vpack.c.b16 %v302, %v298
    %v395 = vpack.c.b16 %v303, %v299
    %v396 = vpack.c.b16 %v304, %v300
    %v397 = vpack.c.b16 %v309, %v305
    %v398 = vpack.c.b16 %v310, %v306
    %v399 = vpack.c.b16 %v311, %v307
    %v400 = vpack.c.b16 %v312, %v308
    %v401 = vpack.c.b16 %v317, %v313
    %v402 = vpack.c.b16 %v318, %v314
    %v403 = vpack.c.b16 %v319, %v315
    %v404 = vpack.c.b16 %v320, %v316
    %v405 = vpack.c.b16 %v325, %v321
    %v406 = vpack.c.b16 %v326, %v322
    %v407 = vpack.c.b16 %v327, %v323
    %v408 = vpack.c.b16 %v328, %v324
    %v409 = vpack.c.b16 %v333, %v329
    %v410 = vpack.c.b16 %v334, %v330
    %v411 = vpack.c.b16 %v335, %v331
    %v412 = vpack.c.b16 %v336, %v332
    %v413 = vpack.c.b16 %v341, %v337
    %v414 = vpack.c.b16 %v342, %v338
    %v415 = vpack.c.b16 %v343, %v339
    %v416 = vpack.c.b16 %v344, %v340
    %v417 = vpack.c.b16 %v349, %v345
    %v418 = vpack.c.b16 %v350, %v346
    %v419 = vpack.c.b16 %v351, %v347
    %v420 = vpack.c.b16 %v352, %v348
    %v421 = vpack.c.b16 %v357, %v353
    %v422 = vpack.c.b16 %v358, %v354
    %v423 = vpack.c.b16 %v359, %v355
    %v424 = vpack.c.b16 %v360, %v356
    %v490 = vperm.slane %v168, 0
    %v491 = vperm.slane %v168, 1
    %v492 = vperm.slane %v168, 2
    %v493 = vperm.slane %v168, 3
    %498 = vmatpush.bf16.msra.mxu0 %v389
    %499 = vmatpush.bf16.msra.mxu0 %v385
    %500 = vmatpush.bf16.msra.mxu0 %v381
    %501 = vmatpush.bf16.msra.mxu0 %v377
    %502 = vmatpush.bf16.msra.mxu0 %v373
    %503 = vmatpush.bf16.msra.mxu0 %v369
    %504 = vmatpush.bf16.msra.mxu0 %v365
    %505 = vmatpush.bf16.msra.mxu0 %v361
    %506 = vmatmul.bf16.gmra.mxu0 %v102
    %v507 = vpop.f32.mrf.mxu0
    %v508 = vadd.f32 %v490, %v507
    %v509 = vpop.f32.mrf.mxu0
    %510 = vdwg.mxu0
    %511 = vmatpush.bf16.msra.mxu0 %v421
    %512 = vmatpush.bf16.msra.mxu0 %v417
    %513 = vmatpush.bf16.msra.mxu0 %v413
    %514 = vmatpush.bf16.msra.mxu0 %v409
    %515 = vmatpush.bf16.msra.mxu0 %v405
    %516 = vmatpush.bf16.msra.mxu0 %v401
    %517 = vmatpush.bf16.msra.mxu0 %v397
    %518 = vmatpush.bf16.msra.mxu0 %v393
    %519 = vmatmul.bf16.gmra.mxu0 %v103
    %v520 = vpop.f32.mrf.mxu0
    %v521 = vadd.f32 %v508, %v520
    %v522 = vpop.f32.mrf.mxu0
    %523 = vdwg.mxu0
    %524 = vmatpush.bf16.msra.mxu0 %v390
    %525 = vmatpush.bf16.msra.mxu0 %v386
    %526 = vmatpush.bf16.msra.mxu0 %v382
    %527 = vmatpush.bf16.msra.mxu0 %v378
    %528 = vmatpush.bf16.msra.mxu0 %v374
    %529 = vmatpush.bf16.msra.mxu0 %v370
    %530 = vmatpush.bf16.msra.mxu0 %v366
    %531 = vmatpush.bf16.msra.mxu0 %v362
    %532 = vmatmul.bf16.gmra.mxu0 %v102
    %v533 = vpop.f32.mrf.mxu0
    %v534 = vadd.f32 %v491, %v533
    %v535 = vpop.f32.mrf.mxu0
    %536 = vdwg.mxu0
    %537 = vmatpush.bf16.msra.mxu0 %v422
    %538 = vmatpush.bf16.msra.mxu0 %v418
    %539 = vmatpush.bf16.msra.mxu0 %v414
    %540 = vmatpush.bf16.msra.mxu0 %v410
    %541 = vmatpush.bf16.msra.mxu0 %v406
    %542 = vmatpush.bf16.msra.mxu0 %v402
    %543 = vmatpush.bf16.msra.mxu0 %v398
    %544 = vmatpush.bf16.msra.mxu0 %v394
    %545 = vmatmul.bf16.gmra.mxu0 %v103
    %v546 = vpop.f32.mrf.mxu0
    %v547 = vadd.f32 %v534, %v546
    %v548 = vpop.f32.mrf.mxu0
    %549 = vdwg.mxu0
    %550 = vmatpush.bf16.msra.mxu0 %v391
    %551 = vmatpush.bf16.msra.mxu0 %v387
    %552 = vmatpush.bf16.msra.mxu0 %v383
    %553 = vmatpush.bf16.msra.mxu0 %v379
    %554 = vmatpush.bf16.msra.mxu0 %v375
    %555 = vmatpush.bf16.msra.mxu0 %v371
    %556 = vmatpush.bf16.msra.mxu0 %v367
    %557 = vmatpush.bf16.msra.mxu0 %v363
    %558 = vmatmul.bf16.gmra.mxu0 %v102
    %v559 = vpop.f32.mrf.mxu0
    %v560 = vadd.f32 %v492, %v559
    %v561 = vpop.f32.mrf.mxu0
    %562 = vdwg.mxu0
    %563 = vmatpush.bf16.msra.mxu0 %v423
    %564 = vmatpush.bf16.msra.mxu0 %v419
    %565 = vmatpush.bf16.msra.mxu0 %v415
    %566 = vmatpush.bf16.msra.mxu0 %v411
    %567 = vmatpush.bf16.msra.mxu0 %v407
    %568 = vmatpush.bf16.msra.mxu0 %v403
    %569 = vmatpush.bf16.msra.mxu0 %v399
    %570 = vmatpush.bf16.msra.mxu0 %v395
    %571 = vmatmul.bf16.gmra.mxu0 %v103
    %v572 = vpop.f32.mrf.mxu0
    %v573 = vadd.f32 %v560, %v572
    %v574 = vpop.f32.mrf.mxu0
    %575 = vdwg.mxu0
    %576 = vmatpush.bf16.msra.mxu0 %v392
    %577 = vmatpush.bf16.msra.mxu0 %v388
    %578 = vmatpush.bf16.msra.mxu0 %v384
    %579 = vmatpush.bf16.msra.mxu0 %v380
    %580 = vmatpush.bf16.msra.mxu0 %v376
    %581 = vmatpush.bf16.msra.mxu0 %v372
    %582 = vmatpush.bf16.msra.mxu0 %v368
    %583 = vmatpush.bf16.msra.mxu0 %v364
    %584 = vmatmul.bf16.gmra.mxu0 %v102
    %v585 = vpop.f32.mrf.mxu0
    %v586 = vadd.f32 %v493, %v585
    %v587 = vpop.f32.mrf.mxu0
    %588 = vdwg.mxu0
    %589 = vmatpush.bf16.msra.mxu0 %v424
    %590 = vmatpush.bf16.msra.mxu0 %v420
    %591 = vmatpush.bf16.msra.mxu0 %v416
    %592 = vmatpush.bf16.msra.mxu0 %v412
    %593 = vmatpush.bf16.msra.mxu0 %v408
    %594 = vmatpush.bf16.msra.mxu0 %v404
    %595 = vmatpush.bf16.msra.mxu0 %v400
    %596 = vmatpush.bf16.msra.mxu0 %v396
    %597 = vmatmul.bf16.gmra.mxu0 %v103
    %v598 = vpop.f32.mrf.mxu0
    %v599 = vadd.f32 %v586, %v598
    %v600 = vpop.f32.mrf.mxu0
    %601 = vdwg.mxu0
    %v602 = vxor.u32 %v521, 2147483648
    %v603 = vxor.u32 %v547, 2147483648
    %v604 = vmul.f32 %v602, 1.442695
    %v605 = vpow.pop %v604
    %v606 = vmul.f32 %v603, 1.442695
    %v607 = vpow.pop %v606
    %v608 = vadd.f32 %v605, 1.0
    %v609 = vadd.f32 %v607, 1.0
    %v610 = vrcp.pop %v608
    %v611 = vmul.f32 %v608, %v610
    %v612 = vsub.f32 1.0, %v611
    %v613 = vmul.f32 %v610, %v612
    %v614 = vadd.f32 %v610, %v613
    %vm615 = vweird.f32 %v608
    %vm616 = vweird.f32 %v610
    %vm617 = vmor %vm615, %vm616
    %v618 = vsel %vm617, %v610, %v614
    %v619 = vand.u32 2147483647, %v608
    %vm620 = vcmp.eq.f32.partialorder %v619, 8.507059e+37
    %v621 = vand.u32 %v608, 2147483648
    %v622 = vor.u32 1.1754944e-38, %v621
    %v623 = vsel %vm620, %v622, %v618
    %v624 = vmul.f32 1.0, %v623
    %v625 = vrcp.pop %v609
    %v626 = vmul.f32 %v609, %v625
    %v627 = vsub.f32 1.0, %v626
    %v628 = vmul.f32 %v625, %v627
    %v629 = vadd.f32 %v625, %v628
    %vm630 = vweird.f32 %v609
    %vm631 = vweird.f32 %v625
    %vm632 = vmor %vm630, %vm631
    %v633 = vsel %vm632, %v625, %v629
    %v634 = vand.u32 2147483647, %v609
    %vm635 = vcmp.eq.f32.partialorder %v634, 8.507059e+37
    %v636 = vand.u32 %v609, 2147483648
    %v637 = vor.u32 1.1754944e-38, %v636
    %v638 = vsel %vm635, %v637, %v633
    %v639 = vmul.f32 1.0, %v638
    %v640 = vmul.f32 %v624, %v599
    %v641 = vadd.f32 %v573, %v640
    %v642 = vtanh.pop %v641
    %v643 = vsub.f32 1.0, %v639
    %v644 = vmul.f32 %v643, %v642
    %v645 = vmul.f32 %v639, %v97
    %v646 = vadd.f32 %v644, %v645
    %647 = vst [vmem:[#allocation2] sm:$0x1] %v646
    %s648 = sld [smem:[#allocation4 + $0x1]]
    %s649 = scalar_lea.vmem [#allocation5], %s648
    %v650 = vld [vmem:[%s649] sm:$0x1]
    %v651 = vmax.f32 %v650, 0.0
    %v652 = vpack.c.bf16 %v651, %v651
    %v653 = vpack.c.bf16 %v646, %v646
    %v654 = vld [vmem:[#allocation8] sm:$0xff]
    %v655 = vld [vmem:[#allocation8 + $0x8] sm:$0xff]
    %v656 = vld [vmem:[#allocation8 + $0x10] sm:$0xff]
    %v657 = vld [vmem:[#allocation8 + $0x18] sm:$0xff]
    %v658 = vld [vmem:[#allocation8 + $0x20] sm:$0xff]
    %v659 = vld [vmem:[#allocation8 + $0x28] sm:$0xff]
    %v660 = vld [vmem:[#allocation8 + $0x30] sm:$0xff]
    %v661 = vld [vmem:[#allocation8 + $0x38] sm:$0xff]
    %v662 = vld [vmem:[#allocation8 + $0x40] sm:$0xff]
    %v663 = vld [vmem:[#allocation8 + $0x48] sm:$0xff]
    %v664 = vld [vmem:[#allocation8 + $0x50] sm:$0xff]
    %v665 = vld [vmem:[#allocation8 + $0x58] sm:$0xff]
    %v666 = vld [vmem:[#allocation8 + $0x60] sm:$0xff]
    %v667 = vld [vmem:[#allocation8 + $0x68] sm:$0xff]
    %v668 = vld [vmem:[#allocation8 + $0x70] sm:$0xff]
    %v669 = vld [vmem:[#allocation8 + $0x78] sm:$0xff]
    %v670 = vld [vmem:[#allocation8 + $0x80] sm:$0xff]
    %v671 = vld [vmem:[#allocation8 + $0x88] sm:$0xff]
    %v672 = vld [vmem:[#allocation8 + $0x90] sm:$0xff]
    %v673 = vld [vmem:[#allocation8 + $0x98] sm:$0xff]
    %v674 = vld [vmem:[#allocation8 + $0xa0] sm:$0xff]
    %v675 = vld [vmem:[#allocation8 + $0xa8] sm:$0xff]
    %v676 = vld [vmem:[#allocation8 + $0xb0] sm:$0xff]
    %v677 = vld [vmem:[#allocation8 + $0xb8] sm:$0xff]
    %v678 = vld [vmem:[#allocation8 + $0xc0] sm:$0xff]
    %v679 = vld [vmem:[#allocation8 + $0xc8] sm:$0xff]
    %v680 = vld [vmem:[#allocation8 + $0xd0] sm:$0xff]
    %v681 = vld [vmem:[#allocation8 + $0xd8] sm:$0xff]
    %v682 = vld [vmem:[#allocation8 + $0xe0] sm:$0xff]
    %v683 = vld [vmem:[#allocation8 + $0xe8] sm:$0xff]
    %v684 = vld [vmem:[#allocation8 + $0xf0] sm:$0xff]
    %v685 = vld [vmem:[#allocation8 + $0xf8] sm:$0xff]
    %v686 = vld [vmem:[#allocation8 + $0x100] sm:$0xff]
    %v687 = vld [vmem:[#allocation8 + $0x108] sm:$0xff]
    %v688 = vld [vmem:[#allocation8 + $0x110] sm:$0xff]
    %v689 = vld [vmem:[#allocation8 + $0x118] sm:$0xff]
    %v690 = vld [vmem:[#allocation8 + $0x120] sm:$0xff]
    %v691 = vld [vmem:[#allocation8 + $0x128] sm:$0xff]
    %v692 = vld [vmem:[#allocation8 + $0x130] sm:$0xff]
    %v693 = vld [vmem:[#allocation8 + $0x138] sm:$0xff]
    %v694 = vld [vmem:[#allocation8 + $0x140] sm:$0xff]
    %v695 = vld [vmem:[#allocation8 + $0x148] sm:$0xff]
    %v696 = vld [vmem:[#allocation8 + $0x150] sm:$0xff]
    %v697 = vld [vmem:[#allocation8 + $0x158] sm:$0xff]
    %v698 = vld [vmem:[#allocation8 + $0x160] sm:$0xff]
    %v699 = vld [vmem:[#allocation8 + $0x168] sm:$0xff]
    %v700 = vld [vmem:[#allocation8 + $0x170] sm:$0xff]
    %v701 = vld [vmem:[#allocation8 + $0x178] sm:$0xff]
    %v702 = vld [vmem:[#allocation8 + $0x180] sm:$0xff]
    %v703 = vld [vmem:[#allocation8 + $0x188] sm:$0xff]
    %v704 = vld [vmem:[#allocation8 + $0x190] sm:$0xff]
    %v705 = vld [vmem:[#allocation8 + $0x198] sm:$0xff]
    %v706 = vld [vmem:[#allocation8 + $0x1a0] sm:$0xff]
    %v707 = vld [vmem:[#allocation8 + $0x1a8] sm:$0xff]
    %v708 = vld [vmem:[#allocation8 + $0x1b0] sm:$0xff]
    %v709 = vld [vmem:[#allocation8 + $0x1b8] sm:$0xff]
    %v710 = vld [vmem:[#allocation8 + $0x1c0] sm:$0xff]
    %v711 = vld [vmem:[#allocation8 + $0x1c8] sm:$0xff]
    %v712 = vld [vmem:[#allocation8 + $0x1d0] sm:$0xff]
    %v713 = vld [vmem:[#allocation8 + $0x1d8] sm:$0xff]
    %v714 = vld [vmem:[#allocation8 + $0x1e0] sm:$0xff]
    %v715 = vld [vmem:[#allocation8 + $0x1e8] sm:$0xff]
    %v716 = vld [vmem:[#allocation8 + $0x1f0] sm:$0xff]
    %v717 = vld [vmem:[#allocation8 + $0x1f8] sm:$0xff]
    %v718 = vld [vmem:[#allocation10] sm:$0xf]
    %v783 = vunpack.c.l.b16 %v654
    %v784 = vunpack.c.h.b16 %v654
    %v785 = vunpack.c.l.b16 %v655
    %v786 = vunpack.c.h.b16 %v655
    %v787 = vunpack.c.l.b16 %v656
    %v788 = vunpack.c.h.b16 %v656
    %v789 = vunpack.c.l.b16 %v657
    %v790 = vunpack.c.h.b16 %v657
    %v791 = vunpack.c.l.b16 %v658
    %v792 = vunpack.c.h.b16 %v658
    %v793 = vunpack.c.l.b16 %v659
    %v794 = vunpack.c.h.b16 %v659
    %v795 = vunpack.c.l.b16 %v660
    %v796 = vunpack.c.h.b16 %v660
    %v797 = vunpack.c.l.b16 %v661
    %v798 = vunpack.c.h.b16 %v661
    %v799 = vunpack.c.l.b16 %v662
    %v800 = vunpack.c.h.b16 %v662
    %v801 = vunpack.c.l.b16 %v663
    %v802 = vunpack.c.h.b16 %v663
    %v803 = vunpack.c.l.b16 %v664
    %v804 = vunpack.c.h.b16 %v664
    %v805 = vunpack.c.l.b16 %v665
    %v806 = vunpack.c.h.b16 %v665
    %v807 = vunpack.c.l.b16 %v666
    %v808 = vunpack.c.h.b16 %v666
    %v809 = vunpack.c.l.b16 %v667
    %v810 = vunpack.c.h.b16 %v667
    %v811 = vunpack.c.l.b16 %v668
    %v812 = vunpack.c.h.b16 %v668
    %v813 = vunpack.c.l.b16 %v669
    %v814 = vunpack.c.h.b16 %v669
    %v815 = vunpack.c.l.b16 %v670
    %v816 = vunpack.c.h.b16 %v670
    %v817 = vunpack.c.l.b16 %v671
    %v818 = vunpack.c.h.b16 %v671
    %v819 = vunpack.c.l.b16 %v672
    %v820 = vunpack.c.h.b16 %v672
    %v821 = vunpack.c.l.b16 %v673
    %v822 = vunpack.c.h.b16 %v673
    %v823 = vunpack.c.l.b16 %v674
    %v824 = vunpack.c.h.b16 %v674
    %v825 = vunpack.c.l.b16 %v675
    %v826 = vunpack.c.h.b16 %v675
    %v827 = vunpack.c.l.b16 %v676
    %v828 = vunpack.c.h.b16 %v676
    %v829 = vunpack.c.l.b16 %v677
    %v830 = vunpack.c.h.b16 %v677
    %v831 = vunpack.c.l.b16 %v678
    %v832 = vunpack.c.h.b16 %v678
    %v833 = vunpack.c.l.b16 %v679
    %v834 = vunpack.c.h.b16 %v679
    %v835 = vunpack.c.l.b16 %v680
    %v836 = vunpack.c.h.b16 %v680
    %v837 = vunpack.c.l.b16 %v681
    %v838 = vunpack.c.h.b16 %v681
    %v839 = vunpack.c.l.b16 %v682
    %v840 = vunpack.c.h.b16 %v682
    %v841 = vunpack.c.l.b16 %v683
    %v842 = vunpack.c.h.b16 %v683
    %v843 = vunpack.c.l.b16 %v684
    %v844 = vunpack.c.h.b16 %v684
    %v845 = vunpack.c.l.b16 %v685
    %v846 = vunpack.c.h.b16 %v685
    %v847 = vunpack.c.l.b16 %v686
    %v848 = vunpack.c.h.b16 %v686
    %v849 = vunpack.c.l.b16 %v687
    %v850 = vunpack.c.h.b16 %v687
    %v851 = vunpack.c.l.b16 %v688
    %v852 = vunpack.c.h.b16 %v688
    %v853 = vunpack.c.l.b16 %v689
    %v854 = vunpack.c.h.b16 %v689
    %v855 = vunpack.c.l.b16 %v690
    %v856 = vunpack.c.h.b16 %v690
    %v857 = vunpack.c.l.b16 %v691
    %v858 = vunpack.c.h.b16 %v691
    %v859 = vunpack.c.l.b16 %v692
    %v860 = vunpack.c.h.b16 %v692
    %v861 = vunpack.c.l.b16 %v693
    %v862 = vunpack.c.h.b16 %v693
    %v863 = vunpack.c.l.b16 %v694
    %v864 = vunpack.c.h.b16 %v694
    %v865 = vunpack.c.l.b16 %v695
    %v866 = vunpack.c.h.b16 %v695
    %v867 = vunpack.c.l.b16 %v696
    %v868 = vunpack.c.h.b16 %v696
    %v869 = vunpack.c.l.b16 %v697
    %v870 = vunpack.c.h.b16 %v697
    %v871 = vunpack.c.l.b16 %v698
    %v872 = vunpack.c.h.b16 %v698
    %v873 = vunpack.c.l.b16 %v699
    %v874 = vunpack.c.h.b16 %v699
    %v875 = vunpack.c.l.b16 %v700
    %v876 = vunpack.c.h.b16 %v700
    %v877 = vunpack.c.l.b16 %v701
    %v878 = vunpack.c.h.b16 %v701
    %v879 = vunpack.c.l.b16 %v702
    %v880 = vunpack.c.h.b16 %v702
    %v881 = vunpack.c.l.b16 %v703
    %v882 = vunpack.c.h.b16 %v703
    %v883 = vunpack.c.l.b16 %v704
    %v884 = vunpack.c.h.b16 %v704
    %v885 = vunpack.c.l.b16 %v705
    %v886 = vunpack.c.h.b16 %v705
    %v887 = vunpack.c.l.b16 %v706
    %v888 = vunpack.c.h.b16 %v706
    %v889 = vunpack.c.l.b16 %v707
    %v890 = vunpack.c.h.b16 %v707
    %v891 = vunpack.c.l.b16 %v708
    %v892 = vunpack.c.h.b16 %v708
    %v893 = vunpack.c.l.b16 %v709
    %v894 = vunpack.c.h.b16 %v709
    %v895 = vunpack.c.l.b16 %v710
    %v896 = vunpack.c.h.b16 %v710
    %v897 = vunpack.c.l.b16 %v711
    %v898 = vunpack.c.h.b16 %v711
    %v899 = vunpack.c.l.b16 %v712
    %v900 = vunpack.c.h.b16 %v712
    %v901 = vunpack.c.l.b16 %v713
    %v902 = vunpack.c.h.b16 %v713
    %v903 = vunpack.c.l.b16 %v714
    %v904 = vunpack.c.h.b16 %v714
    %v905 = vunpack.c.l.b16 %v715
    %v906 = vunpack.c.h.b16 %v715
    %v907 = vunpack.c.l.b16 %v716
    %v908 = vunpack.c.h.b16 %v716
    %v909 = vunpack.c.l.b16 %v717
    %v910 = vunpack.c.h.b16 %v717
    %v911 = vpack.c.b16 %v787, %v783
    %v912 = vpack.c.b16 %v788, %v784
    %v913 = vpack.c.b16 %v789, %v785
    %v914 = vpack.c.b16 %v790, %v786
    %v915 = vpack.c.b16 %v795, %v791
    %v916 = vpack.c.b16 %v796, %v792
    %v917 = vpack.c.b16 %v797, %v793
    %v918 = vpack.c.b16 %v798, %v794
    %v919 = vpack.c.b16 %v803, %v799
    %v920 = vpack.c.b16 %v804, %v800
    %v921 = vpack.c.b16 %v805, %v801
    %v922 = vpack.c.b16 %v806, %v802
    %v923 = vpack.c.b16 %v811, %v807
    %v924 = vpack.c.b16 %v812, %v808
    %v925 = vpack.c.b16 %v813, %v809
    %v926 = vpack.c.b16 %v814, %v810
    %v927 = vpack.c.b16 %v819, %v815
    %v928 = vpack.c.b16 %v820, %v816
    %v929 = vpack.c.b16 %v821, %v817
    %v930 = vpack.c.b16 %v822, %v818
    %v931 = vpack.c.b16 %v827, %v823
    %v932 = vpack.c.b16 %v828, %v824
    %v933 = vpack.c.b16 %v829, %v825
    %v934 = vpack.c.b16 %v830, %v826
    %v935 = vpack.c.b16 %v835, %v831
    %v936 = vpack.c.b16 %v836, %v832
    %v937 = vpack.c.b16 %v837, %v833
    %v938 = vpack.c.b16 %v838, %v834
    %v939 = vpack.c.b16 %v843, %v839
    %v940 = vpack.c.b16 %v844, %v840
    %v941 = vpack.c.b16 %v845, %v841
    %v942 = vpack.c.b16 %v846, %v842
    %v943 = vpack.c.b16 %v851, %v847
    %v944 = vpack.c.b16 %v852, %v848
    %v945 = vpack.c.b16 %v853, %v849
    %v946 = vpack.c.b16 %v854, %v850
    %v947 = vpack.c.b16 %v859, %v855
    %v948 = vpack.c.b16 %v860, %v856
    %v949 = vpack.c.b16 %v861, %v857
    %v950 = vpack.c.b16 %v862, %v858
    %v951 = vpack.c.b16 %v867, %v863
    %v952 = vpack.c.b16 %v868, %v864
    %v953 = vpack.c.b16 %v869, %v865
    %v954 = vpack.c.b16 %v870, %v866
    %v955 = vpack.c.b16 %v875, %v871
    %v956 = vpack.c.b16 %v876, %v872
    %v957 = vpack.c.b16 %v877, %v873
    %v958 = vpack.c.b16 %v878, %v874
    %v959 = vpack.c.b16 %v883, %v879
    %v960 = vpack.c.b16 %v884, %v880
    %v961 = vpack.c.b16 %v885, %v881
    %v962 = vpack.c.b16 %v886, %v882
    %v963 = vpack.c.b16 %v891, %v887
    %v964 = vpack.c.b16 %v892, %v888
    %v965 = vpack.c.b16 %v893, %v889
    %v966 = vpack.c.b16 %v894, %v890
    %v967 = vpack.c.b16 %v899, %v895
    %v968 = vpack.c.b16 %v900, %v896
    %v969 = vpack.c.b16 %v901, %v897
    %v970 = vpack.c.b16 %v902, %v898
    %v971 = vpack.c.b16 %v907, %v903
    %v972 = vpack.c.b16 %v908, %v904
    %v973 = vpack.c.b16 %v909, %v905
    %v974 = vpack.c.b16 %v910, %v906
    %v1040 = vperm.slane %v718, 0
    %v1041 = vperm.slane %v718, 1
    %v1042 = vperm.slane %v718, 2
    %v1043 = vperm.slane %v718, 3
    %1048 = vmatpush.bf16.msra.mxu0 %v939
    %1049 = vmatpush.bf16.msra.mxu0 %v935
    %1050 = vmatpush.bf16.msra.mxu0 %v931
    %1051 = vmatpush.bf16.msra.mxu0 %v927
    %1052 = vmatpush.bf16.msra.mxu0 %v923
    %1053 = vmatpush.bf16.msra.mxu0 %v919
    %1054 = vmatpush.bf16.msra.mxu0 %v915
    %1055 = vmatpush.bf16.msra.mxu0 %v911
    %1056 = vmatmul.bf16.gmra.mxu0 %v652
    %v1057 = vpop.f32.mrf.mxu0
    %v1058 = vadd.f32 %v1040, %v1057
    %v1059 = vpop.f32.mrf.mxu0
    %1060 = vdwg.mxu0
    %1061 = vmatpush.bf16.msra.mxu0 %v971
    %1062 = vmatpush.bf16.msra.mxu0 %v967
    %1063 = vmatpush.bf16.msra.mxu0 %v963
    %1064 = vmatpush.bf16.msra.mxu0 %v959
    %1065 = vmatpush.bf16.msra.mxu0 %v955
    %1066 = vmatpush.bf16.msra.mxu0 %v951
    %1067 = vmatpush.bf16.msra.mxu0 %v947
    %1068 = vmatpush.bf16.msra.mxu0 %v943
    %1069 = vmatmul.bf16.gmra.mxu0 %v653
    %v1070 = vpop.f32.mrf.mxu0
    %v1071 = vadd.f32 %v1058, %v1070
    %v1072 = vpop.f32.mrf.mxu0
    %1073 = vdwg.mxu0
    %1074 = vmatpush.bf16.msra.mxu0 %v940
    %1075 = vmatpush.bf16.msra.mxu0 %v936
    %1076 = vmatpush.bf16.msra.mxu0 %v932
    %1077 = vmatpush.bf16.msra.mxu0 %v928
    %1078 = vmatpush.bf16.msra.mxu0 %v924
    %1079 = vmatpush.bf16.msra.mxu0 %v920
    %1080 = vmatpush.bf16.msra.mxu0 %v916
    %1081 = vmatpush.bf16.msra.mxu0 %v912
    %1082 = vmatmul.bf16.gmra.mxu0 %v652
    %v1083 = vpop.f32.mrf.mxu0
    %v1084 = vadd.f32 %v1041, %v1083
    %v1085 = vpop.f32.mrf.mxu0
    %1086 = vdwg.mxu0
    %1087 = vmatpush.bf16.msra.mxu0 %v972
    %1088 = vmatpush.bf16.msra.mxu0 %v968
    %1089 = vmatpush.bf16.msra.mxu0 %v964
    %1090 = vmatpush.bf16.msra.mxu0 %v960
    %1091 = vmatpush.bf16.msra.mxu0 %v956
    %1092 = vmatpush.bf16.msra.mxu0 %v952
    %1093 = vmatpush.bf16.msra.mxu0 %v948
    %1094 = vmatpush.bf16.msra.mxu0 %v944
    %1095 = vmatmul.bf16.gmra.mxu0 %v653
    %v1096 = vpop.f32.mrf.mxu0
    %v1097 = vadd.f32 %v1084, %v1096
    %v1098 = vpop.f32.mrf.mxu0
    %1099 = vdwg.mxu0
    %1100 = vmatpush.bf16.msra.mxu0 %v941
    %1101 = vmatpush.bf16.msra.mxu0 %v937
    %1102 = vmatpush.bf16.msra.mxu0 %v933
    %1103 = vmatpush.bf16.msra.mxu0 %v929
    %1104 = vmatpush.bf16.msra.mxu0 %v925
    %1105 = vmatpush.bf16.msra.mxu0 %v921
    %1106 = vmatpush.bf16.msra.mxu0 %v917
    %1107 = vmatpush.bf16.msra.mxu0 %v913
    %1108 = vmatmul.bf16.gmra.mxu0 %v652
    %v1109 = vpop.f32.mrf.mxu0
    %v1110 = vadd.f32 %v1042, %v1109
    %v1111 = vpop.f32.mrf.mxu0
    %1112 = vdwg.mxu0
    %1113 = vmatpush.bf16.msra.mxu0 %v973
    %1114 = vmatpush.bf16.msra.mxu0 %v969
    %1115 = vmatpush.bf16.msra.mxu0 %v965
    %1116 = vmatpush.bf16.msra.mxu0 %v961
    %1117 = vmatpush.bf16.msra.mxu0 %v957
    %1118 = vmatpush.bf16.msra.mxu0 %v953
    %1119 = vmatpush.bf16.msra.mxu0 %v949
    %1120 = vmatpush.bf16.msra.mxu0 %v945
    %1121 = vmatmul.bf16.gmra.mxu0 %v653
    %v1122 = vpop.f32.mrf.mxu0
    %v1123 = vadd.f32 %v1110, %v1122
    %v1124 = vpop.f32.mrf.mxu0
    %1125 = vdwg.mxu0
    %1126 = vmatpush.bf16.msra.mxu0 %v942
    %1127 = vmatpush.bf16.msra.mxu0 %v938
    %1128 = vmatpush.bf16.msra.mxu0 %v934
    %1129 = vmatpush.bf16.msra.mxu0 %v930
    %1130 = vmatpush.bf16.msra.mxu0 %v926
    %1131 = vmatpush.bf16.msra.mxu0 %v922
    %1132 = vmatpush.bf16.msra.mxu0 %v918
    %1133 = vmatpush.bf16.msra.mxu0 %v914
    %1134 = vmatmul.bf16.gmra.mxu0 %v652
    %v1135 = vpop.f32.mrf.mxu0
    %v1136 = vadd.f32 %v1043, %v1135
    %v1137 = vpop.f32.mrf.mxu0
    %1138 = vdwg.mxu0
    %1139 = vmatpush.bf16.msra.mxu0 %v974
    %1140 = vmatpush.bf16.msra.mxu0 %v970
    %1141 = vmatpush.bf16.msra.mxu0 %v966
    %1142 = vmatpush.bf16.msra.mxu0 %v962
    %1143 = vmatpush.bf16.msra.mxu0 %v958
    %1144 = vmatpush.bf16.msra.mxu0 %v954
    %1145 = vmatpush.bf16.msra.mxu0 %v950
    %1146 = vmatpush.bf16.msra.mxu0 %v946
    %1147 = vmatmul.bf16.gmra.mxu0 %v653
    %v1148 = vpop.f32.mrf.mxu0
    %v1149 = vadd.f32 %v1136, %v1148
    %v1150 = vpop.f32.mrf.mxu0
    %1151 = vdwg.mxu0
    %v1152 = vxor.u32 %v1071, 2147483648
    %v1153 = vxor.u32 %v1097, 2147483648
    %v1154 = vmul.f32 %v1152, 1.442695
    %v1155 = vpow.pop %v1154
    %v1156 = vmul.f32 %v1153, 1.442695
    %v1157 = vpow.pop %v1156
    %v1158 = vadd.f32 %v1155, 1.0
    %v1159 = vadd.f32 %v1157, 1.0
    %v1160 = vrcp.pop %v1158
    %v1161 = vmul.f32 %v1158, %v1160
    %v1162 = vsub.f32 1.0, %v1161
    %v1163 = vmul.f32 %v1160, %v1162
    %v1164 = vadd.f32 %v1160, %v1163
    %vm1165 = vweird.f32 %v1158
    %vm1166 = vweird.f32 %v1160
    %vm1167 = vmor %vm1165, %vm1166
    %v1168 = vsel %vm1167, %v1160, %v1164
    %v1169 = vand.u32 2147483647, %v1158
    %vm1170 = vcmp.eq.f32.partialorder %v1169, 8.507059e+37
    %v1171 = vand.u32 %v1158, 2147483648
    %v1172 = vor.u32 1.1754944e-38, %v1171
    %v1173 = vsel %vm1170, %v1172, %v1168
    %v1174 = vmul.f32 1.0, %v1173
    %v1175 = vrcp.pop %v1159
    %v1176 = vmul.f32 %v1159, %v1175
    %v1177 = vsub.f32 1.0, %v1176
    %v1178 = vmul.f32 %v1175, %v1177
    %v1179 = vadd.f32 %v1175, %v1178
    %vm1180 = vweird.f32 %v1159
    %vm1181 = vweird.f32 %v1175
    %vm1182 = vmor %vm1180, %vm1181
    %v1183 = vsel %vm1182, %v1175, %v1179
    %v1184 = vand.u32 2147483647, %v1159
    %vm1185 = vcmp.eq.f32.partialorder %v1184, 8.507059e+37
    %v1186 = vand.u32 %v1159, 2147483648
    %v1187 = vor.u32 1.1754944e-38, %v1186
    %v1188 = vsel %vm1185, %v1187, %v1183
    %v1189 = vmul.f32 1.0, %v1188
    %v1190 = vmul.f32 %v1174, %v1149
    %v1191 = vadd.f32 %v1123, %v1190
    %v1192 = vtanh.pop %v1191
    %v1193 = vsub.f32 1.0, %v1189
    %v1194 = vmul.f32 %v1193, %v1192
    %v1195 = vmul.f32 %v1189, %v646
    %v1196 = vadd.f32 %v1194, %v1195
    %1197 = vst [vmem:[#allocation2 + $0x1] sm:$0x1] %v1196
    %s1198 = sld [smem:[#allocation4 + $0x2]]
    %s1199 = scalar_lea.vmem [#allocation5], %s1198
    %v1200 = vld [vmem:[%s1199] sm:$0x1]
    %v1201 = vmax.f32 %v1200, 0.0
    %v1202 = vpack.c.bf16 %v1201, %v1201
    %v1203 = vpack.c.bf16 %v1196, %v1196
    %v1204 = vld [vmem:[#allocation8] sm:$0xff]
    %v1205 = vld [vmem:[#allocation8 + $0x8] sm:$0xff]
    %v1206 = vld [vmem:[#allocation8 + $0x10] sm:$0xff]
    %v1207 = vld [vmem:[#allocation8 + $0x18] sm:$0xff]
    %v1208 = vld [vmem:[#allocation8 + $0x20] sm:$0xff]
    %v1209 = vld [vmem:[#allocation8 + $0x28] sm:$0xff]
    %v1210 = vld [vmem:[#allocation8 + $0x30] sm:$0xff]
    %v1211 = vld [vmem:[#allocation8 + $0x38] sm:$0xff]
    %v1212 = vld [vmem:[#allocation8 + $0x40] sm:$0xff]
    %v1213 = vld [vmem:[#allocation8 + $0x48] sm:$0xff]
    %v1214 = vld [vmem:[#allocation8 + $0x50] sm:$0xff]
    %v1215 = vld [vmem:[#allocation8 + $0x58] sm:$0xff]
    %v1216 = vld [vmem:[#allocation8 + $0x60] sm:$0xff]
    %v1217 = vld [vmem:[#allocation8 + $0x68] sm:$0xff]
    %v1218 = vld [vmem:[#allocation8 + $0x70] sm:$0xff]
    %v1219 = vld [vmem:[#allocation8 + $0x78] sm:$0xff]
    %v1220 = vld [vmem:[#allocation8 + $0x80] sm:$0xff]
    %v1221 = vld [vmem:[#allocation8 + $0x88] sm:$0xff]
    %v1222 = vld [vmem:[#allocation8 + $0x90] sm:$0xff]
    %v1223 = vld [vmem:[#allocation8 + $0x98] sm:$0xff]
    %v1224 = vld [vmem:[#allocation8 + $0xa0] sm:$0xff]
    %v1225 = vld [vmem:[#allocation8 + $0xa8] sm:$0xff]
    %v1226 = vld [vmem:[#allocation8 + $0xb0] sm:$0xff]
    %v1227 = vld [vmem:[#allocation8 + $0xb8] sm:$0xff]
    %v1228 = vld [vmem:[#allocation8 + $0xc0] sm:$0xff]
    %v1229 = vld [vmem:[#allocation8 + $0xc8] sm:$0xff]
    %v1230 = vld [vmem:[#allocation8 + $0xd0] sm:$0xff]
    %v1231 = vld [vmem:[#allocation8 + $0xd8] sm:$0xff]
    %v1232 = vld [vmem:[#allocation8 + $0xe0] sm:$0xff]
    %v1233 = vld [vmem:[#allocation8 + $0xe8] sm:$0xff]
    %v1234 = vld [vmem:[#allocation8 + $0xf0] sm:$0xff]
    %v1235 = vld [vmem:[#allocation8 + $0xf8] sm:$0xff]
    %v1236 = vld [vmem:[#allocation8 + $0x100] sm:$0xff]
    %v1237 = vld [vmem:[#allocation8 + $0x108] sm:$0xff]
    %v1238 = vld [vmem:[#allocation8 + $0x110] sm:$0xff]
    %v1239 = vld [vmem:[#allocation8 + $0x118] sm:$0xff]
    %v1240 = vld [vmem:[#allocation8 + $0x120] sm:$0xff]
    %v1241 = vld [vmem:[#allocation8 + $0x128] sm:$0xff]
    %v1242 = vld [vmem:[#allocation8 + $0x130] sm:$0xff]
    %v1243 = vld [vmem:[#allocation8 + $0x138] sm:$0xff]
    %v1244 = vld [vmem:[#allocation8 + $0x140] sm:$0xff]
    %v1245 = vld [vmem:[#allocation8 + $0x148] sm:$0xff]
    %v1246 = vld [vmem:[#allocation8 + $0x150] sm:$0xff]
    %v1247 = vld [vmem:[#allocation8 + $0x158] sm:$0xff]
    %v1248 = vld [vmem:[#allocation8 + $0x160] sm:$0xff]
    %v1249 = vld [vmem:[#allocation8 + $0x168] sm:$0xff]
    %v1250 = vld [vmem:[#allocation8 + $0x170] sm:$0xff]
    %v1251 = vld [vmem:[#allocation8 + $0x178] sm:$0xff]
    %v1252 = vld [vmem:[#allocation8 + $0x180] sm:$0xff]
    %v1253 = vld [vmem:[#allocation8 + $0x188] sm:$0xff]
    %v1254 = vld [vmem:[#allocation8 + $0x190] sm:$0xff]
    %v1255 = vld [vmem:[#allocation8 + $0x198] sm:$0xff]
    %v1256 = vld [vmem:[#allocation8 + $0x1a0] sm:$0xff]
    %v1257 = vld [vmem:[#allocation8 + $0x1a8] sm:$0xff]
    %v1258 = vld [vmem:[#allocation8 + $0x1b0] sm:$0xff]
    %v1259 = vld [vmem:[#allocation8 + $0x1b8] sm:$0xff]
    %v1260 = vld [vmem:[#allocation8 + $0x1c0] sm:$0xff]
    %v1261 = vld [vmem:[#allocation8 + $0x1c8] sm:$0xff]
    %v1262 = vld [vmem:[#allocation8 + $0x1d0] sm:$0xff]
    %v1263 = vld [vmem:[#allocation8 + $0x1d8] sm:$0xff]
    %v1264 = vld [vmem:[#allocation8 + $0x1e0] sm:$0xff]
    %v1265 = vld [vmem:[#allocation8 + $0x1e8] sm:$0xff]
    %v1266 = vld [vmem:[#allocation8 + $0x1f0] sm:$0xff]
    %v1267 = vld [vmem:[#allocation8 + $0x1f8] sm:$0xff]
    %v1268 = vld [vmem:[#allocation10] sm:$0xf]
    %v1333 = vunpack.c.l.b16 %v1204
    %v1334 = vunpack.c.h.b16 %v1204
    %v1335 = vunpack.c.l.b16 %v1205
    %v1336 = vunpack.c.h.b16 %v1205
    %v1337 = vunpack.c.l.b16 %v1206
    %v1338 = vunpack.c.h.b16 %v1206
    %v1339 = vunpack.c.l.b16 %v1207
    %v1340 = vunpack.c.h.b16 %v1207
    %v1341 = vunpack.c.l.b16 %v1208
    %v1342 = vunpack.c.h.b16 %v1208
    %v1343 = vunpack.c.l.b16 %v1209
    %v1344 = vunpack.c.h.b16 %v1209
    %v1345 = vunpack.c.l.b16 %v1210
    %v1346 = vunpack.c.h.b16 %v1210
    %v1347 = vunpack.c.l.b16 %v1211
    %v1348 = vunpack.c.h.b16 %v1211
    %v1349 = vunpack.c.l.b16 %v1212
    %v1350 = vunpack.c.h.b16 %v1212
    %v1351 = vunpack.c.l.b16 %v1213
    %v1352 = vunpack.c.h.b16 %v1213
    %v1353 = vunpack.c.l.b16 %v1214
    %v1354 = vunpack.c.h.b16 %v1214
    %v1355 = vunpack.c.l.b16 %v1215
    %v1356 = vunpack.c.h.b16 %v1215
    %v1357 = vunpack.c.l.b16 %v1216
    %v1358 = vunpack.c.h.b16 %v1216
    %v1359 = vunpack.c.l.b16 %v1217
    %v1360 = vunpack.c.h.b16 %v1217
    %v1361 = vunpack.c.l.b16 %v1218
    %v1362 = vunpack.c.h.b16 %v1218
    %v1363 = vunpack.c.l.b16 %v1219
    %v1364 = vunpack.c.h.b16 %v1219
    %v1365 = vunpack.c.l.b16 %v1220
    %v1366 = vunpack.c.h.b16 %v1220
    %v1367 = vunpack.c.l.b16 %v1221
    %v1368 = vunpack.c.h.b16 %v1221
    %v1369 = vunpack.c.l.b16 %v1222
    %v1370 = vunpack.c.h.b16 %v1222
    %v1371 = vunpack.c.l.b16 %v1223
    %v1372 = vunpack.c.h.b16 %v1223
    %v1373 = vunpack.c.l.b16 %v1224
    %v1374 = vunpack.c.h.b16 %v1224
    %v1375 = vunpack.c.l.b16 %v1225
    %v1376 = vunpack.c.h.b16 %v1225
    %v1377 = vunpack.c.l.b16 %v1226
    %v1378 = vunpack.c.h.b16 %v1226
    %v1379 = vunpack.c.l.b16 %v1227
    %v1380 = vunpack.c.h.b16 %v1227
    %v1381 = vunpack.c.l.b16 %v1228
    %v1382 = vunpack.c.h.b16 %v1228
    %v1383 = vunpack.c.l.b16 %v1229
    %v1384 = vunpack.c.h.b16 %v1229
    %v1385 = vunpack.c.l.b16 %v1230
    %v1386 = vunpack.c.h.b16 %v1230
    %v1387 = vunpack.c.l.b16 %v1231
    %v1388 = vunpack.c.h.b16 %v1231
    %v1389 = vunpack.c.l.b16 %v1232
    %v1390 = vunpack.c.h.b16 %v1232
    %v1391 = vunpack.c.l.b16 %v1233
    %v1392 = vunpack.c.h.b16 %v1233
    %v1393 = vunpack.c.l.b16 %v1234
    %v1394 = vunpack.c.h.b16 %v1234
    %v1395 = vunpack.c.l.b16 %v1235
    %v1396 = vunpack.c.h.b16 %v1235
    %v1397 = vunpack.c.l.b16 %v1236
    %v1398 = vunpack.c.h.b16 %v1236
    %v1399 = vunpack.c.l.b16 %v1237
    %v1400 = vunpack.c.h.b16 %v1237
    %v1401 = vunpack.c.l.b16 %v1238
    %v1402 = vunpack.c.h.b16 %v1238
    %v1403 = vunpack.c.l.b16 %v1239
    %v1404 = vunpack.c.h.b16 %v1239
    %v1405 = vunpack.c.l.b16 %v1240
    %v1406 = vunpack.c.h.b16 %v1240
    %v1407 = vunpack.c.l.b16 %v1241
    %v1408 = vunpack.c.h.b16 %v1241
    %v1409 = vunpack.c.l.b16 %v1242
    %v1410 = vunpack.c.h.b16 %v1242
    %v1411 = vunpack.c.l.b16 %v1243
    %v1412 = vunpack.c.h.b16 %v1243
    %v1413 = vunpack.c.l.b16 %v1244
    %v1414 = vunpack.c.h.b16 %v1244
    %v1415 = vunpack.c.l.b16 %v1245
    %v1416 = vunpack.c.h.b16 %v1245
    %v1417 = vunpack.c.l.b16 %v1246
    %v1418 = vunpack.c.h.b16 %v1246
    %v1419 = vunpack.c.l.b16 %v1247
    %v1420 = vunpack.c.h.b16 %v1247
    %v1421 = vunpack.c.l.b16 %v1248
    %v1422 = vunpack.c.h.b16 %v1248
    %v1423 = vunpack.c.l.b16 %v1249
    %v1424 = vunpack.c.h.b16 %v1249
    %v1425 = vunpack.c.l.b16 %v1250
    %v1426 = vunpack.c.h.b16 %v1250
    %v1427 = vunpack.c.l.b16 %v1251
    %v1428 = vunpack.c.h.b16 %v1251
    %v1429 = vunpack.c.l.b16 %v1252
    %v1430 = vunpack.c.h.b16 %v1252
    %v1431 = vunpack.c.l.b16 %v1253
    %v1432 = vunpack.c.h.b16 %v1253
    %v1433 = vunpack.c.l.b16 %v1254
    %v1434 = vunpack.c.h.b16 %v1254
    %v1435 = vunpack.c.l.b16 %v1255
    %v1436 = vunpack.c.h.b16 %v1255
    %v1437 = vunpack.c.l.b16 %v1256
    %v1438 = vunpack.c.h.b16 %v1256
    %v1439 = vunpack.c.l.b16 %v1257
    %v1440 = vunpack.c.h.b16 %v1257
    %v1441 = vunpack.c.l.b16 %v1258
    %v1442 = vunpack.c.h.b16 %v1258
    %v1443 = vunpack.c.l.b16 %v1259
    %v1444 = vunpack.c.h.b16 %v1259
    %v1445 = vunpack.c.l.b16 %v1260
    %v1446 = vunpack.c.h.b16 %v1260
    %v1447 = vunpack.c.l.b16 %v1261
    %v1448 = vunpack.c.h.b16 %v1261
    %v1449 = vunpack.c.l.b16 %v1262
    %v1450 = vunpack.c.h.b16 %v1262
    %v1451 = vunpack.c.l.b16 %v1263
    %v1452 = vunpack.c.h.b16 %v1263
    %v1453 = vunpack.c.l.b16 %v1264
    %v1454 = vunpack.c.h.b16 %v1264
    %v1455 = vunpack.c.l.b16 %v1265
    %v1456 = vunpack.c.h.b16 %v1265
    %v1457 = vunpack.c.l.b16 %v1266
    %v1458 = vunpack.c.h.b16 %v1266
    %v1459 = vunpack.c.l.b16 %v1267
    %v1460 = vunpack.c.h.b16 %v1267
    %v1461 = vpack.c.b16 %v1337, %v1333
    %v1462 = vpack.c.b16 %v1338, %v1334
    %v1463 = vpack.c.b16 %v1339, %v1335
    %v1464 = vpack.c.b16 %v1340, %v1336
    %v1465 = vpack.c.b16 %v1345, %v1341
    %v1466 = vpack.c.b16 %v1346, %v1342
    %v1467 = vpack.c.b16 %v1347, %v1343
    %v1468 = vpack.c.b16 %v1348, %v1344
    %v1469 = vpack.c.b16 %v1353, %v1349
    %v1470 = vpack.c.b16 %v1354, %v1350
    %v1471 = vpack.c.b16 %v1355, %v1351
    %v1472 = vpack.c.b16 %v1356, %v1352
    %v1473 = vpack.c.b16 %v1361, %v1357
    %v1474 = vpack.c.b16 %v1362, %v1358
    %v1475 = vpack.c.b16 %v1363, %v1359
    %v1476 = vpack.c.b16 %v1364, %v1360
    %v1477 = vpack.c.b16 %v1369, %v1365
    %v1478 = vpack.c.b16 %v1370, %v1366
    %v1479 = vpack.c.b16 %v1371, %v1367
    %v1480 = vpack.c.b16 %v1372, %v1368
    %v1481 = vpack.c.b16 %v1377, %v1373
    %v1482 = vpack.c.b16 %v1378, %v1374
    %v1483 = vpack.c.b16 %v1379, %v1375
    %v1484 = vpack.c.b16 %v1380, %v1376
    %v1485 = vpack.c.b16 %v1385, %v1381
    %v1486 = vpack.c.b16 %v1386, %v1382
    %v1487 = vpack.c.b16 %v1387, %v1383
    %v1488 = vpack.c.b16 %v1388, %v1384
    %v1489 = vpack.c.b16 %v1393, %v1389
    %v1490 = vpack.c.b16 %v1394, %v1390
    %v1491 = vpack.c.b16 %v1395, %v1391
    %v1492 = vpack.c.b16 %v1396, %v1392
    %v1493 = vpack.c.b16 %v1401, %v1397
    %v1494 = vpack.c.b16 %v1402, %v1398
    %v1495 = vpack.c.b16 %v1403, %v1399
    %v1496 = vpack.c.b16 %v1404, %v1400
    %v1497 = vpack.c.b16 %v1409, %v1405
    %v1498 = vpack.c.b16 %v1410, %v1406
    %v1499 = vpack.c.b16 %v1411, %v1407
    %v1500 = vpack.c.b16 %v1412, %v1408
    %v1501 = vpack.c.b16 %v1417, %v1413
    %v1502 = vpack.c.b16 %v1418, %v1414
    %v1503 = vpack.c.b16 %v1419, %v1415
    %v1504 = vpack.c.b16 %v1420, %v1416
    %v1505 = vpack.c.b16 %v1425, %v1421
    %v1506 = vpack.c.b16 %v1426, %v1422
    %v1507 = vpack.c.b16 %v1427, %v1423
    %v1508 = vpack.c.b16 %v1428, %v1424
    %v1509 = vpack.c.b16 %v1433, %v1429
    %v1510 = vpack.c.b16 %v1434, %v1430
    %v1511 = vpack.c.b16 %v1435, %v1431
    %v1512 = vpack.c.b16 %v1436, %v1432
    %v1513 = vpack.c.b16 %v1441, %v1437
    %v1514 = vpack.c.b16 %v1442, %v1438
    %v1515 = vpack.c.b16 %v1443, %v1439
    %v1516 = vpack.c.b16 %v1444, %v1440
    %v1517 = vpack.c.b16 %v1449, %v1445
    %v1518 = vpack.c.b16 %v1450, %v1446
    %v1519 = vpack.c.b16 %v1451, %v1447
    %v1520 = vpack.c.b16 %v1452, %v1448
    %v1521 = vpack.c.b16 %v1457, %v1453
    %v1522 = vpack.c.b16 %v1458, %v1454
    %v1523 = vpack.c.b16 %v1459, %v1455
    %v1524 = vpack.c.b16 %v1460, %v1456
    %v1590 = vperm.slane %v1268, 0
    %v1591 = vperm.slane %v1268, 1
    %v1592 = vperm.slane %v1268, 2
    %v1593 = vperm.slane %v1268, 3
    %1598 = vmatpush.bf16.msra.mxu0 %v1489
    %1599 = vmatpush.bf16.msra.mxu0 %v1485
    %1600 = vmatpush.bf16.msra.mxu0 %v1481
    %1601 = vmatpush.bf16.msra.mxu0 %v1477
    %1602 = vmatpush.bf16.msra.mxu0 %v1473
    %1603 = vmatpush.bf16.msra.mxu0 %v1469
    %1604 = vmatpush.bf16.msra.mxu0 %v1465
    %1605 = vmatpush.bf16.msra.mxu0 %v1461
    %1606 = vmatmul.bf16.gmra.mxu0 %v1202
    %v1607 = vpop.f32.mrf.mxu0
    %v1608 = vadd.f32 %v1590, %v1607
    %v1609 = vpop.f32.mrf.mxu0
    %1610 = vdwg.mxu0
    %1611 = vmatpush.bf16.msra.mxu0 %v1521
    %1612 = vmatpush.bf16.msra.mxu0 %v1517
    %1613 = vmatpush.bf16.msra.mxu0 %v1513
    %1614 = vmatpush.bf16.msra.mxu0 %v1509
    %1615 = vmatpush.bf16.msra.mxu0 %v1505
    %1616 = vmatpush.bf16.msra.mxu0 %v1501
    %1617 = vmatpush.bf16.msra.mxu0 %v1497
    %1618 = vmatpush.bf16.msra.mxu0 %v1493
    %1619 = vmatmul.bf16.gmra.mxu0 %v1203
    %v1620 = vpop.f32.mrf.mxu0
    %v1621 = vadd.f32 %v1608, %v1620
    %v1622 = vpop.f32.mrf.mxu0
    %1623 = vdwg.mxu0
    %1624 = vmatpush.bf16.msra.mxu0 %v1490
    %1625 = vmatpush.bf16.msra.mxu0 %v1486
    %1626 = vmatpush.bf16.msra.mxu0 %v1482
    %1627 = vmatpush.bf16.msra.mxu0 %v1478
    %1628 = vmatpush.bf16.msra.mxu0 %v1474
    %1629 = vmatpush.bf16.msra.mxu0 %v1470
    %1630 = vmatpush.bf16.msra.mxu0 %v1466
    %1631 = vmatpush.bf16.msra.mxu0 %v1462
    %1632 = vmatmul.bf16.gmra.mxu0 %v1202
    %v1633 = vpop.f32.mrf.mxu0
    %v1634 = vadd.f32 %v1591, %v1633
    %v1635 = vpop.f32.mrf.mxu0
    %1636 = vdwg.mxu0
    %1637 = vmatpush.bf16.msra.mxu0 %v1522
    %1638 = vmatpush.bf16.msra.mxu0 %v1518
    %1639 = vmatpush.bf16.msra.mxu0 %v1514
    %1640 = vmatpush.bf16.msra.mxu0 %v1510
    %1641 = vmatpush.bf16.msra.mxu0 %v1506
    %1642 = vmatpush.bf16.msra.mxu0 %v1502
    %1643 = vmatpush.bf16.msra.mxu0 %v1498
    %1644 = vmatpush.bf16.msra.mxu0 %v1494
    %1645 = vmatmul.bf16.gmra.mxu0 %v1203
    %v1646 = vpop.f32.mrf.mxu0
    %v1647 = vadd.f32 %v1634, %v1646
    %v1648 = vpop.f32.mrf.mxu0
    %1649 = vdwg.mxu0
    %1650 = vmatpush.bf16.msra.mxu0 %v1491
    %1651 = vmatpush.bf16.msra.mxu0 %v1487
    %1652 = vmatpush.bf16.msra.mxu0 %v1483
    %1653 = vmatpush.bf16.msra.mxu0 %v1479
    %1654 = vmatpush.bf16.msra.mxu0 %v1475
    %1655 = vmatpush.bf16.msra.mxu0 %v1471
    %1656 = vmatpush.bf16.msra.mxu0 %v1467
    %1657 = vmatpush.bf16.msra.mxu0 %v1463
    %1658 = vmatmul.bf16.gmra.mxu0 %v1202
    %v1659 = vpop.f32.mrf.mxu0
    %v1660 = vadd.f32 %v1592, %v1659
    %v1661 = vpop.f32.mrf.mxu0
    %1662 = vdwg.mxu0
    %1663 = vmatpush.bf16.msra.mxu0 %v1523
    %1664 = vmatpush.bf16.msra.mxu0 %v1519
    %1665 = vmatpush.bf16.msra.mxu0 %v1515
    %1666 = vmatpush.bf16.msra.mxu0 %v1511
    %1667 = vmatpush.bf16.msra.mxu0 %v1507
    %1668 = vmatpush.bf16.msra.mxu0 %v1503
    %1669 = vmatpush.bf16.msra.mxu0 %v1499
    %1670 = vmatpush.bf16.msra.mxu0 %v1495
    %1671 = vmatmul.bf16.gmra.mxu0 %v1203
    %v1672 = vpop.f32.mrf.mxu0
    %v1673 = vadd.f32 %v1660, %v1672
    %v1674 = vpop.f32.mrf.mxu0
    %1675 = vdwg.mxu0
    %1676 = vmatpush.bf16.msra.mxu0 %v1492
    %1677 = vmatpush.bf16.msra.mxu0 %v1488
    %1678 = vmatpush.bf16.msra.mxu0 %v1484
    %1679 = vmatpush.bf16.msra.mxu0 %v1480
    %1680 = vmatpush.bf16.msra.mxu0 %v1476
    %1681 = vmatpush.bf16.msra.mxu0 %v1472
    %1682 = vmatpush.bf16.msra.mxu0 %v1468
    %1683 = vmatpush.bf16.msra.mxu0 %v1464
    %1684 = vmatmul.bf16.gmra.mxu0 %v1202
    %v1685 = vpop.f32.mrf.mxu0
    %v1686 = vadd.f32 %v1593, %v1685
    %v1687 = vpop.f32.mrf.mxu0
    %1688 = vdwg.mxu0
    %1689 = vmatpush.bf16.msra.mxu0 %v1524
    %1690 = vmatpush.bf16.msra.mxu0 %v1520
    %1691 = vmatpush.bf16.msra.mxu0 %v1516
    %1692 = vmatpush.bf16.msra.mxu0 %v1512
    %1693 = vmatpush.bf16.msra.mxu0 %v1508
    %1694 = vmatpush.bf16.msra.mxu0 %v1504
    %1695 = vmatpush.bf16.msra.mxu0 %v1500
    %1696 = vmatpush.bf16.msra.mxu0 %v1496
    %1697 = vmatmul.bf16.gmra.mxu0 %v1203
    %v1698 = vpop.f32.mrf.mxu0
    %v1699 = vadd.f32 %v1686, %v1698
    %v1700 = vpop.f32.mrf.mxu0
    %1701 = vdwg.mxu0
    %v1702 = vxor.u32 %v1621, 2147483648
    %v1703 = vxor.u32 %v1647, 2147483648
    %v1704 = vmul.f32 %v1702, 1.442695
    %v1705 = vpow.pop %v1704
    %v1706 = vmul.f32 %v1703, 1.442695
    %v1707 = vpow.pop %v1706
    %v1708 = vadd.f32 %v1705, 1.0
    %v1709 = vadd.f32 %v1707, 1.0
    %v1710 = vrcp.pop %v1708
    %v1711 = vmul.f32 %v1708, %v1710
    %v1712 = vsub.f32 1.0, %v1711
    %v1713 = vmul.f32 %v1710, %v1712
    %v1714 = vadd.f32 %v1710, %v1713
    %vm1715 = vweird.f32 %v1708
    %vm1716 = vweird.f32 %v1710
    %vm1717 = vmor %vm1715, %vm1716
    %v1718 = vsel %vm1717, %v1710, %v1714
    %v1719 = vand.u32 2147483647, %v1708
    %vm1720 = vcmp.eq.f32.partialorder %v1719, 8.507059e+37
    %v1721 = vand.u32 %v1708, 2147483648
    %v1722 = vor.u32 1.1754944e-38, %v1721
    %v1723 = vsel %vm1720, %v1722, %v1718
    %v1724 = vmul.f32 1.0, %v1723
    %v1725 = vrcp.pop %v1709
    %v1726 = vmul.f32 %v1709, %v1725
    %v1727 = vsub.f32 1.0, %v1726
    %v1728 = vmul.f32 %v1725, %v1727
    %v1729 = vadd.f32 %v1725, %v1728
    %vm1730 = vweird.f32 %v1709
    %vm1731 = vweird.f32 %v1725
    %vm1732 = vmor %vm1730, %vm1731
    %v1733 = vsel %vm1732, %v1725, %v1729
    %v1734 = vand.u32 2147483647, %v1709
    %vm1735 = vcmp.eq.f32.partialorder %v1734, 8.507059e+37
    %v1736 = vand.u32 %v1709, 2147483648
    %v1737 = vor.u32 1.1754944e-38, %v1736
    %v1738 = vsel %vm1735, %v1737, %v1733
    %v1739 = vmul.f32 1.0, %v1738
    %v1740 = vmul.f32 %v1724, %v1699
    %v1741 = vadd.f32 %v1673, %v1740
    %v1742 = vtanh.pop %v1741
    %v1743 = vsub.f32 1.0, %v1739
    %v1744 = vmul.f32 %v1743, %v1742
    %v1745 = vmul.f32 %v1739, %v1196
    %v1746 = vadd.f32 %v1744, %v1745
    %1747 = vst [vmem:[#allocation2 + $0x2] sm:$0x1] %v1746
    %s1748 = sld [smem:[#allocation4 + $0x3]]
    %s1749 = scalar_lea.vmem [#allocation5], %s1748
    %v1750 = vld [vmem:[%s1749] sm:$0x1]
    %v1751 = vmax.f32 %v1750, 0.0
    %v1752 = vpack.c.bf16 %v1751, %v1751
    %v1753 = vpack.c.bf16 %v1746, %v1746
    %v1754 = vld [vmem:[#allocation8] sm:$0xff]
    %v1755 = vld [vmem:[#allocation8 + $0x8] sm:$0xff]
    %v1756 = vld [vmem:[#allocation8 + $0x10] sm:$0xff]
    %v1757 = vld [vmem:[#allocation8 + $0x18] sm:$0xff]
    %v1758 = vld [vmem:[#allocation8 + $0x20] sm:$0xff]
    %v1759 = vld [vmem:[#allocation8 + $0x28] sm:$0xff]
    %v1760 = vld [vmem:[#allocation8 + $0x30] sm:$0xff]
    %v1761 = vld [vmem:[#allocation8 + $0x38] sm:$0xff]
    %v1762 = vld [vmem:[#allocation8 + $0x40] sm:$0xff]
    %v1763 = vld [vmem:[#allocation8 + $0x48] sm:$0xff]
    %v1764 = vld [vmem:[#allocation8 + $0x50] sm:$0xff]
    %v1765 = vld [vmem:[#allocation8 + $0x58] sm:$0xff]
    %v1766 = vld [vmem:[#allocation8 + $0x60] sm:$0xff]
    %v1767 = vld [vmem:[#allocation8 + $0x68] sm:$0xff]
    %v1768 = vld [vmem:[#allocation8 + $0x70] sm:$0xff]
    %v1769 = vld [vmem:[#allocation8 + $0x78] sm:$0xff]
    %v1770 = vld [vmem:[#allocation8 + $0x80] sm:$0xff]
    %v1771 = vld [vmem:[#allocation8 + $0x88] sm:$0xff]
    %v1772 = vld [vmem:[#allocation8 + $0x90] sm:$0xff]
    %v1773 = vld [vmem:[#allocation8 + $0x98] sm:$0xff]
    %v1774 = vld [vmem:[#allocation8 + $0xa0] sm:$0xff]
    %v1775 = vld [vmem:[#allocation8 + $0xa8] sm:$0xff]
    %v1776 = vld [vmem:[#allocation8 + $0xb0] sm:$0xff]
    %v1777 = vld [vmem:[#allocation8 + $0xb8] sm:$0xff]
    %v1778 = vld [vmem:[#allocation8 + $0xc0] sm:$0xff]
    %v1779 = vld [vmem:[#allocation8 + $0xc8] sm:$0xff]
    %v1780 = vld [vmem:[#allocation8 + $0xd0] sm:$0xff]
    %v1781 = vld [vmem:[#allocation8 + $0xd8] sm:$0xff]
    %v1782 = vld [vmem:[#allocation8 + $0xe0] sm:$0xff]
    %v1783 = vld [vmem:[#allocation8 + $0xe8] sm:$0xff]
    %v1784 = vld [vmem:[#allocation8 + $0xf0] sm:$0xff]
    %v1785 = vld [vmem:[#allocation8 + $0xf8] sm:$0xff]
    %v1786 = vld [vmem:[#allocation8 + $0x100] sm:$0xff]
    %v1787 = vld [vmem:[#allocation8 + $0x108] sm:$0xff]
    %v1788 = vld [vmem:[#allocation8 + $0x110] sm:$0xff]
    %v1789 = vld [vmem:[#allocation8 + $0x118] sm:$0xff]
    %v1790 = vld [vmem:[#allocation8 + $0x120] sm:$0xff]
    %v1791 = vld [vmem:[#allocation8 + $0x128] sm:$0xff]
    %v1792 = vld [vmem:[#allocation8 + $0x130] sm:$0xff]
    %v1793 = vld [vmem:[#allocation8 + $0x138] sm:$0xff]
    %v1794 = vld [vmem:[#allocation8 + $0x140] sm:$0xff]
    %v1795 = vld [vmem:[#allocation8 + $0x148] sm:$0xff]
    %v1796 = vld [vmem:[#allocation8 + $0x150] sm:$0xff]
    %v1797 = vld [vmem:[#allocation8 + $0x158] sm:$0xff]
    %v1798 = vld [vmem:[#allocation8 + $0x160] sm:$0xff]
    %v1799 = vld [vmem:[#allocation8 + $0x168] sm:$0xff]
    %v1800 = vld [vmem:[#allocation8 + $0x170] sm:$0xff]
    %v1801 = vld [vmem:[#allocation8 + $0x178] sm:$0xff]
    %v1802 = vld [vmem:[#allocation8 + $0x180] sm:$0xff]
    %v1803 = vld [vmem:[#allocation8 + $0x188] sm:$0xff]
    %v1804 = vld [vmem:[#allocation8 + $0x190] sm:$0xff]
    %v1805 = vld [vmem:[#allocation8 + $0x198] sm:$0xff]
    %v1806 = vld [vmem:[#allocation8 + $0x1a0] sm:$0xff]
    %v1807 = vld [vmem:[#allocation8 + $0x1a8] sm:$0xff]
    %v1808 = vld [vmem:[#allocation8 + $0x1b0] sm:$0xff]
    %v1809 = vld [vmem:[#allocation8 + $0x1b8] sm:$0xff]
    %v1810 = vld [vmem:[#allocation8 + $0x1c0] sm:$0xff]
    %v1811 = vld [vmem:[#allocation8 + $0x1c8] sm:$0xff]
    %v1812 = vld [vmem:[#allocation8 + $0x1d0] sm:$0xff]
    %v1813 = vld [vmem:[#allocation8 + $0x1d8] sm:$0xff]
    %v1814 = vld [vmem:[#allocation8 + $0x1e0] sm:$0xff]
    %v1815 = vld [vmem:[#allocation8 + $0x1e8] sm:$0xff]
    %v1816 = vld [vmem:[#allocation8 + $0x1f0] sm:$0xff]
    %v1817 = vld [vmem:[#allocation8 + $0x1f8] sm:$0xff]
    %v1818 = vld [vmem:[#allocation10] sm:$0xf]
    %v1883 = vunpack.c.l.b16 %v1754
    %v1884 = vunpack.c.h.b16 %v1754
    %v1885 = vunpack.c.l.b16 %v1755
    %v1886 = vunpack.c.h.b16 %v1755
    %v1887 = vunpack.c.l.b16 %v1756
    %v1888 = vunpack.c.h.b16 %v1756
    %v1889 = vunpack.c.l.b16 %v1757
    %v1890 = vunpack.c.h.b16 %v1757
    %v1891 = vunpack.c.l.b16 %v1758
    %v1892 = vunpack.c.h.b16 %v1758
    %v1893 = vunpack.c.l.b16 %v1759
    %v1894 = vunpack.c.h.b16 %v1759
    %v1895 = vunpack.c.l.b16 %v1760
    %v1896 = vunpack.c.h.b16 %v1760
    %v1897 = vunpack.c.l.b16 %v1761
    %v1898 = vunpack.c.h.b16 %v1761
    %v1899 = vunpack.c.l.b16 %v1762
    %v1900 = vunpack.c.h.b16 %v1762
    %v1901 = vunpack.c.l.b16 %v1763
    %v1902 = vunpack.c.h.b16 %v1763
    %v1903 = vunpack.c.l.b16 %v1764
    %v1904 = vunpack.c.h.b16 %v1764
    %v1905 = vunpack.c.l.b16 %v1765
    %v1906 = vunpack.c.h.b16 %v1765
    %v1907 = vunpack.c.l.b16 %v1766
    %v1908 = vunpack.c.h.b16 %v1766
    %v1909 = vunpack.c.l.b16 %v1767
    %v1910 = vunpack.c.h.b16 %v1767
    %v1911 = vunpack.c.l.b16 %v1768
    %v1912 = vunpack.c.h.b16 %v1768
    %v1913 = vunpack.c.l.b16 %v1769
    %v1914 = vunpack.c.h.b16 %v1769
    %v1915 = vunpack.c.l.b16 %v1770
    %v1916 = vunpack.c.h.b16 %v1770
    %v1917 = vunpack.c.l.b16 %v1771
    %v1918 = vunpack.c.h.b16 %v1771
    %v1919 = vunpack.c.l.b16 %v1772
    %v1920 = vunpack.c.h.b16 %v1772
    %v1921 = vunpack.c.l.b16 %v1773
    %v1922 = vunpack.c.h.b16 %v1773
    %v1923 = vunpack.c.l.b16 %v1774
    %v1924 = vunpack.c.h.b16 %v1774
    %v1925 = vunpack.c.l.b16 %v1775
    %v1926 = vunpack.c.h.b16 %v1775
    %v1927 = vunpack.c.l.b16 %v1776
    %v1928 = vunpack.c.h.b16 %v1776
    %v1929 = vunpack.c.l.b16 %v1777
    %v1930 = vunpack.c.h.b16 %v1777
    %v1931 = vunpack.c.l.b16 %v1778
    %v1932 = vunpack.c.h.b16 %v1778
    %v1933 = vunpack.c.l.b16 %v1779
    %v1934 = vunpack.c.h.b16 %v1779
    %v1935 = vunpack.c.l.b16 %v1780
    %v1936 = vunpack.c.h.b16 %v1780
    %v1937 = vunpack.c.l.b16 %v1781
    %v1938 = vunpack.c.h.b16 %v1781
    %v1939 = vunpack.c.l.b16 %v1782
    %v1940 = vunpack.c.h.b16 %v1782
    %v1941 = vunpack.c.l.b16 %v1783
    %v1942 = vunpack.c.h.b16 %v1783
    %v1943 = vunpack.c.l.b16 %v1784
    %v1944 = vunpack.c.h.b16 %v1784
    %v1945 = vunpack.c.l.b16 %v1785
    %v1946 = vunpack.c.h.b16 %v1785
    %v1947 = vunpack.c.l.b16 %v1786
    %v1948 = vunpack.c.h.b16 %v1786
    %v1949 = vunpack.c.l.b16 %v1787
    %v1950 = vunpack.c.h.b16 %v1787
    %v1951 = vunpack.c.l.b16 %v1788
    %v1952 = vunpack.c.h.b16 %v1788
    %v1953 = vunpack.c.l.b16 %v1789
    %v1954 = vunpack.c.h.b16 %v1789
    %v1955 = vunpack.c.l.b16 %v1790
    %v1956 = vunpack.c.h.b16 %v1790
    %v1957 = vunpack.c.l.b16 %v1791
    %v1958 = vunpack.c.h.b16 %v1791
    %v1959 = vunpack.c.l.b16 %v1792
    %v1960 = vunpack.c.h.b16 %v1792
    %v1961 = vunpack.c.l.b16 %v1793
    %v1962 = vunpack.c.h.b16 %v1793
    %v1963 = vunpack.c.l.b16 %v1794
    %v1964 = vunpack.c.h.b16 %v1794
    %v1965 = vunpack.c.l.b16 %v1795
    %v1966 = vunpack.c.h.b16 %v1795
    %v1967 = vunpack.c.l.b16 %v1796
    %v1968 = vunpack.c.h.b16 %v1796
    %v1969 = vunpack.c.l.b16 %v1797
    %v1970 = vunpack.c.h.b16 %v1797
    %v1971 = vunpack.c.l.b16 %v1798
    %v1972 = vunpack.c.h.b16 %v1798
    %v1973 = vunpack.c.l.b16 %v1799
    %v1974 = vunpack.c.h.b16 %v1799
    %v1975 = vunpack.c.l.b16 %v1800
    %v1976 = vunpack.c.h.b16 %v1800
    %v1977 = vunpack.c.l.b16 %v1801
    %v1978 = vunpack.c.h.b16 %v1801
    %v1979 = vunpack.c.l.b16 %v1802
    %v1980 = vunpack.c.h.b16 %v1802
    %v1981 = vunpack.c.l.b16 %v1803
    %v1982 = vunpack.c.h.b16 %v1803
    %v1983 = vunpack.c.l.b16 %v1804
    %v1984 = vunpack.c.h.b16 %v1804
    %v1985 = vunpack.c.l.b16 %v1805
    %v1986 = vunpack.c.h.b16 %v1805
    %v1987 = vunpack.c.l.b16 %v1806
    %v1988 = vunpack.c.h.b16 %v1806
    %v1989 = vunpack.c.l.b16 %v1807
    %v1990 = vunpack.c.h.b16 %v1807
    %v1991 = vunpack.c.l.b16 %v1808
    %v1992 = vunpack.c.h.b16 %v1808
    %v1993 = vunpack.c.l.b16 %v1809
    %v1994 = vunpack.c.h.b16 %v1809
    %v1995 = vunpack.c.l.b16 %v1810
    %v1996 = vunpack.c.h.b16 %v1810
    %v1997 = vunpack.c.l.b16 %v1811
    %v1998 = vunpack.c.h.b16 %v1811
    %v1999 = vunpack.c.l.b16 %v1812
    %v2000 = vunpack.c.h.b16 %v1812
    %v2001 = vunpack.c.l.b16 %v1813
    %v2002 = vunpack.c.h.b16 %v1813
    %v2003 = vunpack.c.l.b16 %v1814
    %v2004 = vunpack.c.h.b16 %v1814
    %v2005 = vunpack.c.l.b16 %v1815
    %v2006 = vunpack.c.h.b16 %v1815
    %v2007 = vunpack.c.l.b16 %v1816
    %v2008 = vunpack.c.h.b16 %v1816
    %v2009 = vunpack.c.l.b16 %v1817
    %v2010 = vunpack.c.h.b16 %v1817
    %v2011 = vpack.c.b16 %v1887, %v1883
    %v2012 = vpack.c.b16 %v1888, %v1884
    %v2013 = vpack.c.b16 %v1889, %v1885
    %v2014 = vpack.c.b16 %v1890, %v1886
    %v2015 = vpack.c.b16 %v1895, %v1891
    %v2016 = vpack.c.b16 %v1896, %v1892
    %v2017 = vpack.c.b16 %v1897, %v1893
    %v2018 = vpack.c.b16 %v1898, %v1894
    %v2019 = vpack.c.b16 %v1903, %v1899
    %v2020 = vpack.c.b16 %v1904, %v1900
    %v2021 = vpack.c.b16 %v1905, %v1901
    %v2022 = vpack.c.b16 %v1906, %v1902
    %v2023 = vpack.c.b16 %v1911, %v1907
    %v2024 = vpack.c.b16 %v1912, %v1908
    %v2025 = vpack.c.b16 %v1913, %v1909
    %v2026 = vpack.c.b16 %v1914, %v1910
    %v2027 = vpack.c.b16 %v1919, %v1915
    %v2028 = vpack.c.b16 %v1920, %v1916
    %v2029 = vpack.c.b16 %v1921, %v1917
    %v2030 = vpack.c.b16 %v1922, %v1918
    %v2031 = vpack.c.b16 %v1927, %v1923
    %v2032 = vpack.c.b16 %v1928, %v1924
    %v2033 = vpack.c.b16 %v1929, %v1925
    %v2034 = vpack.c.b16 %v1930, %v1926
    %v2035 = vpack.c.b16 %v1935, %v1931
    %v2036 = vpack.c.b16 %v1936, %v1932
    %v2037 = vpack.c.b16 %v1937, %v1933
    %v2038 = vpack.c.b16 %v1938, %v1934
    %v2039 = vpack.c.b16 %v1943, %v1939
    %v2040 = vpack.c.b16 %v1944, %v1940
    %v2041 = vpack.c.b16 %v1945, %v1941
    %v2042 = vpack.c.b16 %v1946, %v1942
    %v2043 = vpack.c.b16 %v1951, %v1947
    %v2044 = vpack.c.b16 %v1952, %v1948
    %v2045 = vpack.c.b16 %v1953, %v1949
    %v2046 = vpack.c.b16 %v1954, %v1950
    %v2047 = vpack.c.b16 %v1959, %v1955
    %v2048 = vpack.c.b16 %v1960, %v1956
    %v2049 = vpack.c.b16 %v1961, %v1957
    %v2050 = vpack.c.b16 %v1962, %v1958
    %v2051 = vpack.c.b16 %v1967, %v1963
    %v2052 = vpack.c.b16 %v1968, %v1964
    %v2053 = vpack.c.b16 %v1969, %v1965
    %v2054 = vpack.c.b16 %v1970, %v1966
    %v2055 = vpack.c.b16 %v1975, %v1971
    %v2056 = vpack.c.b16 %v1976, %v1972
    %v2057 = vpack.c.b16 %v1977, %v1973
    %v2058 = vpack.c.b16 %v1978, %v1974
    %v2059 = vpack.c.b16 %v1983, %v1979
    %v2060 = vpack.c.b16 %v1984, %v1980
    %v2061 = vpack.c.b16 %v1985, %v1981
    %v2062 = vpack.c.b16 %v1986, %v1982
    %v2063 = vpack.c.b16 %v1991, %v1987
    %v2064 = vpack.c.b16 %v1992, %v1988
    %v2065 = vpack.c.b16 %v1993, %v1989
    %v2066 = vpack.c.b16 %v1994, %v1990
    %v2067 = vpack.c.b16 %v1999, %v1995
    %v2068 = vpack.c.b16 %v2000, %v1996
    %v2069 = vpack.c.b16 %v2001, %v1997
    %v2070 = vpack.c.b16 %v2002, %v1998
    %v2071 = vpack.c.b16 %v2007, %v2003
    %v2072 = vpack.c.b16 %v2008, %v2004
    %v2073 = vpack.c.b16 %v2009, %v2005
    %v2074 = vpack.c.b16 %v2010, %v2006
    %v2140 = vperm.slane %v1818, 0
    %v2141 = vperm.slane %v1818, 1
    %v2142 = vperm.slane %v1818, 2
    %v2143 = vperm.slane %v1818, 3
    %2148 = vmatpush.bf16.msra.mxu0 %v2039
    %2149 = vmatpush.bf16.msra.mxu0 %v2035
    %2150 = vmatpush.bf16.msra.mxu0 %v2031
    %2151 = vmatpush.bf16.msra.mxu0 %v2027
    %2152 = vmatpush.bf16.msra.mxu0 %v2023
    %2153 = vmatpush.bf16.msra.mxu0 %v2019
    %2154 = vmatpush.bf16.msra.mxu0 %v2015
    %2155 = vmatpush.bf16.msra.mxu0 %v2011
    %2156 = vmatmul.bf16.gmra.mxu0 %v1752
    %v2157 = vpop.f32.mrf.mxu0
    %v2158 = vadd.f32 %v2140, %v2157
    %v2159 = vpop.f32.mrf.mxu0
    %2160 = vdwg.mxu0
    %2161 = vmatpush.bf16.msra.mxu0 %v2071
    %2162 = vmatpush.bf16.msra.mxu0 %v2067
    %2163 = vmatpush.bf16.msra.mxu0 %v2063
    %2164 = vmatpush.bf16.msra.mxu0 %v2059
    %2165 = vmatpush.bf16.msra.mxu0 %v2055
    %2166 = vmatpush.bf16.msra.mxu0 %v2051
    %2167 = vmatpush.bf16.msra.mxu0 %v2047
    %2168 = vmatpush.bf16.msra.mxu0 %v2043
    %2169 = vmatmul.bf16.gmra.mxu0 %v1753
    %v2170 = vpop.f32.mrf.mxu0
    %v2171 = vadd.f32 %v2158, %v2170
    %v2172 = vpop.f32.mrf.mxu0
    %2173 = vdwg.mxu0
    %2174 = vmatpush.bf16.msra.mxu0 %v2040
    %2175 = vmatpush.bf16.msra.mxu0 %v2036
    %2176 = vmatpush.bf16.msra.mxu0 %v2032
    %2177 = vmatpush.bf16.msra.mxu0 %v2028
    %2178 = vmatpush.bf16.msra.mxu0 %v2024
    %2179 = vmatpush.bf16.msra.mxu0 %v2020
    %2180 = vmatpush.bf16.msra.mxu0 %v2016
    %2181 = vmatpush.bf16.msra.mxu0 %v2012
    %2182 = vmatmul.bf16.gmra.mxu0 %v1752
    %v2183 = vpop.f32.mrf.mxu0
    %v2184 = vadd.f32 %v2141, %v2183
    %v2185 = vpop.f32.mrf.mxu0
    %2186 = vdwg.mxu0
    %2187 = vmatpush.bf16.msra.mxu0 %v2072
    %2188 = vmatpush.bf16.msra.mxu0 %v2068
    %2189 = vmatpush.bf16.msra.mxu0 %v2064
    %2190 = vmatpush.bf16.msra.mxu0 %v2060
    %2191 = vmatpush.bf16.msra.mxu0 %v2056
    %2192 = vmatpush.bf16.msra.mxu0 %v2052
    %2193 = vmatpush.bf16.msra.mxu0 %v2048
    %2194 = vmatpush.bf16.msra.mxu0 %v2044
    %2195 = vmatmul.bf16.gmra.mxu0 %v1753
    %v2196 = vpop.f32.mrf.mxu0
    %v2197 = vadd.f32 %v2184, %v2196
    %v2198 = vpop.f32.mrf.mxu0
    %2199 = vdwg.mxu0
    %2200 = vmatpush.bf16.msra.mxu0 %v2041
    %2201 = vmatpush.bf16.msra.mxu0 %v2037
    %2202 = vmatpush.bf16.msra.mxu0 %v2033
    %2203 = vmatpush.bf16.msra.mxu0 %v2029
    %2204 = vmatpush.bf16.msra.mxu0 %v2025
    %2205 = vmatpush.bf16.msra.mxu0 %v2021
    %2206 = vmatpush.bf16.msra.mxu0 %v2017
    %2207 = vmatpush.bf16.msra.mxu0 %v2013
    %2208 = vmatmul.bf16.gmra.mxu0 %v1752
    %v2209 = vpop.f32.mrf.mxu0
    %v2210 = vadd.f32 %v2142, %v2209
    %v2211 = vpop.f32.mrf.mxu0
    %2212 = vdwg.mxu0
    %2213 = vmatpush.bf16.msra.mxu0 %v2073
    %2214 = vmatpush.bf16.msra.mxu0 %v2069
    %2215 = vmatpush.bf16.msra.mxu0 %v2065
    %2216 = vmatpush.bf16.msra.mxu0 %v2061
    %2217 = vmatpush.bf16.msra.mxu0 %v2057
    %2218 = vmatpush.bf16.msra.mxu0 %v2053
    %2219 = vmatpush.bf16.msra.mxu0 %v2049
    %2220 = vmatpush.bf16.msra.mxu0 %v2045
    %2221 = vmatmul.bf16.gmra.mxu0 %v1753
    %v2222 = vpop.f32.mrf.mxu0
    %v2223 = vadd.f32 %v2210, %v2222
    %v2224 = vpop.f32.mrf.mxu0
    %2225 = vdwg.mxu0
    %2226 = vmatpush.bf16.msra.mxu0 %v2042
    %2227 = vmatpush.bf16.msra.mxu0 %v2038
    %2228 = vmatpush.bf16.msra.mxu0 %v2034
    %2229 = vmatpush.bf16.msra.mxu0 %v2030
    %2230 = vmatpush.bf16.msra.mxu0 %v2026
    %2231 = vmatpush.bf16.msra.mxu0 %v2022
    %2232 = vmatpush.bf16.msra.mxu0 %v2018
    %2233 = vmatpush.bf16.msra.mxu0 %v2014
    %2234 = vmatmul.bf16.gmra.mxu0 %v1752
    %v2235 = vpop.f32.mrf.mxu0
    %v2236 = vadd.f32 %v2143, %v2235
    %v2237 = vpop.f32.mrf.mxu0
    %2238 = vdwg.mxu0
    %2239 = vmatpush.bf16.msra.mxu0 %v2074
    %2240 = vmatpush.bf16.msra.mxu0 %v2070
    %2241 = vmatpush.bf16.msra.mxu0 %v2066
    %2242 = vmatpush.bf16.msra.mxu0 %v2062
    %2243 = vmatpush.bf16.msra.mxu0 %v2058
    %2244 = vmatpush.bf16.msra.mxu0 %v2054
    %2245 = vmatpush.bf16.msra.mxu0 %v2050
    %2246 = vmatpush.bf16.msra.mxu0 %v2046
    %2247 = vmatmul.bf16.gmra.mxu0 %v1753
    %v2248 = vpop.f32.mrf.mxu0
    %v2249 = vadd.f32 %v2236, %v2248
    %v2250 = vpop.f32.mrf.mxu0
    %2251 = vdwg.mxu0
    %v2252 = vxor.u32 %v2171, 2147483648
    %v2253 = vxor.u32 %v2197, 2147483648
    %v2254 = vmul.f32 %v2252, 1.442695
    %v2255 = vpow.pop %v2254
    %v2256 = vmul.f32 %v2253, 1.442695
    %v2257 = vpow.pop %v2256
    %v2258 = vadd.f32 %v2255, 1.0
    %v2259 = vadd.f32 %v2257, 1.0
    %v2260 = vrcp.pop %v2258
    %v2261 = vmul.f32 %v2258, %v2260
    %v2262 = vsub.f32 1.0, %v2261
    %v2263 = vmul.f32 %v2260, %v2262
    %v2264 = vadd.f32 %v2260, %v2263
    %vm2265 = vweird.f32 %v2258
    %vm2266 = vweird.f32 %v2260
    %vm2267 = vmor %vm2265, %vm2266
    %v2268 = vsel %vm2267, %v2260, %v2264
    %v2269 = vand.u32 2147483647, %v2258
    %vm2270 = vcmp.eq.f32.partialorder %v2269, 8.507059e+37
    %v2271 = vand.u32 %v2258, 2147483648
    %v2272 = vor.u32 1.1754944e-38, %v2271
    %v2273 = vsel %vm2270, %v2272, %v2268
    %v2274 = vmul.f32 1.0, %v2273
    %v2275 = vrcp.pop %v2259
    %v2276 = vmul.f32 %v2259, %v2275
    %v2277 = vsub.f32 1.0, %v2276
    %v2278 = vmul.f32 %v2275, %v2277
    %v2279 = vadd.f32 %v2275, %v2278
    %vm2280 = vweird.f32 %v2259
    %vm2281 = vweird.f32 %v2275
    %vm2282 = vmor %vm2280, %vm2281
    %v2283 = vsel %vm2282, %v2275, %v2279
    %v2284 = vand.u32 2147483647, %v2259
    %vm2285 = vcmp.eq.f32.partialorder %v2284, 8.507059e+37
    %v2286 = vand.u32 %v2259, 2147483648
    %v2287 = vor.u32 1.1754944e-38, %v2286
    %v2288 = vsel %vm2285, %v2287, %v2283
    %v2289 = vmul.f32 1.0, %v2288
    %v2290 = vmul.f32 %v2274, %v2249
    %v2291 = vadd.f32 %v2223, %v2290
    %v2292 = vtanh.pop %v2291
    %v2293 = vsub.f32 1.0, %v2289
    %v2294 = vmul.f32 %v2293, %v2292
    %v2295 = vmul.f32 %v2289, %v1746
    %v2296 = vadd.f32 %v2294, %v2295
    %2297 = vst [vmem:[#allocation2 + $0x3] sm:$0x1] %v2296
    %s2298 = sld [smem:[#allocation4 + $0x4]]
    %s2299 = scalar_lea.vmem [#allocation5], %s2298
    %v2300 = vld [vmem:[%s2299] sm:$0x1]
    %v2301 = vmax.f32 %v2300, 0.0
    %v2302 = vpack.c.bf16 %v2301, %v2301
    %v2303 = vpack.c.bf16 %v2296, %v2296
    %v2304 = vld [vmem:[#allocation8] sm:$0xff]
    %v2305 = vld [vmem:[#allocation8 + $0x8] sm:$0xff]
    %v2306 = vld [vmem:[#allocation8 + $0x10] sm:$0xff]
    %v2307 = vld [vmem:[#allocation8 + $0x18] sm:$0xff]
    %v2308 = vld [vmem:[#allocation8 + $0x20] sm:$0xff]
    %v2309 = vld [vmem:[#allocation8 + $0x28] sm:$0xff]
    %v2310 = vld [vmem:[#allocation8 + $0x30] sm:$0xff]
    %v2311 = vld [vmem:[#allocation8 + $0x38] sm:$0xff]
    %v2312 = vld [vmem:[#allocation8 + $0x40] sm:$0xff]
    %v2313 = vld [vmem:[#allocation8 + $0x48] sm:$0xff]
    %v2314 = vld [vmem:[#allocation8 + $0x50] sm:$0xff]
    %v2315 = vld [vmem:[#allocation8 + $0x58] sm:$0xff]
    %v2316 = vld [vmem:[#allocation8 + $0x60] sm:$0xff]
    %v2317 = vld [vmem:[#allocation8 + $0x68] sm:$0xff]
    %v2318 = vld [vmem:[#allocation8 + $0x70] sm:$0xff]
    %v2319 = vld [vmem:[#allocation8 + $0x78] sm:$0xff]
    %v2320 = vld [vmem:[#allocation8 + $0x80] sm:$0xff]
    %v2321 = vld [vmem:[#allocation8 + $0x88] sm:$0xff]
    %v2322 = vld [vmem:[#allocation8 + $0x90] sm:$0xff]
    %v2323 = vld [vmem:[#allocation8 + $0x98] sm:$0xff]
    %v2324 = vld [vmem:[#allocation8 + $0xa0] sm:$0xff]
    %v2325 = vld [vmem:[#allocation8 + $0xa8] sm:$0xff]
    %v2326 = vld [vmem:[#allocation8 + $0xb0] sm:$0xff]
    %v2327 = vld [vmem:[#allocation8 + $0xb8] sm:$0xff]
    %v2328 = vld [vmem:[#allocation8 + $0xc0] sm:$0xff]
    %v2329 = vld [vmem:[#allocation8 + $0xc8] sm:$0xff]
    %v2330 = vld [vmem:[#allocation8 + $0xd0] sm:$0xff]
    %v2331 = vld [vmem:[#allocation8 + $0xd8] sm:$0xff]
    %v2332 = vld [vmem:[#allocation8 + $0xe0] sm:$0xff]
    %v2333 = vld [vmem:[#allocation8 + $0xe8] sm:$0xff]
    %v2334 = vld [vmem:[#allocation8 + $0xf0] sm:$0xff]
    %v2335 = vld [vmem:[#allocation8 + $0xf8] sm:$0xff]
    %v2336 = vld [vmem:[#allocation8 + $0x100] sm:$0xff]
    %v2337 = vld [vmem:[#allocation8 + $0x108] sm:$0xff]
    %v2338 = vld [vmem:[#allocation8 + $0x110] sm:$0xff]
    %v2339 = vld [vmem:[#allocation8 + $0x118] sm:$0xff]
    %v2340 = vld [vmem:[#allocation8 + $0x120] sm:$0xff]
    %v2341 = vld [vmem:[#allocation8 + $0x128] sm:$0xff]
    %v2342 = vld [vmem:[#allocation8 + $0x130] sm:$0xff]
    %v2343 = vld [vmem:[#allocation8 + $0x138] sm:$0xff]
    %v2344 = vld [vmem:[#allocation8 + $0x140] sm:$0xff]
    %v2345 = vld [vmem:[#allocation8 + $0x148] sm:$0xff]
    %v2346 = vld [vmem:[#allocation8 + $0x150] sm:$0xff]
    %v2347 = vld [vmem:[#allocation8 + $0x158] sm:$0xff]
    %v2348 = vld [vmem:[#allocation8 + $0x160] sm:$0xff]
    %v2349 = vld [vmem:[#allocation8 + $0x168] sm:$0xff]
    %v2350 = vld [vmem:[#allocation8 + $0x170] sm:$0xff]
    %v2351 = vld [vmem:[#allocation8 + $0x178] sm:$0xff]
    %v2352 = vld [vmem:[#allocation8 + $0x180] sm:$0xff]
    %v2353 = vld [vmem:[#allocation8 + $0x188] sm:$0xff]
    %v2354 = vld [vmem:[#allocation8 + $0x190] sm:$0xff]
    %v2355 = vld [vmem:[#allocation8 + $0x198] sm:$0xff]
    %v2356 = vld [vmem:[#allocation8 + $0x1a0] sm:$0xff]
    %v2357 = vld [vmem:[#allocation8 + $0x1a8] sm:$0xff]
    %v2358 = vld [vmem:[#allocation8 + $0x1b0] sm:$0xff]
    %v2359 = vld [vmem:[#allocation8 + $0x1b8] sm:$0xff]
    %v2360 = vld [vmem:[#allocation8 + $0x1c0] sm:$0xff]
    %v2361 = vld [vmem:[#allocation8 + $0x1c8] sm:$0xff]
    %v2362 = vld [vmem:[#allocation8 + $0x1d0] sm:$0xff]
    %v2363 = vld [vmem:[#allocation8 + $0x1d8] sm:$0xff]
    %v2364 = vld [vmem:[#allocation8 + $0x1e0] sm:$0xff]
    %v2365 = vld [vmem:[#allocation8 + $0x1e8] sm:$0xff]
    %v2366 = vld [vmem:[#allocation8 + $0x1f0] sm:$0xff]
    %v2367 = vld [vmem:[#allocation8 + $0x1f8] sm:$0xff]
    %v2368 = vld [vmem:[#allocation10] sm:$0xf]
    %v2433 = vunpack.c.l.b16 %v2304
    %v2434 = vunpack.c.h.b16 %v2304
    %v2435 = vunpack.c.l.b16 %v2305
    %v2436 = vunpack.c.h.b16 %v2305
    %v2437 = vunpack.c.l.b16 %v2306
    %v2438 = vunpack.c.h.b16 %v2306
    %v2439 = vunpack.c.l.b16 %v2307
    %v2440 = vunpack.c.h.b16 %v2307
    %v2441 = vunpack.c.l.b16 %v2308
    %v2442 = vunpack.c.h.b16 %v2308
    %v2443 = vunpack.c.l.b16 %v2309
    %v2444 = vunpack.c.h.b16 %v2309
    %v2445 = vunpack.c.l.b16 %v2310
    %v2446 = vunpack.c.h.b16 %v2310
    %v2447 = vunpack.c.l.b16 %v2311
    %v2448 = vunpack.c.h.b16 %v2311
    %v2449 = vunpack.c.l.b16 %v2312
    %v2450 = vunpack.c.h.b16 %v2312
    %v2451 = vunpack.c.l.b16 %v2313
    %v2452 = vunpack.c.h.b16 %v2313
    %v2453 = vunpack.c.l.b16 %v2314
    %v2454 = vunpack.c.h.b16 %v2314
    %v2455 = vunpack.c.l.b16 %v2315
    %v2456 = vunpack.c.h.b16 %v2315
    %v2457 = vunpack.c.l.b16 %v2316
    %v2458 = vunpack.c.h.b16 %v2316
    %v2459 = vunpack.c.l.b16 %v2317
    %v2460 = vunpack.c.h.b16 %v2317
    %v2461 = vunpack.c.l.b16 %v2318
    %v2462 = vunpack.c.h.b16 %v2318
    %v2463 = vunpack.c.l.b16 %v2319
    %v2464 = vunpack.c.h.b16 %v2319
    %v2465 = vunpack.c.l.b16 %v2320
    %v2466 = vunpack.c.h.b16 %v2320
    %v2467 = vunpack.c.l.b16 %v2321
    %v2468 = vunpack.c.h.b16 %v2321
    %v2469 = vunpack.c.l.b16 %v2322
    %v2470 = vunpack.c.h.b16 %v2322
    %v2471 = vunpack.c.l.b16 %v2323
    %v2472 = vunpack.c.h.b16 %v2323
    %v2473 = vunpack.c.l.b16 %v2324
    %v2474 = vunpack.c.h.b16 %v2324
    %v2475 = vunpack.c.l.b16 %v2325
    %v2476 = vunpack.c.h.b16 %v2325
    %v2477 = vunpack.c.l.b16 %v2326
    %v2478 = vunpack.c.h.b16 %v2326
    %v2479 = vunpack.c.l.b16 %v2327
    %v2480 = vunpack.c.h.b16 %v2327
    %v2481 = vunpack.c.l.b16 %v2328
    %v2482 = vunpack.c.h.b16 %v2328
    %v2483 = vunpack.c.l.b16 %v2329
    %v2484 = vunpack.c.h.b16 %v2329
    %v2485 = vunpack.c.l.b16 %v2330
    %v2486 = vunpack.c.h.b16 %v2330
    %v2487 = vunpack.c.l.b16 %v2331
    %v2488 = vunpack.c.h.b16 %v2331
    %v2489 = vunpack.c.l.b16 %v2332
    %v2490 = vunpack.c.h.b16 %v2332
    %v2491 = vunpack.c.l.b16 %v2333
    %v2492 = vunpack.c.h.b16 %v2333
    %v2493 = vunpack.c.l.b16 %v2334
    %v2494 = vunpack.c.h.b16 %v2334
    %v2495 = vunpack.c.l.b16 %v2335
    %v2496 = vunpack.c.h.b16 %v2335
    %v2497 = vunpack.c.l.b16 %v2336
    %v2498 = vunpack.c.h.b16 %v2336
    %v2499 = vunpack.c.l.b16 %v2337
    %v2500 = vunpack.c.h.b16 %v2337
    %v2501 = vunpack.c.l.b16 %v2338
    %v2502 = vunpack.c.h.b16 %v2338
    %v2503 = vunpack.c.l.b16 %v2339
    %v2504 = vunpack.c.h.b16 %v2339
    %v2505 = vunpack.c.l.b16 %v2340
    %v2506 = vunpack.c.h.b16 %v2340
    %v2507 = vunpack.c.l.b16 %v2341
    %v2508 = vunpack.c.h.b16 %v2341
    %v2509 = vunpack.c.l.b16 %v2342
    %v2510 = vunpack.c.h.b16 %v2342
    %v2511 = vunpack.c.l.b16 %v2343
    %v2512 = vunpack.c.h.b16 %v2343
    %v2513 = vunpack.c.l.b16 %v2344
    %v2514 = vunpack.c.h.b16 %v2344
    %v2515 = vunpack.c.l.b16 %v2345
    %v2516 = vunpack.c.h.b16 %v2345
    %v2517 = vunpack.c.l.b16 %v2346
    %v2518 = vunpack.c.h.b16 %v2346
    %v2519 = vunpack.c.l.b16 %v2347
    %v2520 = vunpack.c.h.b16 %v2347
    %v2521 = vunpack.c.l.b16 %v2348
    %v2522 = vunpack.c.h.b16 %v2348
    %v2523 = vunpack.c.l.b16 %v2349
    %v2524 = vunpack.c.h.b16 %v2349
    %v2525 = vunpack.c.l.b16 %v2350
    %v2526 = vunpack.c.h.b16 %v2350
    %v2527 = vunpack.c.l.b16 %v2351
    %v2528 = vunpack.c.h.b16 %v2351
    %v2529 = vunpack.c.l.b16 %v2352
    %v2530 = vunpack.c.h.b16 %v2352
    %v2531 = vunpack.c.l.b16 %v2353
    %v2532 = vunpack.c.h.b16 %v2353
    %v2533 = vunpack.c.l.b16 %v2354
    %v2534 = vunpack.c.h.b16 %v2354
    %v2535 = vunpack.c.l.b16 %v2355
    %v2536 = vunpack.c.h.b16 %v2355
    %v2537 = vunpack.c.l.b16 %v2356
    %v2538 = vunpack.c.h.b16 %v2356
    %v2539 = vunpack.c.l.b16 %v2357
    %v2540 = vunpack.c.h.b16 %v2357
    %v2541 = vunpack.c.l.b16 %v2358
    %v2542 = vunpack.c.h.b16 %v2358
    %v2543 = vunpack.c.l.b16 %v2359
    %v2544 = vunpack.c.h.b16 %v2359
    %v2545 = vunpack.c.l.b16 %v2360
    %v2546 = vunpack.c.h.b16 %v2360
    %v2547 = vunpack.c.l.b16 %v2361
    %v2548 = vunpack.c.h.b16 %v2361
    %v2549 = vunpack.c.l.b16 %v2362
    %v2550 = vunpack.c.h.b16 %v2362
    %v2551 = vunpack.c.l.b16 %v2363
    %v2552 = vunpack.c.h.b16 %v2363
    %v2553 = vunpack.c.l.b16 %v2364
    %v2554 = vunpack.c.h.b16 %v2364
    %v2555 = vunpack.c.l.b16 %v2365
    %v2556 = vunpack.c.h.b16 %v2365
    %v2557 = vunpack.c.l.b16 %v2366
    %v2558 = vunpack.c.h.b16 %v2366
    %v2559 = vunpack.c.l.b16 %v2367
    %v2560 = vunpack.c.h.b16 %v2367
    %v2561 = vpack.c.b16 %v2437, %v2433
    %v2562 = vpack.c.b16 %v2438, %v2434
    %v2563 = vpack.c.b16 %v2439, %v2435
    %v2564 = vpack.c.b16 %v2440, %v2436
    %v2565 = vpack.c.b16 %v2445, %v2441
    %v2566 = vpack.c.b16 %v2446, %v2442
    %v2567 = vpack.c.b16 %v2447, %v2443
    %v2568 = vpack.c.b16 %v2448, %v2444
    %v2569 = vpack.c.b16 %v2453, %v2449
    %v2570 = vpack.c.b16 %v2454, %v2450
    %v2571 = vpack.c.b16 %v2455, %v2451
    %v2572 = vpack.c.b16 %v2456, %v2452
    %v2573 = vpack.c.b16 %v2461, %v2457
    %v2574 = vpack.c.b16 %v2462, %v2458
    %v2575 = vpack.c.b16 %v2463, %v2459
    %v2576 = vpack.c.b16 %v2464, %v2460
    %v2577 = vpack.c.b16 %v2469, %v2465
    %v2578 = vpack.c.b16 %v2470, %v2466
    %v2579 = vpack.c.b16 %v2471, %v2467
    %v2580 = vpack.c.b16 %v2472, %v2468
    %v2581 = vpack.c.b16 %v2477, %v2473
    %v2582 = vpack.c.b16 %v2478, %v2474
    %v2583 = vpack.c.b16 %v2479, %v2475
    %v2584 = vpack.c.b16 %v2480, %v2476
    %v2585 = vpack.c.b16 %v2485, %v2481
    %v2586 = vpack.c.b16 %v2486, %v2482
    %v2587 = vpack.c.b16 %v2487, %v2483
    %v2588 = vpack.c.b16 %v2488, %v2484
    %v2589 = vpack.c.b16 %v2493, %v2489
    %v2590 = vpack.c.b16 %v2494, %v2490
    %v2591 = vpack.c.b16 %v2495, %v2491
    %v2592 = vpack.c.b16 %v2496, %v2492
    %v2593 = vpack.c.b16 %v2501, %v2497
    %v2594 = vpack.c.b16 %v2502, %v2498
    %v2595 = vpack.c.b16 %v2503, %v2499
    %v2596 = vpack.c.b16 %v2504, %v2500
    %v2597 = vpack.c.b16 %v2509, %v2505
    %v2598 = vpack.c.b16 %v2510, %v2506
    %v2599 = vpack.c.b16 %v2511, %v2507
    %v2600 = vpack.c.b16 %v2512, %v2508
    %v2601 = vpack.c.b16 %v2517, %v2513
    %v2602 = vpack.c.b16 %v2518, %v2514
    %v2603 = vpack.c.b16 %v2519, %v2515
    %v2604 = vpack.c.b16 %v2520, %v2516
    %v2605 = vpack.c.b16 %v2525, %v2521
    %v2606 = vpack.c.b16 %v2526, %v2522
    %v2607 = vpack.c.b16 %v2527, %v2523
    %v2608 = vpack.c.b16 %v2528, %v2524
    %v2609 = vpack.c.b16 %v2533, %v2529
    %v2610 = vpack.c.b16 %v2534, %v2530
    %v2611 = vpack.c.b16 %v2535, %v2531
    %v2612 = vpack.c.b16 %v2536, %v2532
    %v2613 = vpack.c.b16 %v2541, %v2537
    %v2614 = vpack.c.b16 %v2542, %v2538
    %v2615 = vpack.c.b16 %v2543, %v2539
    %v2616 = vpack.c.b16 %v2544, %v2540
    %v2617 = vpack.c.b16 %v2549, %v2545
    %v2618 = vpack.c.b16 %v2550, %v2546
    %v2619 = vpack.c.b16 %v2551, %v2547
    %v2620 = vpack.c.b16 %v2552, %v2548
    %v2621 = vpack.c.b16 %v2557, %v2553
    %v2622 = vpack.c.b16 %v2558, %v2554
    %v2623 = vpack.c.b16 %v2559, %v2555
    %v2624 = vpack.c.b16 %v2560, %v2556
    %v2690 = vperm.slane %v2368, 0
    %v2691 = vperm.slane %v2368, 1
    %v2692 = vperm.slane %v2368, 2
    %v2693 = vperm.slane %v2368, 3
    %2698 = vmatpush.bf16.msra.mxu0 %v2589
    %2699 = vmatpush.bf16.msra.mxu0 %v2585
    %2700 = vmatpush.bf16.msra.mxu0 %v2581
    %2701 = vmatpush.bf16.msra.mxu0 %v2577
    %2702 = vmatpush.bf16.msra.mxu0 %v2573
    %2703 = vmatpush.bf16.msra.mxu0 %v2569
    %2704 = vmatpush.bf16.msra.mxu0 %v2565
    %2705 = vmatpush.bf16.msra.mxu0 %v2561
    %2706 = vmatmul.bf16.gmra.mxu0 %v2302
    %v2707 = vpop.f32.mrf.mxu0
    %v2708 = vadd.f32 %v2690, %v2707
    %v2709 = vpop.f32.mrf.mxu0
    %2710 = vdwg.mxu0
    %2711 = vmatpush.bf16.msra.mxu0 %v2621
    %2712 = vmatpush.bf16.msra.mxu0 %v2617
    %2713 = vmatpush.bf16.msra.mxu0 %v2613
    %2714 = vmatpush.bf16.msra.mxu0 %v2609
    %2715 = vmatpush.bf16.msra.mxu0 %v2605
    %2716 = vmatpush.bf16.msra.mxu0 %v2601
    %2717 = vmatpush.bf16.msra.mxu0 %v2597
    %2718 = vmatpush.bf16.msra.mxu0 %v2593
    %2719 = vmatmul.bf16.gmra.mxu0 %v2303
    %v2720 = vpop.f32.mrf.mxu0
    %v2721 = vadd.f32 %v2708, %v2720
    %v2722 = vpop.f32.mrf.mxu0
    %2723 = vdwg.mxu0
    %2724 = vmatpush.bf16.msra.mxu0 %v2590
    %2725 = vmatpush.bf16.msra.mxu0 %v2586
    %2726 = vmatpush.bf16.msra.mxu0 %v2582
    %2727 = vmatpush.bf16.msra.mxu0 %v2578
    %2728 = vmatpush.bf16.msra.mxu0 %v2574
    %2729 = vmatpush.bf16.msra.mxu0 %v2570
    %2730 = vmatpush.bf16.msra.mxu0 %v2566
    %2731 = vmatpush.bf16.msra.mxu0 %v2562
    %2732 = vmatmul.bf16.gmra.mxu0 %v2302
    %v2733 = vpop.f32.mrf.mxu0
    %v2734 = vadd.f32 %v2691, %v2733
    %v2735 = vpop.f32.mrf.mxu0
    %2736 = vdwg.mxu0
    %2737 = vmatpush.bf16.msra.mxu0 %v2622
    %2738 = vmatpush.bf16.msra.mxu0 %v2618
    %2739 = vmatpush.bf16.msra.mxu0 %v2614
    %2740 = vmatpush.bf16.msra.mxu0 %v2610
    %2741 = vmatpush.bf16.msra.mxu0 %v2606
    %2742 = vmatpush.bf16.msra.mxu0 %v2602
    %2743 = vmatpush.bf16.msra.mxu0 %v2598
    %2744 = vmatpush.bf16.msra.mxu0 %v2594
    %2745 = vmatmul.bf16.gmra.mxu0 %v2303
    %v2746 = vpop.f32.mrf.mxu0
    %v2747 = vadd.f32 %v2734, %v2746
    %v2748 = vpop.f32.mrf.mxu0
    %2749 = vdwg.mxu0
    %2750 = vmatpush.bf16.msra.mxu0 %v2591
    %2751 = vmatpush.bf16.msra.mxu0 %v2587
    %2752 = vmatpush.bf16.msra.mxu0 %v2583
    %2753 = vmatpush.bf16.msra.mxu0 %v2579
    %2754 = vmatpush.bf16.msra.mxu0 %v2575
    %2755 = vmatpush.bf16.msra.mxu0 %v2571
    %2756 = vmatpush.bf16.msra.mxu0 %v2567
    %2757 = vmatpush.bf16.msra.mxu0 %v2563
    %2758 = vmatmul.bf16.gmra.mxu0 %v2302
    %v2759 = vpop.f32.mrf.mxu0
    %v2760 = vadd.f32 %v2692, %v2759
    %v2761 = vpop.f32.mrf.mxu0
    %2762 = vdwg.mxu0
    %2763 = vmatpush.bf16.msra.mxu0 %v2623
    %2764 = vmatpush.bf16.msra.mxu0 %v2619
    %2765 = vmatpush.bf16.msra.mxu0 %v2615
    %2766 = vmatpush.bf16.msra.mxu0 %v2611
    %2767 = vmatpush.bf16.msra.mxu0 %v2607
    %2768 = vmatpush.bf16.msra.mxu0 %v2603
    %2769 = vmatpush.bf16.msra.mxu0 %v2599
    %2770 = vmatpush.bf16.msra.mxu0 %v2595
    %2771 = vmatmul.bf16.gmra.mxu0 %v2303
    %v2772 = vpop.f32.mrf.mxu0
    %v2773 = vadd.f32 %v2760, %v2772
    %v2774 = vpop.f32.mrf.mxu0
    %2775 = vdwg.mxu0
    %2776 = vmatpush.bf16.msra.mxu0 %v2592
    %2777 = vmatpush.bf16.msra.mxu0 %v2588
    %2778 = vmatpush.bf16.msra.mxu0 %v2584
    %2779 = vmatpush.bf16.msra.mxu0 %v2580
    %2780 = vmatpush.bf16.msra.mxu0 %v2576
    %2781 = vmatpush.bf16.msra.mxu0 %v2572
    %2782 = vmatpush.bf16.msra.mxu0 %v2568
    %2783 = vmatpush.bf16.msra.mxu0 %v2564
    %2784 = vmatmul.bf16.gmra.mxu0 %v2302
    %v2785 = vpop.f32.mrf.mxu0
    %v2786 = vadd.f32 %v2693, %v2785
    %v2787 = vpop.f32.mrf.mxu0
    %2788 = vdwg.mxu0
    %2789 = vmatpush.bf16.msra.mxu0 %v2624
    %2790 = vmatpush.bf16.msra.mxu0 %v2620
    %2791 = vmatpush.bf16.msra.mxu0 %v2616
    %2792 = vmatpush.bf16.msra.mxu0 %v2612
    %2793 = vmatpush.bf16.msra.mxu0 %v2608
    %2794 = vmatpush.bf16.msra.mxu0 %v2604
    %2795 = vmatpush.bf16.msra.mxu0 %v2600
    %2796 = vmatpush.bf16.msra.mxu0 %v2596
    %2797 = vmatmul.bf16.gmra.mxu0 %v2303
    %v2798 = vpop.f32.mrf.mxu0
    %v2799 = vadd.f32 %v2786, %v2798
    %v2800 = vpop.f32.mrf.mxu0
    %2801 = vdwg.mxu0
    %v2802 = vxor.u32 %v2721, 2147483648
    %v2803 = vxor.u32 %v2747, 2147483648
    %v2804 = vmul.f32 %v2802, 1.442695
    %v2805 = vpow.pop %v2804
    %v2806 = vmul.f32 %v2803, 1.442695
    %v2807 = vpow.pop %v2806
    %v2808 = vadd.f32 %v2805, 1.0
    %v2809 = vadd.f32 %v2807, 1.0
    %v2810 = vrcp.pop %v2808
    %v2811 = vmul.f32 %v2808, %v2810
    %v2812 = vsub.f32 1.0, %v2811
    %v2813 = vmul.f32 %v2810, %v2812
    %v2814 = vadd.f32 %v2810, %v2813
    %vm2815 = vweird.f32 %v2808
    %vm2816 = vweird.f32 %v2810
    %vm2817 = vmor %vm2815, %vm2816
    %v2818 = vsel %vm2817, %v2810, %v2814
    %v2819 = vand.u32 2147483647, %v2808
    %vm2820 = vcmp.eq.f32.partialorder %v2819, 8.507059e+37
    %v2821 = vand.u32 %v2808, 2147483648
    %v2822 = vor.u32 1.1754944e-38, %v2821
    %v2823 = vsel %vm2820, %v2822, %v2818
    %v2824 = vmul.f32 1.0, %v2823
    %v2825 = vrcp.pop %v2809
    %v2826 = vmul.f32 %v2809, %v2825
    %v2827 = vsub.f32 1.0, %v2826
    %v2828 = vmul.f32 %v2825, %v2827
    %v2829 = vadd.f32 %v2825, %v2828
    %vm2830 = vweird.f32 %v2809
    %vm2831 = vweird.f32 %v2825
    %vm2832 = vmor %vm2830, %vm2831
    %v2833 = vsel %vm2832, %v2825, %v2829
    %v2834 = vand.u32 2147483647, %v2809
    %vm2835 = vcmp.eq.f32.partialorder %v2834, 8.507059e+37
    %v2836 = vand.u32 %v2809, 2147483648
    %v2837 = vor.u32 1.1754944e-38, %v2836
    %v2838 = vsel %vm2835, %v2837, %v2833
    %v2839 = vmul.f32 1.0, %v2838
    %v2840 = vmul.f32 %v2824, %v2799
    %v2841 = vadd.f32 %v2773, %v2840
    %v2842 = vtanh.pop %v2841
    %v2843 = vsub.f32 1.0, %v2839
    %v2844 = vmul.f32 %v2843, %v2842
    %v2845 = vmul.f32 %v2839, %v2296
    %v2846 = vadd.f32 %v2844, %v2845
    %2847 = vst [vmem:[#allocation2 + $0x4] sm:$0x1] %v2846
    %s2848 = sld [smem:[#allocation4 + $0x5]]
    %s2849 = scalar_lea.vmem [#allocation5], %s2848
    %v2850 = vld [vmem:[%s2849] sm:$0x1]
    %v2851 = vmax.f32 %v2850, 0.0
    %v2852 = vpack.c.bf16 %v2851, %v2851
    %v2853 = vpack.c.bf16 %v2846, %v2846
    %v2854 = vld [vmem:[#allocation8] sm:$0xff]
    %v2855 = vld [vmem:[#allocation8 + $0x8] sm:$0xff]
    %v2856 = vld [vmem:[#allocation8 + $0x10] sm:$0xff]
    %v2857 = vld [vmem:[#allocation8 + $0x18] sm:$0xff]
    %v2858 = vld [vmem:[#allocation8 + $0x20] sm:$0xff]
    %v2859 = vld [vmem:[#allocation8 + $0x28] sm:$0xff]
    %v2860 = vld [vmem:[#allocation8 + $0x30] sm:$0xff]
    %v2861 = vld [vmem:[#allocation8 + $0x38] sm:$0xff]
    %v2862 = vld [vmem:[#allocation8 + $0x40] sm:$0xff]
    %v2863 = vld [vmem:[#allocation8 + $0x48] sm:$0xff]
    %v2864 = vld [vmem:[#allocation8 + $0x50] sm:$0xff]
    %v2865 = vld [vmem:[#allocation8 + $0x58] sm:$0xff]
    %v2866 = vld [vmem:[#allocation8 + $0x60] sm:$0xff]
    %v2867 = vld [vmem:[#allocation8 + $0x68] sm:$0xff]
    %v2868 = vld [vmem:[#allocation8 + $0x70] sm:$0xff]
    %v2869 = vld [vmem:[#allocation8 + $0x78] sm:$0xff]
    %v2870 = vld [vmem:[#allocation8 + $0x80] sm:$0xff]
    %v2871 = vld [vmem:[#allocation8 + $0x88] sm:$0xff]
    %v2872 = vld [vmem:[#allocation8 + $0x90] sm:$0xff]
    %v2873 = vld [vmem:[#allocation8 + $0x98] sm:$0xff]
    %v2874 = vld [vmem:[#allocation8 + $0xa0] sm:$0xff]
    %v2875 = vld [vmem:[#allocation8 + $0xa8] sm:$0xff]
    %v2876 = vld [vmem:[#allocation8 + $0xb0] sm:$0xff]
    %v2877 = vld [vmem:[#allocation8 + $0xb8] sm:$0xff]
    %v2878 = vld [vmem:[#allocation8 + $0xc0] sm:$0xff]
    %v2879 = vld [vmem:[#allocation8 + $0xc8] sm:$0xff]
    %v2880 = vld [vmem:[#allocation8 + $0xd0] sm:$0xff]
    %v2881 = vld [vmem:[#allocation8 + $0xd8] sm:$0xff]
    %v2882 = vld [vmem:[#allocation8 + $0xe0] sm:$0xff]
    %v2883 = vld [vmem:[#allocation8 + $0xe8] sm:$0xff]
    %v2884 = vld [vmem:[#allocation8 + $0xf0] sm:$0xff]
    %v2885 = vld [vmem:[#allocation8 + $0xf8] sm:$0xff]
    %v2886 = vld [vmem:[#allocation8 + $0x100] sm:$0xff]
    %v2887 = vld [vmem:[#allocation8 + $0x108] sm:$0xff]
    %v2888 = vld [vmem:[#allocation8 + $0x110] sm:$0xff]
    %v2889 = vld [vmem:[#allocation8 + $0x118] sm:$0xff]
    %v2890 = vld [vmem:[#allocation8 + $0x120] sm:$0xff]
    %v2891 = vld [vmem:[#allocation8 + $0x128] sm:$0xff]
    %v2892 = vld [vmem:[#allocation8 + $0x130] sm:$0xff]
    %v2893 = vld [vmem:[#allocation8 + $0x138] sm:$0xff]
    %v2894 = vld [vmem:[#allocation8 + $0x140] sm:$0xff]
    %v2895 = vld [vmem:[#allocation8 + $0x148] sm:$0xff]
    %v2896 = vld [vmem:[#allocation8 + $0x150] sm:$0xff]
    %v2897 = vld [vmem:[#allocation8 + $0x158] sm:$0xff]
    %v2898 = vld [vmem:[#allocation8 + $0x160] sm:$0xff]
    %v2899 = vld [vmem:[#allocation8 + $0x168] sm:$0xff]
    %v2900 = vld [vmem:[#allocation8 + $0x170] sm:$0xff]
    %v2901 = vld [vmem:[#allocation8 + $0x178] sm:$0xff]
    %v2902 = vld [vmem:[#allocation8 + $0x180] sm:$0xff]
    %v2903 = vld [vmem:[#allocation8 + $0x188] sm:$0xff]
    %v2904 = vld [vmem:[#allocation8 + $0x190] sm:$0xff]
    %v2905 = vld [vmem:[#allocation8 + $0x198] sm:$0xff]
    %v2906 = vld [vmem:[#allocation8 + $0x1a0] sm:$0xff]
    %v2907 = vld [vmem:[#allocation8 + $0x1a8] sm:$0xff]
    %v2908 = vld [vmem:[#allocation8 + $0x1b0] sm:$0xff]
    %v2909 = vld [vmem:[#allocation8 + $0x1b8] sm:$0xff]
    %v2910 = vld [vmem:[#allocation8 + $0x1c0] sm:$0xff]
    %v2911 = vld [vmem:[#allocation8 + $0x1c8] sm:$0xff]
    %v2912 = vld [vmem:[#allocation8 + $0x1d0] sm:$0xff]
    %v2913 = vld [vmem:[#allocation8 + $0x1d8] sm:$0xff]
    %v2914 = vld [vmem:[#allocation8 + $0x1e0] sm:$0xff]
    %v2915 = vld [vmem:[#allocation8 + $0x1e8] sm:$0xff]
    %v2916 = vld [vmem:[#allocation8 + $0x1f0] sm:$0xff]
    %v2917 = vld [vmem:[#allocation8 + $0x1f8] sm:$0xff]
    %v2918 = vld [vmem:[#allocation10] sm:$0xf]
    %v2983 = vunpack.c.l.b16 %v2854
    %v2984 = vunpack.c.h.b16 %v2854
    %v2985 = vunpack.c.l.b16 %v2855
    %v2986 = vunpack.c.h.b16 %v2855
    %v2987 = vunpack.c.l.b16 %v2856
    %v2988 = vunpack.c.h.b16 %v2856
    %v2989 = vunpack.c.l.b16 %v2857
    %v2990 = vunpack.c.h.b16 %v2857
    %v2991 = vunpack.c.l.b16 %v2858
    %v2992 = vunpack.c.h.b16 %v2858
    %v2993 = vunpack.c.l.b16 %v2859
    %v2994 = vunpack.c.h.b16 %v2859
    %v2995 = vunpack.c.l.b16 %v2860
    %v2996 = vunpack.c.h.b16 %v2860
    %v2997 = vunpack.c.l.b16 %v2861
    %v2998 = vunpack.c.h.b16 %v2861
    %v2999 = vunpack.c.l.b16 %v2862
    %v3000 = vunpack.c.h.b16 %v2862
    %v3001 = vunpack.c.l.b16 %v2863
    %v3002 = vunpack.c.h.b16 %v2863
    %v3003 = vunpack.c.l.b16 %v2864
    %v3004 = vunpack.c.h.b16 %v2864
    %v3005 = vunpack.c.l.b16 %v2865
    %v3006 = vunpack.c.h.b16 %v2865
    %v3007 = vunpack.c.l.b16 %v2866
    %v3008 = vunpack.c.h.b16 %v2866
    %v3009 = vunpack.c.l.b16 %v2867
    %v3010 = vunpack.c.h.b16 %v2867
    %v3011 = vunpack.c.l.b16 %v2868
    %v3012 = vunpack.c.h.b16 %v2868
    %v3013 = vunpack.c.l.b16 %v2869
    %v3014 = vunpack.c.h.b16 %v2869
    %v3015 = vunpack.c.l.b16 %v2870
    %v3016 = vunpack.c.h.b16 %v2870
    %v3017 = vunpack.c.l.b16 %v2871
    %v3018 = vunpack.c.h.b16 %v2871
    %v3019 = vunpack.c.l.b16 %v2872
    %v3020 = vunpack.c.h.b16 %v2872
    %v3021 = vunpack.c.l.b16 %v2873
    %v3022 = vunpack.c.h.b16 %v2873
    %v3023 = vunpack.c.l.b16 %v2874
    %v3024 = vunpack.c.h.b16 %v2874
    %v3025 = vunpack.c.l.b16 %v2875
    %v3026 = vunpack.c.h.b16 %v2875
    %v3027 = vunpack.c.l.b16 %v2876
    %v3028 = vunpack.c.h.b16 %v2876
    %v3029 = vunpack.c.l.b16 %v2877
    %v3030 = vunpack.c.h.b16 %v2877
    %v3031 = vunpack.c.l.b16 %v2878
    %v3032 = vunpack.c.h.b16 %v2878
    %v3033 = vunpack.c.l.b16 %v2879
    %v3034 = vunpack.c.h.b16 %v2879
    %v3035 = vunpack.c.l.b16 %v2880
    %v3036 = vunpack.c.h.b16 %v2880
    %v3037 = vunpack.c.l.b16 %v2881
    %v3038 = vunpack.c.h.b16 %v2881
    %v3039 = vunpack.c.l.b16 %v2882
    %v3040 = vunpack.c.h.b16 %v2882
    %v3041 = vunpack.c.l.b16 %v2883
    %v3042 = vunpack.c.h.b16 %v2883
    %v3043 = vunpack.c.l.b16 %v2884
    %v3044 = vunpack.c.h.b16 %v2884
    %v3045 = vunpack.c.l.b16 %v2885
    %v3046 = vunpack.c.h.b16 %v2885
    %v3047 = vunpack.c.l.b16 %v2886
    %v3048 = vunpack.c.h.b16 %v2886
    %v3049 = vunpack.c.l.b16 %v2887
    %v3050 = vunpack.c.h.b16 %v2887
    %v3051 = vunpack.c.l.b16 %v2888
    %v3052 = vunpack.c.h.b16 %v2888
    %v3053 = vunpack.c.l.b16 %v2889
    %v3054 = vunpack.c.h.b16 %v2889
    %v3055 = vunpack.c.l.b16 %v2890
    %v3056 = vunpack.c.h.b16 %v2890
    %v3057 = vunpack.c.l.b16 %v2891
    %v3058 = vunpack.c.h.b16 %v2891
    %v3059 = vunpack.c.l.b16 %v2892
    %v3060 = vunpack.c.h.b16 %v2892
    %v3061 = vunpack.c.l.b16 %v2893
    %v3062 = vunpack.c.h.b16 %v2893
    %v3063 = vunpack.c.l.b16 %v2894
    %v3064 = vunpack.c.h.b16 %v2894
    %v3065 = vunpack.c.l.b16 %v2895
    %v3066 = vunpack.c.h.b16 %v2895
    %v3067 = vunpack.c.l.b16 %v2896
    %v3068 = vunpack.c.h.b16 %v2896
    %v3069 = vunpack.c.l.b16 %v2897
    %v3070 = vunpack.c.h.b16 %v2897
    %v3071 = vunpack.c.l.b16 %v2898
    %v3072 = vunpack.c.h.b16 %v2898
    %v3073 = vunpack.c.l.b16 %v2899
    %v3074 = vunpack.c.h.b16 %v2899
    %v3075 = vunpack.c.l.b16 %v2900
    %v3076 = vunpack.c.h.b16 %v2900
    %v3077 = vunpack.c.l.b16 %v2901
    %v3078 = vunpack.c.h.b16 %v2901
    %v3079 = vunpack.c.l.b16 %v2902
    %v3080 = vunpack.c.h.b16 %v2902
    %v3081 = vunpack.c.l.b16 %v2903
    %v3082 = vunpack.c.h.b16 %v2903
    %v3083 = vunpack.c.l.b16 %v2904
    %v3084 = vunpack.c.h.b16 %v2904
    %v3085 = vunpack.c.l.b16 %v2905
    %v3086 = vunpack.c.h.b16 %v2905
    %v3087 = vunpack.c.l.b16 %v2906
    %v3088 = vunpack.c.h.b16 %v2906
    %v3089 = vunpack.c.l.b16 %v2907
    %v3090 = vunpack.c.h.b16 %v2907
    %v3091 = vunpack.c.l.b16 %v2908
    %v3092 = vunpack.c.h.b16 %v2908
    %v3093 = vunpack.c.l.b16 %v2909
    %v3094 = vunpack.c.h.b16 %v2909
    %v3095 = vunpack.c.l.b16 %v2910
    %v3096 = vunpack.c.h.b16 %v2910
    %v3097 = vunpack.c.l.b16 %v2911
    %v3098 = vunpack.c.h.b16 %v2911
    %v3099 = vunpack.c.l.b16 %v2912
    %v3100 = vunpack.c.h.b16 %v2912
    %v3101 = vunpack.c.l.b16 %v2913
    %v3102 = vunpack.c.h.b16 %v2913
    %v3103 = vunpack.c.l.b16 %v2914
    %v3104 = vunpack.c.h.b16 %v2914
    %v3105 = vunpack.c.l.b16 %v2915
    %v3106 = vunpack.c.h.b16 %v2915
    %v3107 = vunpack.c.l.b16 %v2916
    %v3108 = vunpack.c.h.b16 %v2916
    %v3109 = vunpack.c.l.b16 %v2917
    %v3110 = vunpack.c.h.b16 %v2917
    %v3111 = vpack.c.b16 %v2987, %v2983
    %v3112 = vpack.c.b16 %v2988, %v2984
    %v3113 = vpack.c.b16 %v2989, %v2985
    %v3114 = vpack.c.b16 %v2990, %v2986
    %v3115 = vpack.c.b16 %v2995, %v2991
    %v3116 = vpack.c.b16 %v2996, %v2992
    %v3117 = vpack.c.b16 %v2997, %v2993
    %v3118 = vpack.c.b16 %v2998, %v2994
    %v3119 = vpack.c.b16 %v3003, %v2999
    %v3120 = vpack.c.b16 %v3004, %v3000
    %v3121 = vpack.c.b16 %v3005, %v3001
    %v3122 = vpack.c.b16 %v3006, %v3002
    %v3123 = vpack.c.b16 %v3011, %v3007
    %v3124 = vpack.c.b16 %v3012, %v3008
    %v3125 = vpack.c.b16 %v3013, %v3009
    %v3126 = vpack.c.b16 %v3014, %v3010
    %v3127 = vpack.c.b16 %v3019, %v3015
    %v3128 = vpack.c.b16 %v3020, %v3016
    %v3129 = vpack.c.b16 %v3021, %v3017
    %v3130 = vpack.c.b16 %v3022, %v3018
    %v3131 = vpack.c.b16 %v3027, %v3023
    %v3132 = vpack.c.b16 %v3028, %v3024
    %v3133 = vpack.c.b16 %v3029, %v3025
    %v3134 = vpack.c.b16 %v3030, %v3026
    %v3135 = vpack.c.b16 %v3035, %v3031
    %v3136 = vpack.c.b16 %v3036, %v3032
    %v3137 = vpack.c.b16 %v3037, %v3033
    %v3138 = vpack.c.b16 %v3038, %v3034
    %v3139 = vpack.c.b16 %v3043, %v3039
    %v3140 = vpack.c.b16 %v3044, %v3040
    %v3141 = vpack.c.b16 %v3045, %v3041
    %v3142 = vpack.c.b16 %v3046, %v3042
    %v3143 = vpack.c.b16 %v3051, %v3047
    %v3144 = vpack.c.b16 %v3052, %v3048
    %v3145 = vpack.c.b16 %v3053, %v3049
    %v3146 = vpack.c.b16 %v3054, %v3050
    %v3147 = vpack.c.b16 %v3059, %v3055
    %v3148 = vpack.c.b16 %v3060, %v3056
    %v3149 = vpack.c.b16 %v3061, %v3057
    %v3150 = vpack.c.b16 %v3062, %v3058
    %v3151 = vpack.c.b16 %v3067, %v3063
    %v3152 = vpack.c.b16 %v3068, %v3064
    %v3153 = vpack.c.b16 %v3069, %v3065
    %v3154 = vpack.c.b16 %v3070, %v3066
    %v3155 = vpack.c.b16 %v3075, %v3071
    %v3156 = vpack.c.b16 %v3076, %v3072
    %v3157 = vpack.c.b16 %v3077, %v3073
    %v3158 = vpack.c.b16 %v3078, %v3074
    %v3159 = vpack.c.b16 %v3083, %v3079
    %v3160 = vpack.c.b16 %v3084, %v3080
    %v3161 = vpack.c.b16 %v3085, %v3081
    %v3162 = vpack.c.b16 %v3086, %v3082
    %v3163 = vpack.c.b16 %v3091, %v3087
    %v3164 = vpack.c.b16 %v3092, %v3088
    %v3165 = vpack.c.b16 %v3093, %v3089
    %v3166 = vpack.c.b16 %v3094, %v3090
    %v3167 = vpack.c.b16 %v3099, %v3095
    %v3168 = vpack.c.b16 %v3100, %v3096
    %v3169 = vpack.c.b16 %v3101, %v3097
    %v3170 = vpack.c.b16 %v3102, %v3098
    %v3171 = vpack.c.b16 %v3107, %v3103
    %v3172 = vpack.c.b16 %v3108, %v3104
    %v3173 = vpack.c.b16 %v3109, %v3105
    %v3174 = vpack.c.b16 %v3110, %v3106
    %v3240 = vperm.slane %v2918, 0
    %v3241 = vperm.slane %v2918, 1
    %v3242 = vperm.slane %v2918, 2
    %v3243 = vperm.slane %v2918, 3
    %3248 = vmatpush.bf16.msra.mxu0 %v3139
    %3249 = vmatpush.bf16.msra.mxu0 %v3135
    %3250 = vmatpush.bf16.msra.mxu0 %v3131
    %3251 = vmatpush.bf16.msra.mxu0 %v3127
    %3252 = vmatpush.bf16.msra.mxu0 %v3123
    %3253 = vmatpush.bf16.msra.mxu0 %v3119
    %3254 = vmatpush.bf16.msra.mxu0 %v3115
    %3255 = vmatpush.bf16.msra.mxu0 %v3111
    %3256 = vmatmul.bf16.gmra.mxu0 %v2852
    %v3257 = vpop.f32.mrf.mxu0
    %v3258 = vadd.f32 %v3240, %v3257
    %v3259 = vpop.f32.mrf.mxu0
    %3260 = vdwg.mxu0
    %3261 = vmatpush.bf16.msra.mxu0 %v3171
    %3262 = vmatpush.bf16.msra.mxu0 %v3167
    %3263 = vmatpush.bf16.msra.mxu0 %v3163
    %3264 = vmatpush.bf16.msra.mxu0 %v3159
    %3265 = vmatpush.bf16.msra.mxu0 %v3155
    %3266 = vmatpush.bf16.msra.mxu0 %v3151
    %3267 = vmatpush.bf16.msra.mxu0 %v3147
    %3268 = vmatpush.bf16.msra.mxu0 %v3143
    %3269 = vmatmul.bf16.gmra.mxu0 %v2853
    %v3270 = vpop.f32.mrf.mxu0
    %v3271 = vadd.f32 %v3258, %v3270
    %v3272 = vpop.f32.mrf.mxu0
    %3273 = vdwg.mxu0
    %3274 = vmatpush.bf16.msra.mxu0 %v3140
    %3275 = vmatpush.bf16.msra.mxu0 %v3136
    %3276 = vmatpush.bf16.msra.mxu0 %v3132
    %3277 = vmatpush.bf16.msra.mxu0 %v3128
    %3278 = vmatpush.bf16.msra.mxu0 %v3124
    %3279 = vmatpush.bf16.msra.mxu0 %v3120
    %3280 = vmatpush.bf16.msra.mxu0 %v3116
    %3281 = vmatpush.bf16.msra.mxu0 %v3112
    %3282 = vmatmul.bf16.gmra.mxu0 %v2852
    %v3283 = vpop.f32.mrf.mxu0
    %v3284 = vadd.f32 %v3241, %v3283
    %v3285 = vpop.f32.mrf.mxu0
    %3286 = vdwg.mxu0
    %3287 = vmatpush.bf16.msra.mxu0 %v3172
    %3288 = vmatpush.bf16.msra.mxu0 %v3168
    %3289 = vmatpush.bf16.msra.mxu0 %v3164
    %3290 = vmatpush.bf16.msra.mxu0 %v3160
    %3291 = vmatpush.bf16.msra.mxu0 %v3156
    %3292 = vmatpush.bf16.msra.mxu0 %v3152
    %3293 = vmatpush.bf16.msra.mxu0 %v3148
    %3294 = vmatpush.bf16.msra.mxu0 %v3144
    %3295 = vmatmul.bf16.gmra.mxu0 %v2853
    %v3296 = vpop.f32.mrf.mxu0
    %v3297 = vadd.f32 %v3284, %v3296
    %v3298 = vpop.f32.mrf.mxu0
    %3299 = vdwg.mxu0
    %3300 = vmatpush.bf16.msra.mxu0 %v3141
    %3301 = vmatpush.bf16.msra.mxu0 %v3137
    %3302 = vmatpush.bf16.msra.mxu0 %v3133
    %3303 = vmatpush.bf16.msra.mxu0 %v3129
    %3304 = vmatpush.bf16.msra.mxu0 %v3125
    %3305 = vmatpush.bf16.msra.mxu0 %v3121
    %3306 = vmatpush.bf16.msra.mxu0 %v3117
    %3307 = vmatpush.bf16.msra.mxu0 %v3113
    %3308 = vmatmul.bf16.gmra.mxu0 %v2852
    %v3309 = vpop.f32.mrf.mxu0
    %v3310 = vadd.f32 %v3242, %v3309
    %v3311 = vpop.f32.mrf.mxu0
    %3312 = vdwg.mxu0
    %3313 = vmatpush.bf16.msra.mxu0 %v3173
    %3314 = vmatpush.bf16.msra.mxu0 %v3169
    %3315 = vmatpush.bf16.msra.mxu0 %v3165
    %3316 = vmatpush.bf16.msra.mxu0 %v3161
    %3317 = vmatpush.bf16.msra.mxu0 %v3157
    %3318 = vmatpush.bf16.msra.mxu0 %v3153
    %3319 = vmatpush.bf16.msra.mxu0 %v3149
    %3320 = vmatpush.bf16.msra.mxu0 %v3145
    %3321 = vmatmul.bf16.gmra.mxu0 %v2853
    %v3322 = vpop.f32.mrf.mxu0
    %v3323 = vadd.f32 %v3310, %v3322
    %v3324 = vpop.f32.mrf.mxu0
    %3325 = vdwg.mxu0
    %3326 = vmatpush.bf16.msra.mxu0 %v3142
    %3327 = vmatpush.bf16.msra.mxu0 %v3138
    %3328 = vmatpush.bf16.msra.mxu0 %v3134
    %3329 = vmatpush.bf16.msra.mxu0 %v3130
    %3330 = vmatpush.bf16.msra.mxu0 %v3126
    %3331 = vmatpush.bf16.msra.mxu0 %v3122
    %3332 = vmatpush.bf16.msra.mxu0 %v3118
    %3333 = vmatpush.bf16.msra.mxu0 %v3114
    %3334 = vmatmul.bf16.gmra.mxu0 %v2852
    %v3335 = vpop.f32.mrf.mxu0
    %v3336 = vadd.f32 %v3243, %v3335
    %v3337 = vpop.f32.mrf.mxu0
    %3338 = vdwg.mxu0
    %3339 = vmatpush.bf16.msra.mxu0 %v3174
    %3340 = vmatpush.bf16.msra.mxu0 %v3170
    %3341 = vmatpush.bf16.msra.mxu0 %v3166
    %3342 = vmatpush.bf16.msra.mxu0 %v3162
    %3343 = vmatpush.bf16.msra.mxu0 %v3158
    %3344 = vmatpush.bf16.msra.mxu0 %v3154
    %3345 = vmatpush.bf16.msra.mxu0 %v3150
    %3346 = vmatpush.bf16.msra.mxu0 %v3146
    %3347 = vmatmul.bf16.gmra.mxu0 %v2853
    %v3348 = vpop.f32.mrf.mxu0
    %v3349 = vadd.f32 %v3336, %v3348
    %v3350 = vpop.f32.mrf.mxu0
    %3351 = vdwg.mxu0
    %v3352 = vxor.u32 %v3271, 2147483648
    %v3353 = vxor.u32 %v3297, 2147483648
    %v3354 = vmul.f32 %v3352, 1.442695
    %v3355 = vpow.pop %v3354
    %v3356 = vmul.f32 %v3353, 1.442695
    %v3357 = vpow.pop %v3356
    %v3358 = vadd.f32 %v3355, 1.0
    %v3359 = vadd.f32 %v3357, 1.0
    %v3360 = vrcp.pop %v3358
    %v3361 = vmul.f32 %v3358, %v3360
    %v3362 = vsub.f32 1.0, %v3361
    %v3363 = vmul.f32 %v3360, %v3362
    %v3364 = vadd.f32 %v3360, %v3363
    %vm3365 = vweird.f32 %v3358
    %vm3366 = vweird.f32 %v3360
    %vm3367 = vmor %vm3365, %vm3366
    %v3368 = vsel %vm3367, %v3360, %v3364
    %v3369 = vand.u32 2147483647, %v3358
    %vm3370 = vcmp.eq.f32.partialorder %v3369, 8.507059e+37
    %v3371 = vand.u32 %v3358, 2147483648
    %v3372 = vor.u32 1.1754944e-38, %v3371
    %v3373 = vsel %vm3370, %v3372, %v3368
    %v3374 = vmul.f32 1.0, %v3373
    %v3375 = vrcp.pop %v3359
    %v3376 = vmul.f32 %v3359, %v3375
    %v3377 = vsub.f32 1.0, %v3376
    %v3378 = vmul.f32 %v3375, %v3377
    %v3379 = vadd.f32 %v3375, %v3378
    %vm3380 = vweird.f32 %v3359
    %vm3381 = vweird.f32 %v3375
    %vm3382 = vmor %vm3380, %vm3381
    %v3383 = vsel %vm3382, %v3375, %v3379
    %v3384 = vand.u32 2147483647, %v3359
    %vm3385 = vcmp.eq.f32.partialorder %v3384, 8.507059e+37
    %v3386 = vand.u32 %v3359, 2147483648
    %v3387 = vor.u32 1.1754944e-38, %v3386
    %v3388 = vsel %vm3385, %v3387, %v3383
    %v3389 = vmul.f32 1.0, %v3388
    %v3390 = vmul.f32 %v3374, %v3349
    %v3391 = vadd.f32 %v3323, %v3390
    %v3392 = vtanh.pop %v3391
    %v3393 = vsub.f32 1.0, %v3389
    %v3394 = vmul.f32 %v3393, %v3392
    %v3395 = vmul.f32 %v3389, %v2846
    %v3396 = vadd.f32 %v3394, %v3395
    %3397 = vst [vmem:[#allocation2 + $0x5] sm:$0x1] %v3396
    %s3398 = sld [smem:[#allocation4 + $0x6]]
    %s3399 = scalar_lea.vmem [#allocation5], %s3398
    %v3400 = vld [vmem:[%s3399] sm:$0x1]
    %v3401 = vmax.f32 %v3400, 0.0
    %v3402 = vpack.c.bf16 %v3401, %v3401
    %v3403 = vpack.c.bf16 %v3396, %v3396
    %v3404 = vld [vmem:[#allocation8] sm:$0xff]
    %v3405 = vld [vmem:[#allocation8 + $0x8] sm:$0xff]
    %v3406 = vld [vmem:[#allocation8 + $0x10] sm:$0xff]
    %v3407 = vld [vmem:[#allocation8 + $0x18] sm:$0xff]
    %v3408 = vld [vmem:[#allocation8 + $0x20] sm:$0xff]
    %v3409 = vld [vmem:[#allocation8 + $0x28] sm:$0xff]
    %v3410 = vld [vmem:[#allocation8 + $0x30] sm:$0xff]
    %v3411 = vld [vmem:[#allocation8 + $0x38] sm:$0xff]
    %v3412 = vld [vmem:[#allocation8 + $0x40] sm:$0xff]
    %v3413 = vld [vmem:[#allocation8 + $0x48] sm:$0xff]
    %v3414 = vld [vmem:[#allocation8 + $0x50] sm:$0xff]
    %v3415 = vld [vmem:[#allocation8 + $0x58] sm:$0xff]
    %v3416 = vld [vmem:[#allocation8 + $0x60] sm:$0xff]
    %v3417 = vld [vmem:[#allocation8 + $0x68] sm:$0xff]
    %v3418 = vld [vmem:[#allocation8 + $0x70] sm:$0xff]
    %v3419 = vld [vmem:[#allocation8 + $0x78] sm:$0xff]
    %v3420 = vld [vmem:[#allocation8 + $0x80] sm:$0xff]
    %v3421 = vld [vmem:[#allocation8 + $0x88] sm:$0xff]
    %v3422 = vld [vmem:[#allocation8 + $0x90] sm:$0xff]
    %v3423 = vld [vmem:[#allocation8 + $0x98] sm:$0xff]
    %v3424 = vld [vmem:[#allocation8 + $0xa0] sm:$0xff]
    %v3425 = vld [vmem:[#allocation8 + $0xa8] sm:$0xff]
    %v3426 = vld [vmem:[#allocation8 + $0xb0] sm:$0xff]
    %v3427 = vld [vmem:[#allocation8 + $0xb8] sm:$0xff]
    %v3428 = vld [vmem:[#allocation8 + $0xc0] sm:$0xff]
    %v3429 = vld [vmem:[#allocation8 + $0xc8] sm:$0xff]
    %v3430 = vld [vmem:[#allocation8 + $0xd0] sm:$0xff]
    %v3431 = vld [vmem:[#allocation8 + $0xd8] sm:$0xff]
    %v3432 = vld [vmem:[#allocation8 + $0xe0] sm:$0xff]
    %v3433 = vld [vmem:[#allocation8 + $0xe8] sm:$0xff]
    %v3434 = vld [vmem:[#allocation8 + $0xf0] sm:$0xff]
    %v3435 = vld [vmem:[#allocation8 + $0xf8] sm:$0xff]
    %v3436 = vld [vmem:[#allocation8 + $0x100] sm:$0xff]
    %v3437 = vld [vmem:[#allocation8 + $0x108] sm:$0xff]
    %v3438 = vld [vmem:[#allocation8 + $0x110] sm:$0xff]
    %v3439 = vld [vmem:[#allocation8 + $0x118] sm:$0xff]
    %v3440 = vld [vmem:[#allocation8 + $0x120] sm:$0xff]
    %v3441 = vld [vmem:[#allocation8 + $0x128] sm:$0xff]
    %v3442 = vld [vmem:[#allocation8 + $0x130] sm:$0xff]
    %v3443 = vld [vmem:[#allocation8 + $0x138] sm:$0xff]
    %v3444 = vld [vmem:[#allocation8 + $0x140] sm:$0xff]
    %v3445 = vld [vmem:[#allocation8 + $0x148] sm:$0xff]
    %v3446 = vld [vmem:[#allocation8 + $0x150] sm:$0xff]
    %v3447 = vld [vmem:[#allocation8 + $0x158] sm:$0xff]
    %v3448 = vld [vmem:[#allocation8 + $0x160] sm:$0xff]
    %v3449 = vld [vmem:[#allocation8 + $0x168] sm:$0xff]
    %v3450 = vld [vmem:[#allocation8 + $0x170] sm:$0xff]
    %v3451 = vld [vmem:[#allocation8 + $0x178] sm:$0xff]
    %v3452 = vld [vmem:[#allocation8 + $0x180] sm:$0xff]
    %v3453 = vld [vmem:[#allocation8 + $0x188] sm:$0xff]
    %v3454 = vld [vmem:[#allocation8 + $0x190] sm:$0xff]
    %v3455 = vld [vmem:[#allocation8 + $0x198] sm:$0xff]
    %v3456 = vld [vmem:[#allocation8 + $0x1a0] sm:$0xff]
    %v3457 = vld [vmem:[#allocation8 + $0x1a8] sm:$0xff]
    %v3458 = vld [vmem:[#allocation8 + $0x1b0] sm:$0xff]
    %v3459 = vld [vmem:[#allocation8 + $0x1b8] sm:$0xff]
    %v3460 = vld [vmem:[#allocation8 + $0x1c0] sm:$0xff]
    %v3461 = vld [vmem:[#allocation8 + $0x1c8] sm:$0xff]
    %v3462 = vld [vmem:[#allocation8 + $0x1d0] sm:$0xff]
    %v3463 = vld [vmem:[#allocation8 + $0x1d8] sm:$0xff]
    %v3464 = vld [vmem:[#allocation8 + $0x1e0] sm:$0xff]
    %v3465 = vld [vmem:[#allocation8 + $0x1e8] sm:$0xff]
    %v3466 = vld [vmem:[#allocation8 + $0x1f0] sm:$0xff]
    %v3467 = vld [vmem:[#allocation8 + $0x1f8] sm:$0xff]
    %v3468 = vld [vmem:[#allocation10] sm:$0xf]
    %v3533 = vunpack.c.l.b16 %v3404
    %v3534 = vunpack.c.h.b16 %v3404
    %v3535 = vunpack.c.l.b16 %v3405
    %v3536 = vunpack.c.h.b16 %v3405
    %v3537 = vunpack.c.l.b16 %v3406
    %v3538 = vunpack.c.h.b16 %v3406
    %v3539 = vunpack.c.l.b16 %v3407
    %v3540 = vunpack.c.h.b16 %v3407
    %v3541 = vunpack.c.l.b16 %v3408
    %v3542 = vunpack.c.h.b16 %v3408
    %v3543 = vunpack.c.l.b16 %v3409
    %v3544 = vunpack.c.h.b16 %v3409
    %v3545 = vunpack.c.l.b16 %v3410
    %v3546 = vunpack.c.h.b16 %v3410
    %v3547 = vunpack.c.l.b16 %v3411
    %v3548 = vunpack.c.h.b16 %v3411
    %v3549 = vunpack.c.l.b16 %v3412
    %v3550 = vunpack.c.h.b16 %v3412
    %v3551 = vunpack.c.l.b16 %v3413
    %v3552 = vunpack.c.h.b16 %v3413
    %v3553 = vunpack.c.l.b16 %v3414
    %v3554 = vunpack.c.h.b16 %v3414
    %v3555 = vunpack.c.l.b16 %v3415
    %v3556 = vunpack.c.h.b16 %v3415
    %v3557 = vunpack.c.l.b16 %v3416
    %v3558 = vunpack.c.h.b16 %v3416
    %v3559 = vunpack.c.l.b16 %v3417
    %v3560 = vunpack.c.h.b16 %v3417
    %v3561 = vunpack.c.l.b16 %v3418
    %v3562 = vunpack.c.h.b16 %v3418
    %v3563 = vunpack.c.l.b16 %v3419
    %v3564 = vunpack.c.h.b16 %v3419
    %v3565 = vunpack.c.l.b16 %v3420
    %v3566 = vunpack.c.h.b16 %v3420
    %v3567 = vunpack.c.l.b16 %v3421
    %v3568 = vunpack.c.h.b16 %v3421
    %v3569 = vunpack.c.l.b16 %v3422
    %v3570 = vunpack.c.h.b16 %v3422
    %v3571 = vunpack.c.l.b16 %v3423
    %v3572 = vunpack.c.h.b16 %v3423
    %v3573 = vunpack.c.l.b16 %v3424
    %v3574 = vunpack.c.h.b16 %v3424
    %v3575 = vunpack.c.l.b16 %v3425
    %v3576 = vunpack.c.h.b16 %v3425
    %v3577 = vunpack.c.l.b16 %v3426
    %v3578 = vunpack.c.h.b16 %v3426
    %v3579 = vunpack.c.l.b16 %v3427
    %v3580 = vunpack.c.h.b16 %v3427
    %v3581 = vunpack.c.l.b16 %v3428
    %v3582 = vunpack.c.h.b16 %v3428
    %v3583 = vunpack.c.l.b16 %v3429
    %v3584 = vunpack.c.h.b16 %v3429
    %v3585 = vunpack.c.l.b16 %v3430
    %v3586 = vunpack.c.h.b16 %v3430
    %v3587 = vunpack.c.l.b16 %v3431
    %v3588 = vunpack.c.h.b16 %v3431
    %v3589 = vunpack.c.l.b16 %v3432
    %v3590 = vunpack.c.h.b16 %v3432
    %v3591 = vunpack.c.l.b16 %v3433
    %v3592 = vunpack.c.h.b16 %v3433
    %v3593 = vunpack.c.l.b16 %v3434
    %v3594 = vunpack.c.h.b16 %v3434
    %v3595 = vunpack.c.l.b16 %v3435
    %v3596 = vunpack.c.h.b16 %v3435
    %v3597 = vunpack.c.l.b16 %v3436
    %v3598 = vunpack.c.h.b16 %v3436
    %v3599 = vunpack.c.l.b16 %v3437
    %v3600 = vunpack.c.h.b16 %v3437
    %v3601 = vunpack.c.l.b16 %v3438
    %v3602 = vunpack.c.h.b16 %v3438
    %v3603 = vunpack.c.l.b16 %v3439
    %v3604 = vunpack.c.h.b16 %v3439
    %v3605 = vunpack.c.l.b16 %v3440
    %v3606 = vunpack.c.h.b16 %v3440
    %v3607 = vunpack.c.l.b16 %v3441
    %v3608 = vunpack.c.h.b16 %v3441
    %v3609 = vunpack.c.l.b16 %v3442
    %v3610 = vunpack.c.h.b16 %v3442
    %v3611 = vunpack.c.l.b16 %v3443
    %v3612 = vunpack.c.h.b16 %v3443
    %v3613 = vunpack.c.l.b16 %v3444
    %v3614 = vunpack.c.h.b16 %v3444
    %v3615 = vunpack.c.l.b16 %v3445
    %v3616 = vunpack.c.h.b16 %v3445
    %v3617 = vunpack.c.l.b16 %v3446
    %v3618 = vunpack.c.h.b16 %v3446
    %v3619 = vunpack.c.l.b16 %v3447
    %v3620 = vunpack.c.h.b16 %v3447
    %v3621 = vunpack.c.l.b16 %v3448
    %v3622 = vunpack.c.h.b16 %v3448
    %v3623 = vunpack.c.l.b16 %v3449
    %v3624 = vunpack.c.h.b16 %v3449
    %v3625 = vunpack.c.l.b16 %v3450
    %v3626 = vunpack.c.h.b16 %v3450
    %v3627 = vunpack.c.l.b16 %v3451
    %v3628 = vunpack.c.h.b16 %v3451
    %v3629 = vunpack.c.l.b16 %v3452
    %v3630 = vunpack.c.h.b16 %v3452
    %v3631 = vunpack.c.l.b16 %v3453
    %v3632 = vunpack.c.h.b16 %v3453
    %v3633 = vunpack.c.l.b16 %v3454
    %v3634 = vunpack.c.h.b16 %v3454
    %v3635 = vunpack.c.l.b16 %v3455
    %v3636 = vunpack.c.h.b16 %v3455
    %v3637 = vunpack.c.l.b16 %v3456
    %v3638 = vunpack.c.h.b16 %v3456
    %v3639 = vunpack.c.l.b16 %v3457
    %v3640 = vunpack.c.h.b16 %v3457
    %v3641 = vunpack.c.l.b16 %v3458
    %v3642 = vunpack.c.h.b16 %v3458
    %v3643 = vunpack.c.l.b16 %v3459
    %v3644 = vunpack.c.h.b16 %v3459
    %v3645 = vunpack.c.l.b16 %v3460
    %v3646 = vunpack.c.h.b16 %v3460
    %v3647 = vunpack.c.l.b16 %v3461
    %v3648 = vunpack.c.h.b16 %v3461
    %v3649 = vunpack.c.l.b16 %v3462
    %v3650 = vunpack.c.h.b16 %v3462
    %v3651 = vunpack.c.l.b16 %v3463
    %v3652 = vunpack.c.h.b16 %v3463
    %v3653 = vunpack.c.l.b16 %v3464
    %v3654 = vunpack.c.h.b16 %v3464
    %v3655 = vunpack.c.l.b16 %v3465
    %v3656 = vunpack.c.h.b16 %v3465
    %v3657 = vunpack.c.l.b16 %v3466
    %v3658 = vunpack.c.h.b16 %v3466
    %v3659 = vunpack.c.l.b16 %v3467
    %v3660 = vunpack.c.h.b16 %v3467
    %v3661 = vpack.c.b16 %v3537, %v3533
    %v3662 = vpack.c.b16 %v3538, %v3534
    %v3663 = vpack.c.b16 %v3539, %v3535
    %v3664 = vpack.c.b16 %v3540, %v3536
    %v3665 = vpack.c.b16 %v3545, %v3541
    %v3666 = vpack.c.b16 %v3546, %v3542
    %v3667 = vpack.c.b16 %v3547, %v3543
    %v3668 = vpack.c.b16 %v3548, %v3544
    %v3669 = vpack.c.b16 %v3553, %v3549
    %v3670 = vpack.c.b16 %v3554, %v3550
    %v3671 = vpack.c.b16 %v3555, %v3551
    %v3672 = vpack.c.b16 %v3556, %v3552
    %v3673 = vpack.c.b16 %v3561, %v3557
    %v3674 = vpack.c.b16 %v3562, %v3558
    %v3675 = vpack.c.b16 %v3563, %v3559
    %v3676 = vpack.c.b16 %v3564, %v3560
    %v3677 = vpack.c.b16 %v3569, %v3565
    %v3678 = vpack.c.b16 %v3570, %v3566
    %v3679 = vpack.c.b16 %v3571, %v3567
    %v3680 = vpack.c.b16 %v3572, %v3568
    %v3681 = vpack.c.b16 %v3577, %v3573
    %v3682 = vpack.c.b16 %v3578, %v3574
    %v3683 = vpack.c.b16 %v3579, %v3575
    %v3684 = vpack.c.b16 %v3580, %v3576
    %v3685 = vpack.c.b16 %v3585, %v3581
    %v3686 = vpack.c.b16 %v3586, %v3582
    %v3687 = vpack.c.b16 %v3587, %v3583
    %v3688 = vpack.c.b16 %v3588, %v3584
    %v3689 = vpack.c.b16 %v3593, %v3589
    %v3690 = vpack.c.b16 %v3594, %v3590
    %v3691 = vpack.c.b16 %v3595, %v3591
    %v3692 = vpack.c.b16 %v3596, %v3592
    %v3693 = vpack.c.b16 %v3601, %v3597
    %v3694 = vpack.c.b16 %v3602, %v3598
    %v3695 = vpack.c.b16 %v3603, %v3599
    %v3696 = vpack.c.b16 %v3604, %v3600
    %v3697 = vpack.c.b16 %v3609, %v3605
    %v3698 = vpack.c.b16 %v3610, %v3606
    %v3699 = vpack.c.b16 %v3611, %v3607
    %v3700 = vpack.c.b16 %v3612, %v3608
    %v3701 = vpack.c.b16 %v3617, %v3613
    %v3702 = vpack.c.b16 %v3618, %v3614
    %v3703 = vpack.c.b16 %v3619, %v3615
    %v3704 = vpack.c.b16 %v3620, %v3616
    %v3705 = vpack.c.b16 %v3625, %v3621
    %v3706 = vpack.c.b16 %v3626, %v3622
    %v3707 = vpack.c.b16 %v3627, %v3623
    %v3708 = vpack.c.b16 %v3628, %v3624
    %v3709 = vpack.c.b16 %v3633, %v3629
    %v3710 = vpack.c.b16 %v3634, %v3630
    %v3711 = vpack.c.b16 %v3635, %v3631
    %v3712 = vpack.c.b16 %v3636, %v3632
    %v3713 = vpack.c.b16 %v3641, %v3637
    %v3714 = vpack.c.b16 %v3642, %v3638
    %v3715 = vpack.c.b16 %v3643, %v3639
    %v3716 = vpack.c.b16 %v3644, %v3640
    %v3717 = vpack.c.b16 %v3649, %v3645
    %v3718 = vpack.c.b16 %v3650, %v3646
    %v3719 = vpack.c.b16 %v3651, %v3647
    %v3720 = vpack.c.b16 %v3652, %v3648
    %v3721 = vpack.c.b16 %v3657, %v3653
    %v3722 = vpack.c.b16 %v3658, %v3654
    %v3723 = vpack.c.b16 %v3659, %v3655
    %v3724 = vpack.c.b16 %v3660, %v3656
    %v3790 = vperm.slane %v3468, 0
    %v3791 = vperm.slane %v3468, 1
    %v3792 = vperm.slane %v3468, 2
    %v3793 = vperm.slane %v3468, 3
    %3798 = vmatpush.bf16.msra.mxu0 %v3689
    %3799 = vmatpush.bf16.msra.mxu0 %v3685
    %3800 = vmatpush.bf16.msra.mxu0 %v3681
    %3801 = vmatpush.bf16.msra.mxu0 %v3677
    %3802 = vmatpush.bf16.msra.mxu0 %v3673
    %3803 = vmatpush.bf16.msra.mxu0 %v3669
    %3804 = vmatpush.bf16.msra.mxu0 %v3665
    %3805 = vmatpush.bf16.msra.mxu0 %v3661
    %3806 = vmatmul.bf16.gmra.mxu0 %v3402
    %v3807 = vpop.f32.mrf.mxu0
    %v3808 = vadd.f32 %v3790, %v3807
    %v3809 = vpop.f32.mrf.mxu0
    %3810 = vdwg.mxu0
    %3811 = vmatpush.bf16.msra.mxu0 %v3721
    %3812 = vmatpush.bf16.msra.mxu0 %v3717
    %3813 = vmatpush.bf16.msra.mxu0 %v3713
    %3814 = vmatpush.bf16.msra.mxu0 %v3709
    %3815 = vmatpush.bf16.msra.mxu0 %v3705
    %3816 = vmatpush.bf16.msra.mxu0 %v3701
    %3817 = vmatpush.bf16.msra.mxu0 %v3697
    %3818 = vmatpush.bf16.msra.mxu0 %v3693
    %3819 = vmatmul.bf16.gmra.mxu0 %v3403
    %v3820 = vpop.f32.mrf.mxu0
    %v3821 = vadd.f32 %v3808, %v3820
    %v3822 = vpop.f32.mrf.mxu0
    %3823 = vdwg.mxu0
    %3824 = vmatpush.bf16.msra.mxu0 %v3690
    %3825 = vmatpush.bf16.msra.mxu0 %v3686
    %3826 = vmatpush.bf16.msra.mxu0 %v3682
    %3827 = vmatpush.bf16.msra.mxu0 %v3678
    %3828 = vmatpush.bf16.msra.mxu0 %v3674
    %3829 = vmatpush.bf16.msra.mxu0 %v3670
    %3830 = vmatpush.bf16.msra.mxu0 %v3666
    %3831 = vmatpush.bf16.msra.mxu0 %v3662
    %3832 = vmatmul.bf16.gmra.mxu0 %v3402
    %v3833 = vpop.f32.mrf.mxu0
    %v3834 = vadd.f32 %v3791, %v3833
    %v3835 = vpop.f32.mrf.mxu0
    %3836 = vdwg.mxu0
    %3837 = vmatpush.bf16.msra.mxu0 %v3722
    %3838 = vmatpush.bf16.msra.mxu0 %v3718
    %3839 = vmatpush.bf16.msra.mxu0 %v3714
    %3840 = vmatpush.bf16.msra.mxu0 %v3710
    %3841 = vmatpush.bf16.msra.mxu0 %v3706
    %3842 = vmatpush.bf16.msra.mxu0 %v3702
    %3843 = vmatpush.bf16.msra.mxu0 %v3698
    %3844 = vmatpush.bf16.msra.mxu0 %v3694
    %3845 = vmatmul.bf16.gmra.mxu0 %v3403
    %v3846 = vpop.f32.mrf.mxu0
    %v3847 = vadd.f32 %v3834, %v3846
    %v3848 = vpop.f32.mrf.mxu0
    %3849 = vdwg.mxu0
    %3850 = vmatpush.bf16.msra.mxu0 %v3691
    %3851 = vmatpush.bf16.msra.mxu0 %v3687
    %3852 = vmatpush.bf16.msra.mxu0 %v3683
    %3853 = vmatpush.bf16.msra.mxu0 %v3679
    %3854 = vmatpush.bf16.msra.mxu0 %v3675
    %3855 = vmatpush.bf16.msra.mxu0 %v3671
    %3856 = vmatpush.bf16.msra.mxu0 %v3667
    %3857 = vmatpush.bf16.msra.mxu0 %v3663
    %3858 = vmatmul.bf16.gmra.mxu0 %v3402
    %v3859 = vpop.f32.mrf.mxu0
    %v3860 = vadd.f32 %v3792, %v3859
    %v3861 = vpop.f32.mrf.mxu0
    %3862 = vdwg.mxu0
    %3863 = vmatpush.bf16.msra.mxu0 %v3723
    %3864 = vmatpush.bf16.msra.mxu0 %v3719
    %3865 = vmatpush.bf16.msra.mxu0 %v3715
    %3866 = vmatpush.bf16.msra.mxu0 %v3711
    %3867 = vmatpush.bf16.msra.mxu0 %v3707
    %3868 = vmatpush.bf16.msra.mxu0 %v3703
    %3869 = vmatpush.bf16.msra.mxu0 %v3699
    %3870 = vmatpush.bf16.msra.mxu0 %v3695
    %3871 = vmatmul.bf16.gmra.mxu0 %v3403
    %v3872 = vpop.f32.mrf.mxu0
    %v3873 = vadd.f32 %v3860, %v3872
    %v3874 = vpop.f32.mrf.mxu0
    %3875 = vdwg.mxu0
    %3876 = vmatpush.bf16.msra.mxu0 %v3692
    %3877 = vmatpush.bf16.msra.mxu0 %v3688
    %3878 = vmatpush.bf16.msra.mxu0 %v3684
    %3879 = vmatpush.bf16.msra.mxu0 %v3680
    %3880 = vmatpush.bf16.msra.mxu0 %v3676
    %3881 = vmatpush.bf16.msra.mxu0 %v3672
    %3882 = vmatpush.bf16.msra.mxu0 %v3668
    %3883 = vmatpush.bf16.msra.mxu0 %v3664
    %3884 = vmatmul.bf16.gmra.mxu0 %v3402
    %v3885 = vpop.f32.mrf.mxu0
    %v3886 = vadd.f32 %v3793, %v3885
    %v3887 = vpop.f32.mrf.mxu0
    %3888 = vdwg.mxu0
    %3889 = vmatpush.bf16.msra.mxu0 %v3724
    %3890 = vmatpush.bf16.msra.mxu0 %v3720
    %3891 = vmatpush.bf16.msra.mxu0 %v3716
    %3892 = vmatpush.bf16.msra.mxu0 %v3712
    %3893 = vmatpush.bf16.msra.mxu0 %v3708
    %3894 = vmatpush.bf16.msra.mxu0 %v3704
    %3895 = vmatpush.bf16.msra.mxu0 %v3700
    %3896 = vmatpush.bf16.msra.mxu0 %v3696
    %3897 = vmatmul.bf16.gmra.mxu0 %v3403
    %v3898 = vpop.f32.mrf.mxu0
    %v3899 = vadd.f32 %v3886, %v3898
    %v3900 = vpop.f32.mrf.mxu0
    %3901 = vdwg.mxu0
    %v3902 = vxor.u32 %v3821, 2147483648
    %v3903 = vxor.u32 %v3847, 2147483648
    %v3904 = vmul.f32 %v3902, 1.442695
    %v3905 = vpow.pop %v3904
    %v3906 = vmul.f32 %v3903, 1.442695
    %v3907 = vpow.pop %v3906
    %v3908 = vadd.f32 %v3905, 1.0
    %v3909 = vadd.f32 %v3907, 1.0
    %v3910 = vrcp.pop %v3908
    %v3911 = vmul.f32 %v3908, %v3910
    %v3912 = vsub.f32 1.0, %v3911
    %v3913 = vmul.f32 %v3910, %v3912
    %v3914 = vadd.f32 %v3910, %v3913
    %vm3915 = vweird.f32 %v3908
    %vm3916 = vweird.f32 %v3910
    %vm3917 = vmor %vm3915, %vm3916
    %v3918 = vsel %vm3917, %v3910, %v3914
    %v3919 = vand.u32 2147483647, %v3908
    %vm3920 = vcmp.eq.f32.partialorder %v3919, 8.507059e+37
    %v3921 = vand.u32 %v3908, 2147483648
    %v3922 = vor.u32 1.1754944e-38, %v3921
    %v3923 = vsel %vm3920, %v3922, %v3918
    %v3924 = vmul.f32 1.0, %v3923
    %v3925 = vrcp.pop %v3909
    %v3926 = vmul.f32 %v3909, %v3925
    %v3927 = vsub.f32 1.0, %v3926
    %v3928 = vmul.f32 %v3925, %v3927
    %v3929 = vadd.f32 %v3925, %v3928
    %vm3930 = vweird.f32 %v3909
    %vm3931 = vweird.f32 %v3925
    %vm3932 = vmor %vm3930, %vm3931
    %v3933 = vsel %vm3932, %v3925, %v3929
    %v3934 = vand.u32 2147483647, %v3909
    %vm3935 = vcmp.eq.f32.partialorder %v3934, 8.507059e+37
    %v3936 = vand.u32 %v3909, 2147483648
    %v3937 = vor.u32 1.1754944e-38, %v3936
    %v3938 = vsel %vm3935, %v3937, %v3933
    %v3939 = vmul.f32 1.0, %v3938
    %v3940 = vmul.f32 %v3924, %v3899
    %v3941 = vadd.f32 %v3873, %v3940
    %v3942 = vtanh.pop %v3941
    %v3943 = vsub.f32 1.0, %v3939
    %v3944 = vmul.f32 %v3943, %v3942
    %v3945 = vmul.f32 %v3939, %v3396
    %v3946 = vadd.f32 %v3944, %v3945
    %3947 = vst [vmem:[#allocation2 + $0x6] sm:$0x1] %v3946
    %s3948 = sld [smem:[#allocation4 + $0x7]]
    %s3949 = scalar_lea.vmem [#allocation5], %s3948
    %v3950 = vld [vmem:[%s3949] sm:$0x1]
    %v3951 = vmax.f32 %v3950, 0.0
    %v3952 = vpack.c.bf16 %v3951, %v3951
    %v3953 = vpack.c.bf16 %v3946, %v3946
    %v3954 = vld [vmem:[#allocation8] sm:$0xff]
    %v3955 = vld [vmem:[#allocation8 + $0x8] sm:$0xff]
    %v3956 = vld [vmem:[#allocation8 + $0x10] sm:$0xff]
    %v3957 = vld [vmem:[#allocation8 + $0x18] sm:$0xff]
    %v3958 = vld [vmem:[#allocation8 + $0x20] sm:$0xff]
    %v3959 = vld [vmem:[#allocation8 + $0x28] sm:$0xff]
    %v3960 = vld [vmem:[#allocation8 + $0x30] sm:$0xff]
    %v3961 = vld [vmem:[#allocation8 + $0x38] sm:$0xff]
    %v3962 = vld [vmem:[#allocation8 + $0x40] sm:$0xff]
    %v3963 = vld [vmem:[#allocation8 + $0x48] sm:$0xff]
    %v3964 = vld [vmem:[#allocation8 + $0x50] sm:$0xff]
    %v3965 = vld [vmem:[#allocation8 + $0x58] sm:$0xff]
    %v3966 = vld [vmem:[#allocation8 + $0x60] sm:$0xff]
    %v3967 = vld [vmem:[#allocation8 + $0x68] sm:$0xff]
    %v3968 = vld [vmem:[#allocation8 + $0x70] sm:$0xff]
    %v3969 = vld [vmem:[#allocation8 + $0x78] sm:$0xff]
    %v3970 = vld [vmem:[#allocation8 + $0x80] sm:$0xff]
    %v3971 = vld [vmem:[#allocation8 + $0x88] sm:$0xff]
    %v3972 = vld [vmem:[#allocation8 + $0x90] sm:$0xff]
    %v3973 = vld [vmem:[#allocation8 + $0x98] sm:$0xff]
    %v3974 = vld [vmem:[#allocation8 + $0xa0] sm:$0xff]
    %v3975 = vld [vmem:[#allocation8 + $0xa8] sm:$0xff]
    %v3976 = vld [vmem:[#allocation8 + $0xb0] sm:$0xff]
    %v3977 = vld [vmem:[#allocation8 + $0xb8] sm:$0xff]
    %v3978 = vld [vmem:[#allocation8 + $0xc0] sm:$0xff]
    %v3979 = vld [vmem:[#allocation8 + $0xc8] sm:$0xff]
    %v3980 = vld [vmem:[#allocation8 + $0xd0] sm:$0xff]
    %v3981 = vld [vmem:[#allocation8 + $0xd8] sm:$0xff]
    %v3982 = vld [vmem:[#allocation8 + $0xe0] sm:$0xff]
    %v3983 = vld [vmem:[#allocation8 + $0xe8] sm:$0xff]
    %v3984 = vld [vmem:[#allocation8 + $0xf0] sm:$0xff]
    %v3985 = vld [vmem:[#allocation8 + $0xf8] sm:$0xff]
    %v3986 = vld [vmem:[#allocation8 + $0x100] sm:$0xff]
    %v3987 = vld [vmem:[#allocation8 + $0x108] sm:$0xff]
    %v3988 = vld [vmem:[#allocation8 + $0x110] sm:$0xff]
    %v3989 = vld [vmem:[#allocation8 + $0x118] sm:$0xff]
    %v3990 = vld [vmem:[#allocation8 + $0x120] sm:$0xff]
    %v3991 = vld [vmem:[#allocation8 + $0x128] sm:$0xff]
    %v3992 = vld [vmem:[#allocation8 + $0x130] sm:$0xff]
    %v3993 = vld [vmem:[#allocation8 + $0x138] sm:$0xff]
    %v3994 = vld [vmem:[#allocation8 + $0x140] sm:$0xff]
    %v3995 = vld [vmem:[#allocation8 + $0x148] sm:$0xff]
    %v3996 = vld [vmem:[#allocation8 + $0x150] sm:$0xff]
    %v3997 = vld [vmem:[#allocation8 + $0x158] sm:$0xff]
    %v3998 = vld [vmem:[#allocation8 + $0x160] sm:$0xff]
    %v3999 = vld [vmem:[#allocation8 + $0x168] sm:$0xff]
    %v4000 = vld [vmem:[#allocation8 + $0x170] sm:$0xff]
    %v4001 = vld [vmem:[#allocation8 + $0x178] sm:$0xff]
    %v4002 = vld [vmem:[#allocation8 + $0x180] sm:$0xff]
    %v4003 = vld [vmem:[#allocation8 + $0x188] sm:$0xff]
    %v4004 = vld [vmem:[#allocation8 + $0x190] sm:$0xff]
    %v4005 = vld [vmem:[#allocation8 + $0x198] sm:$0xff]
    %v4006 = vld [vmem:[#allocation8 + $0x1a0] sm:$0xff]
    %v4007 = vld [vmem:[#allocation8 + $0x1a8] sm:$0xff]
    %v4008 = vld [vmem:[#allocation8 + $0x1b0] sm:$0xff]
    %v4009 = vld [vmem:[#allocation8 + $0x1b8] sm:$0xff]
    %v4010 = vld [vmem:[#allocation8 + $0x1c0] sm:$0xff]
    %v4011 = vld [vmem:[#allocation8 + $0x1c8] sm:$0xff]
    %v4012 = vld [vmem:[#allocation8 + $0x1d0] sm:$0xff]
    %v4013 = vld [vmem:[#allocation8 + $0x1d8] sm:$0xff]
    %v4014 = vld [vmem:[#allocation8 + $0x1e0] sm:$0xff]
    %v4015 = vld [vmem:[#allocation8 + $0x1e8] sm:$0xff]
    %v4016 = vld [vmem:[#allocation8 + $0x1f0] sm:$0xff]
    %v4017 = vld [vmem:[#allocation8 + $0x1f8] sm:$0xff]
    %v4018 = vld [vmem:[#allocation10] sm:$0xf]
    %v4083 = vunpack.c.l.b16 %v3954
    %v4084 = vunpack.c.h.b16 %v3954
    %v4085 = vunpack.c.l.b16 %v3955
    %v4086 = vunpack.c.h.b16 %v3955
    %v4087 = vunpack.c.l.b16 %v3956
    %v4088 = vunpack.c.h.b16 %v3956
    %v4089 = vunpack.c.l.b16 %v3957
    %v4090 = vunpack.c.h.b16 %v3957
    %v4091 = vunpack.c.l.b16 %v3958
    %v4092 = vunpack.c.h.b16 %v3958
    %v4093 = vunpack.c.l.b16 %v3959
    %v4094 = vunpack.c.h.b16 %v3959
    %v4095 = vunpack.c.l.b16 %v3960
    %v4096 = vunpack.c.h.b16 %v3960
    %v4097 = vunpack.c.l.b16 %v3961
    %v4098 = vunpack.c.h.b16 %v3961
    %v4099 = vunpack.c.l.b16 %v3962
    %v4100 = vunpack.c.h.b16 %v3962
    %v4101 = vunpack.c.l.b16 %v3963
    %v4102 = vunpack.c.h.b16 %v3963
    %v4103 = vunpack.c.l.b16 %v3964
    %v4104 = vunpack.c.h.b16 %v3964
    %v4105 = vunpack.c.l.b16 %v3965
    %v4106 = vunpack.c.h.b16 %v3965
    %v4107 = vunpack.c.l.b16 %v3966
    %v4108 = vunpack.c.h.b16 %v3966
    %v4109 = vunpack.c.l.b16 %v3967
    %v4110 = vunpack.c.h.b16 %v3967
    %v4111 = vunpack.c.l.b16 %v3968
    %v4112 = vunpack.c.h.b16 %v3968
    %v4113 = vunpack.c.l.b16 %v3969
    %v4114 = vunpack.c.h.b16 %v3969
    %v4115 = vunpack.c.l.b16 %v3970
    %v4116 = vunpack.c.h.b16 %v3970
    %v4117 = vunpack.c.l.b16 %v3971
    %v4118 = vunpack.c.h.b16 %v3971
    %v4119 = vunpack.c.l.b16 %v3972
    %v4120 = vunpack.c.h.b16 %v3972
    %v4121 = vunpack.c.l.b16 %v3973
    %v4122 = vunpack.c.h.b16 %v3973
    %v4123 = vunpack.c.l.b16 %v3974
    %v4124 = vunpack.c.h.b16 %v3974
    %v4125 = vunpack.c.l.b16 %v3975
    %v4126 = vunpack.c.h.b16 %v3975
    %v4127 = vunpack.c.l.b16 %v3976
    %v4128 = vunpack.c.h.b16 %v3976
    %v4129 = vunpack.c.l.b16 %v3977
    %v4130 = vunpack.c.h.b16 %v3977
    %v4131 = vunpack.c.l.b16 %v3978
    %v4132 = vunpack.c.h.b16 %v3978
    %v4133 = vunpack.c.l.b16 %v3979
    %v4134 = vunpack.c.h.b16 %v3979
    %v4135 = vunpack.c.l.b16 %v3980
    %v4136 = vunpack.c.h.b16 %v3980
    %v4137 = vunpack.c.l.b16 %v3981
    %v4138 = vunpack.c.h.b16 %v3981
    %v4139 = vunpack.c.l.b16 %v3982
    %v4140 = vunpack.c.h.b16 %v3982
    %v4141 = vunpack.c.l.b16 %v3983
    %v4142 = vunpack.c.h.b16 %v3983
    %v4143 = vunpack.c.l.b16 %v3984
    %v4144 = vunpack.c.h.b16 %v3984
    %v4145 = vunpack.c.l.b16 %v3985
    %v4146 = vunpack.c.h.b16 %v3985
    %v4147 = vunpack.c.l.b16 %v3986
    %v4148 = vunpack.c.h.b16 %v3986
    %v4149 = vunpack.c.l.b16 %v3987
    %v4150 = vunpack.c.h.b16 %v3987
    %v4151 = vunpack.c.l.b16 %v3988
    %v4152 = vunpack.c.h.b16 %v3988
    %v4153 = vunpack.c.l.b16 %v3989
    %v4154 = vunpack.c.h.b16 %v3989
    %v4155 = vunpack.c.l.b16 %v3990
    %v4156 = vunpack.c.h.b16 %v3990
    %v4157 = vunpack.c.l.b16 %v3991
    %v4158 = vunpack.c.h.b16 %v3991
    %v4159 = vunpack.c.l.b16 %v3992
    %v4160 = vunpack.c.h.b16 %v3992
    %v4161 = vunpack.c.l.b16 %v3993
    %v4162 = vunpack.c.h.b16 %v3993
    %v4163 = vunpack.c.l.b16 %v3994
    %v4164 = vunpack.c.h.b16 %v3994
    %v4165 = vunpack.c.l.b16 %v3995
    %v4166 = vunpack.c.h.b16 %v3995
    %v4167 = vunpack.c.l.b16 %v3996
    %v4168 = vunpack.c.h.b16 %v3996
    %v4169 = vunpack.c.l.b16 %v3997
    %v4170 = vunpack.c.h.b16 %v3997
    %v4171 = vunpack.c.l.b16 %v3998
    %v4172 = vunpack.c.h.b16 %v3998
    %v4173 = vunpack.c.l.b16 %v3999
    %v4174 = vunpack.c.h.b16 %v3999
    %v4175 = vunpack.c.l.b16 %v4000
    %v4176 = vunpack.c.h.b16 %v4000
    %v4177 = vunpack.c.l.b16 %v4001
    %v4178 = vunpack.c.h.b16 %v4001
    %v4179 = vunpack.c.l.b16 %v4002
    %v4180 = vunpack.c.h.b16 %v4002
    %v4181 = vunpack.c.l.b16 %v4003
    %v4182 = vunpack.c.h.b16 %v4003
    %v4183 = vunpack.c.l.b16 %v4004
    %v4184 = vunpack.c.h.b16 %v4004
    %v4185 = vunpack.c.l.b16 %v4005
    %v4186 = vunpack.c.h.b16 %v4005
    %v4187 = vunpack.c.l.b16 %v4006
    %v4188 = vunpack.c.h.b16 %v4006
    %v4189 = vunpack.c.l.b16 %v4007
    %v4190 = vunpack.c.h.b16 %v4007
    %v4191 = vunpack.c.l.b16 %v4008
    %v4192 = vunpack.c.h.b16 %v4008
    %v4193 = vunpack.c.l.b16 %v4009
    %v4194 = vunpack.c.h.b16 %v4009
    %v4195 = vunpack.c.l.b16 %v4010
    %v4196 = vunpack.c.h.b16 %v4010
    %v4197 = vunpack.c.l.b16 %v4011
    %v4198 = vunpack.c.h.b16 %v4011
    %v4199 = vunpack.c.l.b16 %v4012
    %v4200 = vunpack.c.h.b16 %v4012
    %v4201 = vunpack.c.l.b16 %v4013
    %v4202 = vunpack.c.h.b16 %v4013
    %v4203 = vunpack.c.l.b16 %v4014
    %v4204 = vunpack.c.h.b16 %v4014
    %v4205 = vunpack.c.l.b16 %v4015
    %v4206 = vunpack.c.h.b16 %v4015
    %v4207 = vunpack.c.l.b16 %v4016
    %v4208 = vunpack.c.h.b16 %v4016
    %v4209 = vunpack.c.l.b16 %v4017
    %v4210 = vunpack.c.h.b16 %v4017
    %v4211 = vpack.c.b16 %v4087, %v4083
    %v4212 = vpack.c.b16 %v4088, %v4084
    %v4213 = vpack.c.b16 %v4089, %v4085
    %v4214 = vpack.c.b16 %v4090, %v4086
    %v4215 = vpack.c.b16 %v4095, %v4091
    %v4216 = vpack.c.b16 %v4096, %v4092
    %v4217 = vpack.c.b16 %v4097, %v4093
    %v4218 = vpack.c.b16 %v4098, %v4094
    %v4219 = vpack.c.b16 %v4103, %v4099
    %v4220 = vpack.c.b16 %v4104, %v4100
    %v4221 = vpack.c.b16 %v4105, %v4101
    %v4222 = vpack.c.b16 %v4106, %v4102
    %v4223 = vpack.c.b16 %v4111, %v4107
    %v4224 = vpack.c.b16 %v4112, %v4108
    %v4225 = vpack.c.b16 %v4113, %v4109
    %v4226 = vpack.c.b16 %v4114, %v4110
    %v4227 = vpack.c.b16 %v4119, %v4115
    %v4228 = vpack.c.b16 %v4120, %v4116
    %v4229 = vpack.c.b16 %v4121, %v4117
    %v4230 = vpack.c.b16 %v4122, %v4118
    %v4231 = vpack.c.b16 %v4127, %v4123
    %v4232 = vpack.c.b16 %v4128, %v4124
    %v4233 = vpack.c.b16 %v4129, %v4125
    %v4234 = vpack.c.b16 %v4130, %v4126
    %v4235 = vpack.c.b16 %v4135, %v4131
    %v4236 = vpack.c.b16 %v4136, %v4132
    %v4237 = vpack.c.b16 %v4137, %v4133
    %v4238 = vpack.c.b16 %v4138, %v4134
    %v4239 = vpack.c.b16 %v4143, %v4139
    %v4240 = vpack.c.b16 %v4144, %v4140
    %v4241 = vpack.c.b16 %v4145, %v4141
    %v4242 = vpack.c.b16 %v4146, %v4142
    %v4243 = vpack.c.b16 %v4151, %v4147
    %v4244 = vpack.c.b16 %v4152, %v4148
    %v4245 = vpack.c.b16 %v4153, %v4149
    %v4246 = vpack.c.b16 %v4154, %v4150
    %v4247 = vpack.c.b16 %v4159, %v4155
    %v4248 = vpack.c.b16 %v4160, %v4156
    %v4249 = vpack.c.b16 %v4161, %v4157
    %v4250 = vpack.c.b16 %v4162, %v4158
    %v4251 = vpack.c.b16 %v4167, %v4163
    %v4252 = vpack.c.b16 %v4168, %v4164
    %v4253 = vpack.c.b16 %v4169, %v4165
    %v4254 = vpack.c.b16 %v4170, %v4166
    %v4255 = vpack.c.b16 %v4175, %v4171
    %v4256 = vpack.c.b16 %v4176, %v4172
    %v4257 = vpack.c.b16 %v4177, %v4173
    %v4258 = vpack.c.b16 %v4178, %v4174
    %v4259 = vpack.c.b16 %v4183, %v4179
    %v4260 = vpack.c.b16 %v4184, %v4180
    %v4261 = vpack.c.b16 %v4185, %v4181
    %v4262 = vpack.c.b16 %v4186, %v4182
    %v4263 = vpack.c.b16 %v4191, %v4187
    %v4264 = vpack.c.b16 %v4192, %v4188
    %v4265 = vpack.c.b16 %v4193, %v4189
    %v4266 = vpack.c.b16 %v4194, %v4190
    %v4267 = vpack.c.b16 %v4199, %v4195
    %v4268 = vpack.c.b16 %v4200, %v4196
    %v4269 = vpack.c.b16 %v4201, %v4197
    %v4270 = vpack.c.b16 %v4202, %v4198
    %v4271 = vpack.c.b16 %v4207, %v4203
    %v4272 = vpack.c.b16 %v4208, %v4204
    %v4273 = vpack.c.b16 %v4209, %v4205
    %v4274 = vpack.c.b16 %v4210, %v4206
    %v4340 = vperm.slane %v4018, 0
    %v4341 = vperm.slane %v4018, 1
    %v4342 = vperm.slane %v4018, 2
    %v4343 = vperm.slane %v4018, 3
    %4348 = vmatpush.bf16.msra.mxu0 %v4239
    %4349 = vmatpush.bf16.msra.mxu0 %v4235
    %4350 = vmatpush.bf16.msra.mxu0 %v4231
    %4351 = vmatpush.bf16.msra.mxu0 %v4227
    %4352 = vmatpush.bf16.msra.mxu0 %v4223
    %4353 = vmatpush.bf16.msra.mxu0 %v4219
    %4354 = vmatpush.bf16.msra.mxu0 %v4215
    %4355 = vmatpush.bf16.msra.mxu0 %v4211
    %4356 = vmatmul.bf16.gmra.mxu0 %v3952
    %v4357 = vpop.f32.mrf.mxu0
    %v4358 = vadd.f32 %v4340, %v4357
    %v4359 = vpop.f32.mrf.mxu0
    %4360 = vdwg.mxu0
    %4361 = vmatpush.bf16.msra.mxu0 %v4271
    %4362 = vmatpush.bf16.msra.mxu0 %v4267
    %4363 = vmatpush.bf16.msra.mxu0 %v4263
    %4364 = vmatpush.bf16.msra.mxu0 %v4259
    %4365 = vmatpush.bf16.msra.mxu0 %v4255
    %4366 = vmatpush.bf16.msra.mxu0 %v4251
    %4367 = vmatpush.bf16.msra.mxu0 %v4247
    %4368 = vmatpush.bf16.msra.mxu0 %v4243
    %4369 = vmatmul.bf16.gmra.mxu0 %v3953
    %v4370 = vpop.f32.mrf.mxu0
    %v4371 = vadd.f32 %v4358, %v4370
    %v4372 = vpop.f32.mrf.mxu0
    %4373 = vdwg.mxu0
    %4374 = vmatpush.bf16.msra.mxu0 %v4240
    %4375 = vmatpush.bf16.msra.mxu0 %v4236
    %4376 = vmatpush.bf16.msra.mxu0 %v4232
    %4377 = vmatpush.bf16.msra.mxu0 %v4228
    %4378 = vmatpush.bf16.msra.mxu0 %v4224
    %4379 = vmatpush.bf16.msra.mxu0 %v4220
    %4380 = vmatpush.bf16.msra.mxu0 %v4216
    %4381 = vmatpush.bf16.msra.mxu0 %v4212
    %4382 = vmatmul.bf16.gmra.mxu0 %v3952
    %v4383 = vpop.f32.mrf.mxu0
    %v4384 = vadd.f32 %v4341, %v4383
    %v4385 = vpop.f32.mrf.mxu0
    %4386 = vdwg.mxu0
    %4387 = vmatpush.bf16.msra.mxu0 %v4272
    %4388 = vmatpush.bf16.msra.mxu0 %v4268
    %4389 = vmatpush.bf16.msra.mxu0 %v4264
    %4390 = vmatpush.bf16.msra.mxu0 %v4260
    %4391 = vmatpush.bf16.msra.mxu0 %v4256
    %4392 = vmatpush.bf16.msra.mxu0 %v4252
    %4393 = vmatpush.bf16.msra.mxu0 %v4248
    %4394 = vmatpush.bf16.msra.mxu0 %v4244
    %4395 = vmatmul.bf16.gmra.mxu0 %v3953
    %v4396 = vpop.f32.mrf.mxu0
    %v4397 = vadd.f32 %v4384, %v4396
    %v4398 = vpop.f32.mrf.mxu0
    %4399 = vdwg.mxu0
    %4400 = vmatpush.bf16.msra.mxu0 %v4241
    %4401 = vmatpush.bf16.msra.mxu0 %v4237
    %4402 = vmatpush.bf16.msra.mxu0 %v4233
    %4403 = vmatpush.bf16.msra.mxu0 %v4229
    %4404 = vmatpush.bf16.msra.mxu0 %v4225
    %4405 = vmatpush.bf16.msra.mxu0 %v4221
    %4406 = vmatpush.bf16.msra.mxu0 %v4217
    %4407 = vmatpush.bf16.msra.mxu0 %v4213
    %4408 = vmatmul.bf16.gmra.mxu0 %v3952
    %v4409 = vpop.f32.mrf.mxu0
    %v4410 = vadd.f32 %v4342, %v4409
    %v4411 = vpop.f32.mrf.mxu0
    %4412 = vdwg.mxu0
    %4413 = vmatpush.bf16.msra.mxu0 %v4273
    %4414 = vmatpush.bf16.msra.mxu0 %v4269
    %4415 = vmatpush.bf16.msra.mxu0 %v4265
    %4416 = vmatpush.bf16.msra.mxu0 %v4261
    %4417 = vmatpush.bf16.msra.mxu0 %v4257
    %4418 = vmatpush.bf16.msra.mxu0 %v4253
    %4419 = vmatpush.bf16.msra.mxu0 %v4249
    %4420 = vmatpush.bf16.msra.mxu0 %v4245
    %4421 = vmatmul.bf16.gmra.mxu0 %v3953
    %v4422 = vpop.f32.mrf.mxu0
    %v4423 = vadd.f32 %v4410, %v4422
    %v4424 = vpop.f32.mrf.mxu0
    %4425 = vdwg.mxu0
    %4426 = vmatpush.bf16.msra.mxu0 %v4242
    %4427 = vmatpush.bf16.msra.mxu0 %v4238
    %4428 = vmatpush.bf16.msra.mxu0 %v4234
    %4429 = vmatpush.bf16.msra.mxu0 %v4230
    %4430 = vmatpush.bf16.msra.mxu0 %v4226
    %4431 = vmatpush.bf16.msra.mxu0 %v4222
    %4432 = vmatpush.bf16.msra.mxu0 %v4218
    %4433 = vmatpush.bf16.msra.mxu0 %v4214
    %4434 = vmatmul.bf16.gmra.mxu0 %v3952
    %v4435 = vpop.f32.mrf.mxu0
    %v4436 = vadd.f32 %v4343, %v4435
    %v4437 = vpop.f32.mrf.mxu0
    %4438 = vdwg.mxu0
    %4439 = vmatpush.bf16.msra.mxu0 %v4274
    %4440 = vmatpush.bf16.msra.mxu0 %v4270
    %4441 = vmatpush.bf16.msra.mxu0 %v4266
    %4442 = vmatpush.bf16.msra.mxu0 %v4262
    %4443 = vmatpush.bf16.msra.mxu0 %v4258
    %4444 = vmatpush.bf16.msra.mxu0 %v4254
    %4445 = vmatpush.bf16.msra.mxu0 %v4250
    %4446 = vmatpush.bf16.msra.mxu0 %v4246
    %4447 = vmatmul.bf16.gmra.mxu0 %v3953
    %v4448 = vpop.f32.mrf.mxu0
    %v4449 = vadd.f32 %v4436, %v4448
    %v4450 = vpop.f32.mrf.mxu0
    %4451 = vdwg.mxu0
    %v4452 = vxor.u32 %v4371, 2147483648
    %v4453 = vxor.u32 %v4397, 2147483648
    %v4454 = vmul.f32 %v4452, 1.442695
    %v4455 = vpow.pop %v4454
    %v4456 = vmul.f32 %v4453, 1.442695
    %v4457 = vpow.pop %v4456
    %v4458 = vadd.f32 %v4455, 1.0
    %v4459 = vadd.f32 %v4457, 1.0
    %v4460 = vrcp.pop %v4458
    %v4461 = vmul.f32 %v4458, %v4460
    %v4462 = vsub.f32 1.0, %v4461
    %v4463 = vmul.f32 %v4460, %v4462
    %v4464 = vadd.f32 %v4460, %v4463
    %vm4465 = vweird.f32 %v4458
    %vm4466 = vweird.f32 %v4460
    %vm4467 = vmor %vm4465, %vm4466
    %v4468 = vsel %vm4467, %v4460, %v4464
    %v4469 = vand.u32 2147483647, %v4458
    %vm4470 = vcmp.eq.f32.partialorder %v4469, 8.507059e+37
    %v4471 = vand.u32 %v4458, 2147483648
    %v4472 = vor.u32 1.1754944e-38, %v4471
    %v4473 = vsel %vm4470, %v4472, %v4468
    %v4474 = vmul.f32 1.0, %v4473
    %v4475 = vrcp.pop %v4459
    %v4476 = vmul.f32 %v4459, %v4475
    %v4477 = vsub.f32 1.0, %v4476
    %v4478 = vmul.f32 %v4475, %v4477
    %v4479 = vadd.f32 %v4475, %v4478
    %vm4480 = vweird.f32 %v4459
    %vm4481 = vweird.f32 %v4475
    %vm4482 = vmor %vm4480, %vm4481
    %v4483 = vsel %vm4482, %v4475, %v4479
    %v4484 = vand.u32 2147483647, %v4459
    %vm4485 = vcmp.eq.f32.partialorder %v4484, 8.507059e+37
    %v4486 = vand.u32 %v4459, 2147483648
    %v4487 = vor.u32 1.1754944e-38, %v4486
    %v4488 = vsel %vm4485, %v4487, %v4483
    %v4489 = vmul.f32 1.0, %v4488
    %v4490 = vmul.f32 %v4474, %v4449
    %v4491 = vadd.f32 %v4423, %v4490
    %v4492 = vtanh.pop %v4491
    %v4493 = vsub.f32 1.0, %v4489
    %v4494 = vmul.f32 %v4493, %v4492
    %v4495 = vmul.f32 %v4489, %v3946
    %v4496 = vadd.f32 %v4494, %v4495
    %4497 = vst [vmem:[#allocation2 + $0x7] sm:$0x1] %v4496
    %4498 = vst [vmem:[#allocation14] sm:$0x1] %v4496
    %v4499 = vld [vmem:[#allocation2] sm:$0xff]
    %v4500 = vpack.c.bf16 %v4499, %v4499
    %v4501 = vld [vmem:[#allocation11] sm:$0xff]
    %v4502 = vld [vmem:[#allocation11 + $0x8] sm:$0xff]
    %v4503 = vld [vmem:[#allocation11 + $0x10] sm:$0xff]
    %v4504 = vld [vmem:[#allocation11 + $0x18] sm:$0xff]
    %v4505 = vld [vmem:[#allocation11 + $0x20] sm:$0xff]
    %v4506 = vld [vmem:[#allocation11 + $0x28] sm:$0xff]
    %v4507 = vld [vmem:[#allocation11 + $0x30] sm:$0xff]
    %v4508 = vld [vmem:[#allocation11 + $0x38] sm:$0xff]
    %v4509 = vld [vmem:[#allocation11 + $0x40] sm:$0xff]
    %v4510 = vld [vmem:[#allocation11 + $0x48] sm:$0xff]
    %v4511 = vld [vmem:[#allocation11 + $0x50] sm:$0xff]
    %v4512 = vld [vmem:[#allocation11 + $0x58] sm:$0xff]
    %v4513 = vld [vmem:[#allocation11 + $0x60] sm:$0xff]
    %v4514 = vld [vmem:[#allocation11 + $0x68] sm:$0xff]
    %v4515 = vld [vmem:[#allocation11 + $0x70] sm:$0xff]
    %v4516 = vld [vmem:[#allocation11 + $0x78] sm:$0xff]
    %v4517 = vld [vmem:[%s6] sm:$0x3]
    %v4519 = vperm.slane %v4517, 0
    %v4520 = vperm.slane %v4517, 1
    %v4539 = vunpack.c.l.b16 %v4501
    %v4540 = vunpack.c.h.b16 %v4501
    %v4541 = vunpack.c.l.b16 %v4502
    %v4542 = vunpack.c.h.b16 %v4502
    %v4543 = vunpack.c.l.b16 %v4503
    %v4544 = vunpack.c.h.b16 %v4503
    %v4545 = vunpack.c.l.b16 %v4504
    %v4546 = vunpack.c.h.b16 %v4504
    %v4547 = vunpack.c.l.b16 %v4505
    %v4548 = vunpack.c.h.b16 %v4505
    %v4549 = vunpack.c.l.b16 %v4506
    %v4550 = vunpack.c.h.b16 %v4506
    %v4551 = vunpack.c.l.b16 %v4507
    %v4552 = vunpack.c.h.b16 %v4507
    %v4553 = vunpack.c.l.b16 %v4508
    %v4554 = vunpack.c.h.b16 %v4508
    %v4555 = vunpack.c.l.b16 %v4509
    %v4556 = vunpack.c.h.b16 %v4509
    %v4557 = vunpack.c.l.b16 %v4510
    %v4558 = vunpack.c.h.b16 %v4510
    %v4559 = vunpack.c.l.b16 %v4511
    %v4560 = vunpack.c.h.b16 %v4511
    %v4561 = vunpack.c.l.b16 %v4512
    %v4562 = vunpack.c.h.b16 %v4512
    %v4563 = vunpack.c.l.b16 %v4513
    %v4564 = vunpack.c.h.b16 %v4513
    %v4565 = vunpack.c.l.b16 %v4514
    %v4566 = vunpack.c.h.b16 %v4514
    %v4567 = vunpack.c.l.b16 %v4515
    %v4568 = vunpack.c.h.b16 %v4515
    %v4569 = vunpack.c.l.b16 %v4516
    %v4570 = vunpack.c.h.b16 %v4516
    %v4571 = vpack.c.b16 %v4541, %v4539
    %v4572 = vpack.c.b16 %v4542, %v4540
    %v4573 = vpack.c.b16 %v4545, %v4543
    %v4574 = vpack.c.b16 %v4546, %v4544
    %v4575 = vpack.c.b16 %v4549, %v4547
    %v4576 = vpack.c.b16 %v4550, %v4548
    %v4577 = vpack.c.b16 %v4553, %v4551
    %v4578 = vpack.c.b16 %v4554, %v4552
    %v4579 = vpack.c.b16 %v4557, %v4555
    %v4580 = vpack.c.b16 %v4558, %v4556
    %v4581 = vpack.c.b16 %v4561, %v4559
    %v4582 = vpack.c.b16 %v4562, %v4560
    %v4583 = vpack.c.b16 %v4565, %v4563
    %v4584 = vpack.c.b16 %v4566, %v4564
    %v4585 = vpack.c.b16 %v4569, %v4567
    %v4586 = vpack.c.b16 %v4570, %v4568
    %4603 = vmatpush.bf16.msra.mxu0 %v4585
    %4604 = vmatpush.bf16.msra.mxu0 %v4583
    %4605 = vmatpush.bf16.msra.mxu0 %v4581
    %4606 = vmatpush.bf16.msra.mxu0 %v4579
    %4607 = vmatpush.bf16.msra.mxu0 %v4577
    %4608 = vmatpush.bf16.msra.mxu0 %v4575
    %4609 = vmatpush.bf16.msra.mxu0 %v4573
    %4610 = vmatpush.bf16.msra.mxu0 %v4571
    %4611 = vmatmul.bf16.gmra.mxu0 %v4500
    %v4612 = vpop.f32.mrf.mxu0
    %v4613 = vadd.f32 %v4519, %v4612
    %v4614 = vpop.f32.mrf.mxu0
    %4615 = vdwg.mxu0
    %4616 = vmatpush.bf16.msra.mxu0 %v4586
    %4617 = vmatpush.bf16.msra.mxu0 %v4584
    %4618 = vmatpush.bf16.msra.mxu0 %v4582
    %4619 = vmatpush.bf16.msra.mxu0 %v4580
    %4620 = vmatpush.bf16.msra.mxu0 %v4578
    %4621 = vmatpush.bf16.msra.mxu0 %v4576
    %4622 = vmatpush.bf16.msra.mxu0 %v4574
    %4623 = vmatpush.bf16.msra.mxu0 %v4572
    %4624 = vmatmul.bf16.gmra.mxu0 %v4500
    %v4625 = vpop.f32.mrf.mxu0
    %v4626 = vadd.f32 %v4520, %v4625
    %v4627 = vpop.f32.mrf.mxu0
    %4628 = vdwg.mxu0
    %v4629 = vmax.f32 %v4613, %v4626
    %4630 = vmax.xlane.f32.xlu0 %v4629
    %v4631 = vpop.xlane.xlu0 %4630
    %v4632 = vsub.f32 %v4613, %v4631
    %v4633 = vsub.f32 %v4626, %v4631
    %v4634 = vmul.f32 %v4632, 1.442695
    %v4635 = vpow.pop %v4634
    %v4636 = vmul.f32 %v4633, 1.442695
    %v4637 = vpow.pop %v4636
    %v4638 = vadd.f32 %v4635, %v4637
    %4639 = vadd.xlane.f32.xlu0 %v4638
    %v4640 = vpop.xlane.xlu0 %4639
    %v4641 = vrcp.pop %v4640
    %v4642 = vmul.f32 %v4635, %v4641
    %v4643 = vmul.f32 %v4637, %v4641
    %4644 = vst [vmem:[#allocation13] sm:$0xff] %v4642
    %4645 = vst [vmem:[#allocation13 + $0x8] sm:$0xff] %v4643
    // Predicated region
    $region42: #{tpu_custom_call.1} parent=1 // pred_check
      _
    $region43: #{tpu_custom_call.1} parent=1 // pred_check_branch
      %4647 = sbr.rel (0) target = $region45
    $region44: #{tpu_custom_call.1} parent=1 // pred_region
      %4649 = vsyncadd [#allocation7], 0
      %s4651 = sshll.u32 [#allocation13], 4
      %s4652 = int_to_ptr.vmem [resolvable:$true] %s4651
      %s4653 = sshll.u32 %s7, 4
      %s4654 = int_to_ptr.hbm [resolvable:$true] %s4653
      %4656 = dma.vmem_to_hbm [thread:$0]  %s4652, 256, %s4654, [#allocation7]
    $region45: #{tpu_custom_call.1} parent=1 // pred_fallthru
      _
    // Predicated region
    $region46: #{tpu_custom_call.1} parent=1 // pred_check
      _
    $region47: #{tpu_custom_call.1} parent=1 // pred_check_branch
      %4658 = sbr.rel (0) target = $region49
    $region48: #{tpu_custom_call.1} parent=1 // pred_region
      %4660 = vsyncadd [#allocation15], 0
      %s4662 = sshll.u32 [#allocation14], 4
      %s4663 = int_to_ptr.vmem [resolvable:$true] %s4662
      %s4664 = sshll.u32 %s8, 4
      %s4665 = int_to_ptr.hbm [resolvable:$true] %s4664
      %4667 = dma.vmem_to_hbm [thread:$0]  %s4663, 16, %s4665, [#allocation15]
    $region49: #{tpu_custom_call.1} parent=1 // pred_fallthru
      _
    // Predicated region
    $region50: #{tpu_custom_call.1} parent=1 // pred_check
      _
    $region51: #{tpu_custom_call.1} parent=1 // pred_check_branch
      %4669 = sbr.rel (0) target = $region53
    $region52: #{tpu_custom_call.1} parent=1 // pred_region
      %4671 = dma.done [#allocation7], 256
    $region53: #{tpu_custom_call.1} parent=1 // pred_fallthru
      _
    // Predicated region
    $region54: #{tpu_custom_call.1} parent=1 // pred_check
      _
    $region55: #{tpu_custom_call.1} parent=1 // pred_check_branch
      %4673 = sbr.rel (0) target = $region57
    $region56: #{tpu_custom_call.1} parent=1 // pred_region
      %4675 = dma.done [#allocation15], 16
    $region57: #{tpu_custom_call.1} parent=1 // pred_fallthru
      _
    %4676 = vsyncpa [#allocation6], 1
    %4677 = vsyncpa [#allocation9], 1
    %4678 = vsyncpa [#allocation12], 1
    %4679 = vsyncpa [#allocation7], 1
    %4680 = vsyncpa [#allocation15], 1

</llo_original>
